<compile_context>
chip_gen: v7x
topology: tpu7x:2x2x1
jax: 0.10.0
libtpu: 0.0.40
codegen_flags: <defaults>
</compile_context>

<pallas_src>
import functools

import jax
import jax.numpy as jnp
from jax import lax
from jax.experimental import pallas as pl
from jax.experimental.pallas import tpu as pltpu

BN_EPS = 1e-5
_VMEM_LIMIT = 48 * 1024 * 1024  # scoped VMEM budget; safe on v5e/v6e (128 MiB) and v7x (64 MiB)


def _round_up(x, k):
    return (x + k - 1) // k * k


# ----------------------------------------------------------------------------
# Pass 1: implicit-GEMM conv + bias + ReLU + per-tile partial BN statistics.
# ----------------------------------------------------------------------------
def _conv_relu_stats_kernel(x_ref, w_ref, b_ref, mask_ref,
                            act_ref, sum_ref, ssq_ref,
                            *, ksize, wv, tm, stride):
    # x_ref   : (1, X_rows, Cin)  zero-padded image rows flattened (h,w)-major; block index
    #                             depends only on the outer grid axis -> fetched once/image.
    # w_ref   : (K*K, Cin, Cp)    resident weights.
    # b_ref   : (1, Cp)           resident bias (f32).
    # mask_ref: (tm, 1)           1.0 for real output rows (oh<OH, ow<OW), 0.0 for garbage.
    # act_ref : (1, tm, Cp)       conv+ReLU activations (bf16 in the fast path).
    # sum_ref/ssq_ref: (8, Cp)    per-tile partial BN sums (sublane 0 is meaningful).
    t = pl.program_id(1)
    base = pl.multiple_of(t * tm, tm)
    cp = b_ref.shape[-1]

    acc = jnp.zeros((tm, cp), jnp.float32)
    for kh in range(ksize):
        for kw in range(ksize):
            off = kh * wv + kw
            if stride == 1:
                xs = x_ref[0, pl.ds(base + off, tm), :]                  # (tm, Cin)
            else:
                # TODO(synk): stride>1 uses a dense virtual grid (s^2 overcompute); correct
                # but untuned.  Only traced when stride != 1.
                xs = x_ref[0, pl.ds(stride * base + off, tm, stride=stride), :]
            acc += jnp.dot(xs, w_ref[kh * ksize + kw],
                           preferred_element_type=jnp.float32)           # MXU, f32 acc

    acc = jnp.maximum(acc + b_ref[...], 0.0)                             # bias + ReLU (f32)
    act_ref[0] = acc.astype(act_ref.dtype)                               # bf16 store (fast path)

    # BN partial statistics from the f32 accumulator; garbage rows masked -> globally exact.
    am = acc * mask_ref[...]                                             # (tm, Cp)
    s = jnp.sum(am, axis=0, keepdims=True)                               # (1, Cp)
    q = jnp.sum(am * acc, axis=0, keepdims=True)                         # sum(mask * acc^2)
    sum_ref[...] = jnp.broadcast_to(s, sum_ref.shape)
    ssq_ref[...] = jnp.broadcast_to(q, ssq_ref.shape)


# ----------------------------------------------------------------------------
# Pass 2: y = act * scale + shift   (per channel), written in place on the act buffer.
# ----------------------------------------------------------------------------
def _bn_apply_kernel(act_ref, scale_ref, shift_ref, o_ref):
    y = act_ref[...].astype(jnp.float32) * scale_ref[...] + shift_ref[...]
    o_ref[...] = y.astype(o_ref.dtype)


@functools.partial(jax.jit, static_argnames=("kernel", "stride", "padding",
                                              "tile_m", "use_bf16", "use_bn"))
def conv_block_forward(x, conv_w, conv_b, bn_gamma, bn_beta,
                       kernel=3, stride=1, padding=0,
                       tile_m=512, use_bf16=True, use_bn=True):
    """x: (N, Cin, H, W) NCHW; conv_w: (Cout, Cin, K, K) PyTorch layout.
    Training-mode BatchNorm (batch statistics), like the nn.Module in train()."""
    n, cin, h, w = x.shape
    cout = conv_w.shape[0]
    k = kernel

    hv = h + 2 * padding                       # padded height
    w_real = w + 2 * padding                   # padded (real) width
    wv = _round_up(max(w_real, k), 8)          # virtual row width (8-aligned)
    oh = (hv - k) // stride + 1
    ow = (w_real - k) // stride + 1

    cp = _round_up(cout, 128)                  # lane-dense channel padding
    l_virt = hv * wv                           # virtual outputs per image (incl. garbage)

    tm = max(8, _round_up(min(tile_m, l_virt), 8))
    n_tiles = -(-l_virt // tm)
    l_pad = n_tiles * tm

    # rows of the flattened image the kernel may touch (incl. halo past the last tile)
    x_rows = _round_up(stride * l_pad + (k - 1) * (wv + 1) + 1, 8)

    # ---- input layout: NHWC, zero-padded to (hv, wv), rows flattened + halo rows --------
    x_nhwc = jnp.transpose(x, (0, 2, 3, 1))
    x_nhwc = jnp.pad(x_nhwc, ((0, 0),
                              (padding, hv - h - padding),
                              (padding, wv - w - padding),
                              (0, 0)))                                   # (N, Hv, Wv, Cin)
    x_flat = x_nhwc.reshape(n, hv * wv, cin)
    x_flat = jnp.pad(x_flat, ((0, 0), (0, x_rows - hv * wv), (0, 0)))    # (N, X_rows, Cin)

    # ---- weights / bias / BN params, Cout -> Cp ------------------------------------------
    w_r = jnp.transpose(conv_w, (2, 3, 1, 0)).reshape(k * k, cin, cout)  # [kh*K+kw, ci, co]
    w_r = jnp.pad(w_r, ((0, 0), (0, 0), (0, cp - cout)))
    b_row = jnp.pad(conv_b, (0, cp - cout)).reshape(1, cp).astype(jnp.float32)
    gamma_p = jnp.pad(bn_gamma, (0, cp - cout))
    beta_p = jnp.pad(bn_beta, (0, cp - cout))

    # validity mask over virtual output rows (identical for every image)
    m_idx = jnp.arange(l_pad, dtype=jnp.int32)
    valid = ((m_idx % wv) < ow) & ((m_idx // wv) < oh)
    mask = valid.astype(jnp.float32).reshape(l_pad, 1)

    act_dtype = jnp.bfloat16 if use_bf16 else jnp.float32
    if use_bf16:
        x_flat = x_flat.astype(jnp.bfloat16)
        w_r = w_r.astype(jnp.bfloat16)

    compiler_params = pltpu.CompilerParams(
        dimension_semantics=("parallel", "parallel"),   # megacore shards (n, tiles)
        vmem_limit_bytes=_VMEM_LIMIT)

    bpe = 2 if use_bf16 else 4
    cost1 = pl.CostEstimate(
        flops=2 * n * l_pad * k * k * cin * cp,
        transcendentals=0,
        bytes_accessed=(n * x_rows * cin * bpe + k * k * cin * cp * bpe
                        + n * l_pad * cp * bpe + 2 * n * n_tiles * 8 * cp * 4))

    kern1 = functools.partial(_conv_relu_stats_kernel,
                              ksize=k, wv=wv, tm=tm, stride=stride)

    act, psum, pssq = pl.pallas_call(
        kern1,
        out_shape=(jax.ShapeDtypeStruct((n, l_pad, cp), act_dtype),            # activations
                   jax.ShapeDtypeStruct((n * n_tiles * 8, cp), jnp.float32),   # partial sum
                   jax.ShapeDtypeStruct((n * n_tiles * 8, cp), jnp.float32)),  # partial sumsq
        grid=(n, n_tiles),
        in_specs=[
            pl.BlockSpec((1, x_rows, cin), lambda i, t: (i, 0, 0)),   # image resident over t
            pl.BlockSpec((k * k, cin, cp), lambda i, t: (0, 0, 0)),   # weights resident
            pl.BlockSpec((1, cp), lambda i, t: (0, 0)),               # bias resident
            pl.BlockSpec((tm, 1), lambda i, t: (t, 0)),               # validity mask
        ],
        out_specs=(
            pl.BlockSpec((1, tm, cp), lambda i, t: (i, t, 0)),
            pl.BlockSpec((8, cp), lambda i, t: (i * n_tiles + t, 0)),
            pl.BlockSpec((8, cp), lambda i, t: (i * n_tiles + t, 0)),
        ),
        compiler_params=compiler_params,
        cost_estimate=cost1,
    )(x_flat, w_r, b_row, mask)

    if use_bn:
        # ---- finalize global BN statistics (tiny, XLA) -----------------------------------
        tile_sum = psum.reshape(n * n_tiles, 8, cp)[:, 0, :]
        tile_ssq = pssq.reshape(n * n_tiles, 8, cp)[:, 0, :]
        count = float(n * oh * ow)
        total_sum = jnp.sum(tile_sum, axis=0)
        total_ssq = jnp.sum(tile_ssq, axis=0)
        mean = total_sum / count
        # One-pass E[x^2]-E[x]^2 in f32 (fine post-ReLU at these magnitudes).
        # TODO(synk): shifted / Welford accumulation if mean^2 >> var ever matters.
        var = jnp.maximum(total_ssq / count - mean * mean, 0.0)
        inv = lax.rsqrt(var + BN_EPS)
        scale = (gamma_p * inv).reshape(1, cp).astype(jnp.float32)
        shift = (beta_p - mean * gamma_p * inv).reshape(1, cp).astype(jnp.float32)

        cost2 = pl.CostEstimate(flops=2 * n * l_pad * cp, transcendentals=0,
                                bytes_accessed=2 * n * l_pad * cp * bpe)

        y = pl.pallas_call(
            _bn_apply_kernel,
            out_shape=jax.ShapeDtypeStruct((n, l_pad, cp), act_dtype),
            grid=(n, n_tiles),
            in_specs=[
                pl.BlockSpec((1, tm, cp), lambda i, t: (i, t, 0)),
                pl.BlockSpec((1, cp), lambda i, t: (0, 0)),
                pl.BlockSpec((1, cp), lambda i, t: (0, 0)),
            ],
            out_specs=pl.BlockSpec((1, tm, cp), lambda i, t: (i, t, 0)),
            compiler_params=compiler_params,
            cost_estimate=cost2,
            input_output_aliases={0: 0},          # in-place on the act buffer
        )(act, scale, shift)
    else:
        y = act

    # Strip virtual columns / padded rows / padded channels and convert to NCHW f32.
    # One fused XLA slice+transpose+cast copy (unavoidable: Cp/Wv/Hv padding must go).
    y = y[:, :hv * wv, :cout].reshape(n, hv, wv, cout)[:, :oh, :ow, :]
    return jnp.transpose(y, (0, 3, 1, 2)).astype(jnp.float32)


# ----------------------------------------------------------------------------
# Pure-JAX reference (training-mode BN, matching nn.Conv2d -> ReLU -> BatchNorm2d)
# ----------------------------------------------------------------------------
def _reference(x, conv_w, conv_b, bn_gamma, bn_beta, stride=1, padding=0):
    y = lax.conv_general_dilated(
        x, conv_w, window_strides=(stride, stride),
        padding=[(padding, padding), (padding, padding)],
        dimension_numbers=("NCHW", "OIHW", "NCHW"))
    y = y + conv_b.reshape(1, -1, 1, 1)
    y = jnp.maximum(y, 0.0)
    mean = jnp.mean(y, axis=(0, 2, 3), keepdims=True)
    var = jnp.mean((y - mean) ** 2, axis=(0, 2, 3), keepdims=True)
    return (y - mean) * lax.rsqrt(var + BN_EPS) * bn_gamma.reshape(1, -1, 1, 1) \
        + bn_beta.reshape(1, -1, 1, 1)


if __name__ == "__main__":
    # conv_block(fan_in=4, fan_out=8, kernel=3, stride=1, padding=0, use_bn=True)
    N, CIN, H, W = 2, 4, 16, 16
    COUT, K, STRIDE, PAD = 8, 3, 1, 0

    key = jax.random.PRNGKey(0)
    kx, kw_, kb = jax.random.split(key, 3)

    x = jax.random.normal(kx, (N, CIN, H, W), dtype=jnp.float32)
    fan_in = CIN * K * K
    bound = 1.0 / (fan_in ** 0.5)
    conv_w = jax.random.uniform(kw_, (COUT, CIN, K, K), jnp.float32, -bound, bound)
    conv_b = jax.random.uniform(kb, (COUT,), jnp.float32, -bound, bound)
    bn_gamma = jnp.ones((COUT,), jnp.float32)
    bn_beta = jnp.zeros((COUT,), jnp.float32)

    ref = _reference(x, conv_w, conv_b, bn_gamma, bn_beta, STRIDE, PAD)

    # Strict f32 path, multi-tile grid (tile_m=128 -> 2 tiles/image) to exercise the
    # implicit-GEMM tiling and the garbage-row masking in every tile.
    out_f32 = conv_block_forward(x, conv_w, conv_b, bn_gamma, bn_beta,
                                 kernel=K, stride=STRIDE, padding=PAD,
                                 tile_m=128, use_bf16=False)
    out_f32 = jax.block_until_ready(out_f32)
    assert out_f32.shape == (N, COUT, H - K + 1, W - K + 1), out_f32.shape
    assert jnp.allclose(out_f32, ref, atol=1e-4, rtol=1e-4), "f32 mismatch vs reference"

    # bf16 performance path: bf16 matmul operands + bf16 activation intermediate +
    # in-place pass 2 (default tiling).
    out_bf16 = conv_block_forward(x, conv_w, conv_b, bn_gamma, bn_beta,
                                  kernel=K, stride=STRIDE, padding=PAD,
                                  use_bf16=True)
    out_bf16 = jax.block_until_ready(out_bf16)
    assert jnp.allclose(out_bf16, ref, atol=5e-2, rtol=5e-2), "bf16 mismatch vs reference"

    print("KERNEL_OK")
</pallas_src>

<mosaic_0001>
module attributes {stable_mosaic.version = 11 : i64} {
  func.func @_bn_apply_kernel(%arg0: i32, %arg1: i32, %arg2: memref<1x128x128xf32, #tpu.memory_space<vmem>>, %arg3: memref<1x128xf32, #tpu.memory_space<vmem>>, %arg4: memref<1x128xf32, #tpu.memory_space<vmem>>, %arg5: memref<1x128x128xf32, #tpu.memory_space<vmem>>) attributes {dimension_semantics = [#tpu.dimension_semantics<parallel>, #tpu.dimension_semantics<parallel>], iteration_bounds = array<i64: 2, 2>, scalar_prefetch = 0 : i64, scratch_operands = 0 : i64, tpu.core_type = #tpu.core_type<tc>, window_params = [{transform_indices = @transform_0, window_bounds = array<i64: 1, 128, 128>}, {pipeline_mode = #tpu.pipeline_mode<synchronous>, transform_indices = @transform_1, window_bounds = array<i64: 1, 128>}, {pipeline_mode = #tpu.pipeline_mode<synchronous>, transform_indices = @transform_2, window_bounds = array<i64: 1, 128>}, {transform_indices = @transform_3, window_bounds = array<i64: 1, 128, 128>}]} {
    %c0 = arith.constant 0 : index
    %c0_0 = arith.constant 0 : index
    %c0_1 = arith.constant 0 : index
    %0 = vector.load %arg2[%c0, %c0_0, %c0_1] : memref<1x128x128xf32, #tpu.memory_space<vmem>>, vector<1x128x128xf32>
    %c0_2 = arith.constant 0 : index
    %c0_3 = arith.constant 0 : index
    %1 = vector.load %arg3[%c0_2, %c0_3] : memref<1x128xf32, #tpu.memory_space<vmem>>, vector<1x128xf32>
    %2 = vector.shape_cast %1 : vector<1x128xf32> to vector<1x1x128xf32>
    %3 = vector.broadcast %2 : vector<1x1x128xf32> to vector<1x128x128xf32>
    %4 = arith.mulf %0, %3 : vector<1x128x128xf32>
    %c0_4 = arith.constant 0 : index
    %c0_5 = arith.constant 0 : index
    %5 = vector.load %arg4[%c0_4, %c0_5] : memref<1x128xf32, #tpu.memory_space<vmem>>, vector<1x128xf32>
    %6 = vector.shape_cast %5 : vector<1x128xf32> to vector<1x1x128xf32>
    %7 = vector.broadcast %6 : vector<1x1x128xf32> to vector<1x128x128xf32>
    %8 = arith.addf %4, %7 : vector<1x128x128xf32>
    %c0_6 = arith.constant 0 : index
    %c0_7 = arith.constant 0 : index
    %c0_8 = arith.constant 0 : index
    %9 = vector.load %arg5[%c0_6, %c0_7, %c0_8] : memref<1x128x128xf32, #tpu.memory_space<vmem>>, vector<1x128x128xf32>
    tpu.vector_store %arg5[%c0_6, %c0_7, %c0_8], %8 {strides = array<i32>} : memref<1x128x128xf32, #tpu.memory_space<vmem>>, vector<1x128x128xf32>,
    return
  }
  func.func @transform_0(%arg0: i32, %arg1: i32) -> (i32, i32, i32) {
    %c0_i32 = arith.constant 0 : i32
    %c0_i32_0 = arith.constant 0 : i32
    return %arg0, %arg1, %c0_i32 : i32, i32, i32
  }
  func.func @transform_1(%arg0: i32, %arg1: i32) -> (i32, i32) {
    %c0_i32 = arith.constant 0 : i32
    %c0_i32_0 = arith.constant 0 : i32
    %c0_i32_1 = arith.constant 0 : i32
    return %c0_i32, %c0_i32_0 : i32, i32
  }
  func.func @transform_2(%arg0: i32, %arg1: i32) -> (i32, i32) {
    %c0_i32 = arith.constant 0 : i32
    %c0_i32_0 = arith.constant 0 : i32
    %c0_i32_1 = arith.constant 0 : i32
    return %c0_i32, %c0_i32_0 : i32, i32
  }
  func.func @transform_3(%arg0: i32, %arg1: i32) -> (i32, i32, i32) {
    %c0_i32 = arith.constant 0 : i32
    %c0_i32_0 = arith.constant 0 : i32
    return %arg0, %arg1, %c0_i32 : i32, i32, i32
  }
}

module attributes {stable_mosaic.version = 11 : i64} {
  func.func @_conv_relu_stats_kernel(%arg0: i32, %arg1: i32, %arg2: memref<1x296x4xf32, #tpu.memory_space<vmem>>, %arg3: memref<9x4x128xf32, #tpu.memory_space<vmem>>, %arg4: memref<1x128xf32, #tpu.memory_space<vmem>>, %arg5: memref<128x1xf32, #tpu.memory_space<vmem>>, %arg6: memref<1x128x128xf32, #tpu.memory_space<vmem>>, %arg7: memref<8x128xf32, #tpu.memory_space<vmem>>, %arg8: memref<8x128xf32, #tpu.memory_space<vmem>>) attributes {dimension_semantics = [#tpu.dimension_semantics<parallel>, #tpu.dimension_semantics<parallel>], iteration_bounds = array<i64: 2, 2>, scalar_prefetch = 0 : i64, scratch_operands = 0 : i64, tpu.core_type = #tpu.core_type<tc>, window_params = [{transform_indices = @transform_0, window_bounds = array<i64: 1, 296, 4>}, {pipeline_mode = #tpu.pipeline_mode<synchronous>, transform_indices = @transform_1, window_bounds = array<i64: 9, 4, 128>}, {pipeline_mode = #tpu.pipeline_mode<synchronous>, transform_indices = @transform_2, window_bounds = array<i64: 1, 128>}, {transform_indices = @transform_3, window_bounds = array<i64: 128, 1>}, {transform_indices = @transform_4, window_bounds = array<i64: 1, 128, 128>}, {transform_indices = @transform_5, window_bounds = array<i64: 8, 128>}, {transform_indices = @transform_6, window_bounds = array<i64: 8, 128>}]} {
    %c128_i32 = arith.constant 128 : i32
    %0 = arith.muli %arg1, %c128_i32 : i32
    %1 = tpu.assume_multiple %0, 128 : i32
    %cst = arith.constant 0.000000e+00 : f32
    %2 = vector.broadcast %cst : f32 to vector<128x128xf32>
    %c0_i32 = arith.constant 0 : i32
    %3 = arith.addi %1, %c0_i32 : i32
    %c0 = arith.constant 0 : index
    %4 = arith.index_cast %3 : i32 to index
    %c0_0 = arith.constant 0 : index
    %5 = vector.load %arg2[%c0, %4, %c0_0] : memref<1x296x4xf32, #tpu.memory_space<vmem>>, vector<1x128x4xf32>
    %6 = vector.shape_cast %5 : vector<1x128x4xf32> to vector<128x4xf32>
    %c0_1 = arith.constant 0 : index
    %c0_2 = arith.constant 0 : index
    %c0_3 = arith.constant 0 : index
    %7 = vector.load %arg3[%c0_1, %c0_2, %c0_3] : memref<9x4x128xf32, #tpu.memory_space<vmem>>, vector<1x4x128xf32>
    %8 = vector.shape_cast %7 : vector<1x4x128xf32> to vector<4x128xf32>
    %cst_4 = arith.constant dense<0.000000e+00> : vector<128x128xf32>
    %9 = tpu.matmul %6, %8, %cst_4 {dimension_numbers = #tpu.dot_dimension_numbers<[1], [0], [0], [1], [0, 0, 1, 1], [], []>} : vector<128x4xf32>, vector<4x128xf32>, vector<128x128xf32> -> vector<128x128xf32>
    %10 = arith.addf %2, %9 : vector<128x128xf32>
    %c1_i32 = arith.constant 1 : i32
    %11 = arith.addi %1, %c1_i32 : i32
    %c0_5 = arith.constant 0 : index
    %12 = arith.index_cast %11 : i32 to index
    %c0_6 = arith.constant 0 : index
    %13 = vector.load %arg2[%c0_5, %12, %c0_6] : memref<1x296x4xf32, #tpu.memory_space<vmem>>, vector<1x128x4xf32>
    %14 = vector.shape_cast %13 : vector<1x128x4xf32> to vector<128x4xf32>
    %c1 = arith.constant 1 : index
    %c0_7 = arith.constant 0 : index
    %c0_8 = arith.constant 0 : index
    %15 = vector.load %arg3[%c1, %c0_7, %c0_8] : memref<9x4x128xf32, #tpu.memory_space<vmem>>, vector<1x4x128xf32>
    %16 = vector.shape_cast %15 : vector<1x4x128xf32> to vector<4x128xf32>
    %cst_9 = arith.constant dense<0.000000e+00> : vector<128x128xf32>
    %17 = tpu.matmul %14, %16, %cst_9 {dimension_numbers = #tpu.dot_dimension_numbers<[1], [0], [0], [1], [0, 0, 1, 1], [], []>} : vector<128x4xf32>, vector<4x128xf32>, vector<128x128xf32> -> vector<128x128xf32>
    %18 = arith.addf %10, %17 : vector<128x128xf32>
    %c2_i32 = arith.constant 2 : i32
    %19 = arith.addi %1, %c2_i32 : i32
    %c0_10 = arith.constant 0 : index
    %20 = arith.index_cast %19 : i32 to index
    %c0_11 = arith.constant 0 : index
    %21 = vector.load %arg2[%c0_10, %20, %c0_11] : memref<1x296x4xf32, #tpu.memory_space<vmem>>, vector<1x128x4xf32>
    %22 = vector.shape_cast %21 : vector<1x128x4xf32> to vector<128x4xf32>
    %c2 = arith.constant 2 : index
    %c0_12 = arith.constant 0 : index
    %c0_13 = arith.constant 0 : index
    %23 = vector.load %arg3[%c2, %c0_12, %c0_13] : memref<9x4x128xf32, #tpu.memory_space<vmem>>, vector<1x4x128xf32>
    %24 = vector.shape_cast %23 : vector<1x4x128xf32> to vector<4x128xf32>
    %cst_14 = arith.constant dense<0.000000e+00> : vector<128x128xf32>
    %25 = tpu.matmul %22, %24, %cst_14 {dimension_numbers = #tpu.dot_dimension_numbers<[1], [0], [0], [1], [0, 0, 1, 1], [], []>} : vector<128x4xf32>, vector<4x128xf32>, vector<128x128xf32> -> vector<128x128xf32>
    %26 = arith.addf %18, %25 : vector<128x128xf32>
    %c16_i32 = arith.constant 16 : i32
    %27 = arith.addi %1, %c16_i32 : i32
    %c0_15 = arith.constant 0 : index
    %28 = arith.index_cast %27 : i32 to index
    %c0_16 = arith.constant 0 : index
    %29 = vector.load %arg2[%c0_15, %28, %c0_16] : memref<1x296x4xf32, #tpu.memory_space<vmem>>, vector<1x128x4xf32>
    %30 = vector.shape_cast %29 : vector<1x128x4xf32> to vector<128x4xf32>
    %c3 = arith.constant 3 : index
    %c0_17 = arith.constant 0 : index
    %c0_18 = arith.constant 0 : index
    %31 = vector.load %arg3[%c3, %c0_17, %c0_18] : memref<9x4x128xf32, #tpu.memory_space<vmem>>, vector<1x4x128xf32>
    %32 = vector.shape_cast %31 : vector<1x4x128xf32> to vector<4x128xf32>
    %cst_19 = arith.constant dense<0.000000e+00> : vector<128x128xf32>
    %33 = tpu.matmul %30, %32, %cst_19 {dimension_numbers = #tpu.dot_dimension_numbers<[1], [0], [0], [1], [0, 0, 1, 1], [], []>} : vector<128x4xf32>, vector<4x128xf32>, vector<128x128xf32> -> vector<128x128xf32>
    %34 = arith.addf %26, %33 : vector<128x128xf32>
    %c17_i32 = arith.constant 17 : i32
    %35 = arith.addi %1, %c17_i32 : i32
    %c0_20 = arith.constant 0 : index
    %36 = arith.index_cast %35 : i32 to index
    %c0_21 = arith.constant 0 : index
    %37 = vector.load %arg2[%c0_20, %36, %c0_21] : memref<1x296x4xf32, #tpu.memory_space<vmem>>, vector<1x128x4xf32>
    %38 = vector.shape_cast %37 : vector<1x128x4xf32> to vector<128x4xf32>
    %c4 = arith.constant 4 : index
    %c0_22 = arith.constant 0 : index
    %c0_23 = arith.constant 0 : index
    %39 = vector.load %arg3[%c4, %c0_22, %c0_23] : memref<9x4x128xf32, #tpu.memory_space<vmem>>, vector<1x4x128xf32>
    %40 = vector.shape_cast %39 : vector<1x4x128xf32> to vector<4x128xf32>
    %cst_24 = arith.constant dense<0.000000e+00> : vector<128x128xf32>
    %41 = tpu.matmul %38, %40, %cst_24 {dimension_numbers = #tpu.dot_dimension_numbers<[1], [0], [0], [1], [0, 0, 1, 1], [], []>} : vector<128x4xf32>, vector<4x128xf32>, vector<128x128xf32> -> vector<128x128xf32>
    %42 = arith.addf %34, %41 : vector<128x128xf32>
    %c18_i32 = arith.constant 18 : i32
    %43 = arith.addi %1, %c18_i32 : i32
    %c0_25 = arith.constant 0 : index
    %44 = arith.index_cast %43 : i32 to index
    %c0_26 = arith.constant 0 : index
    %45 = vector.load %arg2[%c0_25, %44, %c0_26] : memref<1x296x4xf32, #tpu.memory_space<vmem>>, vector<1x128x4xf32>
    %46 = vector.shape_cast %45 : vector<1x128x4xf32> to vector<128x4xf32>
    %c5 = arith.constant 5 : index
    %c0_27 = arith.constant 0 : index
    %c0_28 = arith.constant 0 : index
    %47 = vector.load %arg3[%c5, %c0_27, %c0_28] : memref<9x4x128xf32, #tpu.memory_space<vmem>>, vector<1x4x128xf32>
    %48 = vector.shape_cast %47 : vector<1x4x128xf32> to vector<4x128xf32>
    %cst_29 = arith.constant dense<0.000000e+00> : vector<128x128xf32>
    %49 = tpu.matmul %46, %48, %cst_29 {dimension_numbers = #tpu.dot_dimension_numbers<[1], [0], [0], [1], [0, 0, 1, 1], [], []>} : vector<128x4xf32>, vector<4x128xf32>, vector<128x128xf32> -> vector<128x128xf32>
    %50 = arith.addf %42, %49 : vector<128x128xf32>
    %c32_i32 = arith.constant 32 : i32
    %51 = arith.addi %1, %c32_i32 : i32
    %c0_30 = arith.constant 0 : index
    %52 = arith.index_cast %51 : i32 to index
    %c0_31 = arith.constant 0 : index
    %53 = vector.load %arg2[%c0_30, %52, %c0_31] : memref<1x296x4xf32, #tpu.memory_space<vmem>>, vector<1x128x4xf32>
    %54 = vector.shape_cast %53 : vector<1x128x4xf32> to vector<128x4xf32>
    %c6 = arith.constant 6 : index
    %c0_32 = arith.constant 0 : index
    %c0_33 = arith.constant 0 : index
    %55 = vector.load %arg3[%c6, %c0_32, %c0_33] : memref<9x4x128xf32, #tpu.memory_space<vmem>>, vector<1x4x128xf32>
    %56 = vector.shape_cast %55 : vector<1x4x128xf32> to vector<4x128xf32>
    %cst_34 = arith.constant dense<0.000000e+00> : vector<128x128xf32>
    %57 = tpu.matmul %54, %56, %cst_34 {dimension_numbers = #tpu.dot_dimension_numbers<[1], [0], [0], [1], [0, 0, 1, 1], [], []>} : vector<128x4xf32>, vector<4x128xf32>, vector<128x128xf32> -> vector<128x128xf32>
    %58 = arith.addf %50, %57 : vector<128x128xf32>
    %c33_i32 = arith.constant 33 : i32
    %59 = arith.addi %1, %c33_i32 : i32
    %c0_35 = arith.constant 0 : index
    %60 = arith.index_cast %59 : i32 to index
    %c0_36 = arith.constant 0 : index
    %61 = vector.load %arg2[%c0_35, %60, %c0_36] : memref<1x296x4xf32, #tpu.memory_space<vmem>>, vector<1x128x4xf32>
    %62 = vector.shape_cast %61 : vector<1x128x4xf32> to vector<128x4xf32>
    %c7 = arith.constant 7 : index
    %c0_37 = arith.constant 0 : index
    %c0_38 = arith.constant 0 : index
    %63 = vector.load %arg3[%c7, %c0_37, %c0_38] : memref<9x4x128xf32, #tpu.memory_space<vmem>>, vector<1x4x128xf32>
    %64 = vector.shape_cast %63 : vector<1x4x128xf32> to vector<4x128xf32>
    %cst_39 = arith.constant dense<0.000000e+00> : vector<128x128xf32>
    %65 = tpu.matmul %62, %64, %cst_39 {dimension_numbers = #tpu.dot_dimension_numbers<[1], [0], [0], [1], [0, 0, 1, 1], [], []>} : vector<128x4xf32>, vector<4x128xf32>, vector<128x128xf32> -> vector<128x128xf32>
    %66 = arith.addf %58, %65 : vector<128x128xf32>
    %c34_i32 = arith.constant 34 : i32
    %67 = arith.addi %1, %c34_i32 : i32
    %c0_40 = arith.constant 0 : index
    %68 = arith.index_cast %67 : i32 to index
    %c0_41 = arith.constant 0 : index
    %69 = vector.load %arg2[%c0_40, %68, %c0_41] : memref<1x296x4xf32, #tpu.memory_space<vmem>>, vector<1x128x4xf32>
    %70 = vector.shape_cast %69 : vector<1x128x4xf32> to vector<128x4xf32>
    %c8 = arith.constant 8 : index
    %c0_42 = arith.constant 0 : index
    %c0_43 = arith.constant 0 : index
    %71 = vector.load %arg3[%c8, %c0_42, %c0_43] : memref<9x4x128xf32, #tpu.memory_space<vmem>>, vector<1x4x128xf32>
    %72 = vector.shape_cast %71 : vector<1x4x128xf32> to vector<4x128xf32>
    %cst_44 = arith.constant dense<0.000000e+00> : vector<128x128xf32>
    %73 = tpu.matmul %70, %72, %cst_44 {dimension_numbers = #tpu.dot_dimension_numbers<[1], [0], [0], [1], [0, 0, 1, 1], [], []>} : vector<128x4xf32>, vector<4x128xf32>, vector<128x128xf32> -> vector<128x128xf32>
    %74 = arith.addf %66, %73 : vector<128x128xf32>
    %c0_45 = arith.constant 0 : index
    %c0_46 = arith.constant 0 : index
    %75 = vector.load %arg4[%c0_45, %c0_46] : memref<1x128xf32, #tpu.memory_space<vmem>>, vector<1x128xf32>
    %76 = vector.broadcast %75 : vector<1x128xf32> to vector<128x128xf32>
    %77 = arith.addf %74, %76 : vector<128x128xf32>
    %cst_47 = arith.constant 0.000000e+00 : f32
    %78 = vector.broadcast %cst_47 : f32 to vector<128x128xf32>
    %79 = arith.maximumf %77, %78 : vector<128x128xf32>
    %c0_48 = arith.constant 0 : index
    %c0_49 = arith.constant 0 : index
    %c0_50 = arith.constant 0 : index
    %80 = vector.load %arg6[%c0_48, %c0_49, %c0_50] : memref<1x128x128xf32, #tpu.memory_space<vmem>>, vector<1x128x128xf32>
    %81 = vector.shape_cast %80 : vector<1x128x128xf32> to vector<128x128xf32>
    %82 = vector.shape_cast %79 : vector<128x128xf32> to vector<1x128x128xf32>
    tpu.vector_store %arg6[%c0_48, %c0_49, %c0_50], %82 {strides = array<i32>} : memref<1x128x128xf32, #tpu.memory_space<vmem>>, vector<1x128x128xf32>,
    %c0_51 = arith.constant 0 : index
    %c0_52 = arith.constant 0 : index
    %83 = vector.load %arg5[%c0_51, %c0_52] : memref<128x1xf32, #tpu.memory_space<vmem>>, vector<128x1xf32>
    %84 = vector.broadcast %83 : vector<128x1xf32> to vector<128x128xf32>
    %85 = arith.mulf %79, %84 : vector<128x128xf32>
    %cst_53 = arith.constant dense<0.000000e+00> : vector<128xf32>
    %86 = vector.multi_reduction <add>, %85, %cst_53 [0] : vector<128x128xf32> to vector<128xf32>
    %87 = vector.shape_cast %86 : vector<128xf32> to vector<1x128xf32>
    %88 = arith.mulf %85, %79 : vector<128x128xf32>
    %cst_54 = arith.constant dense<0.000000e+00> : vector<128xf32>
    %89 = vector.multi_reduction <add>, %88, %cst_54 [0] : vector<128x128xf32> to vector<128xf32>
    %90 = vector.shape_cast %89 : vector<128xf32> to vector<1x128xf32>
    %91 = vector.shape_cast %87 : vector<1x128xf32> to vector<1x128xf32>
    %92 = vector.broadcast %91 : vector<1x128xf32> to vector<8x128xf32>
    %c0_55 = arith.constant 0 : index
    %c0_56 = arith.constant 0 : index
    %93 = vector.load %arg7[%c0_55, %c0_56] : memref<8x128xf32, #tpu.memory_space<vmem>>, vector<8x128xf32>
    tpu.vector_store %arg7[%c0_55, %c0_56], %92 {strides = array<i32>} : memref<8x128xf32, #tpu.memory_space<vmem>>, vector<8x128xf32>,
    %94 = vector.shape_cast %90 : vector<1x128xf32> to vector<1x128xf32>
    %95 = vector.broadcast %94 : vector<1x128xf32> to vector<8x128xf32>
    %c0_57 = arith.constant 0 : index
    %c0_58 = arith.constant 0 : index
    %96 = vector.load %arg8[%c0_57, %c0_58] : memref<8x128xf32, #tpu.memory_space<vmem>>, vector<8x128xf32>
    tpu.vector_store %arg8[%c0_57, %c0_58], %95 {strides = array<i32>} : memref<8x128xf32, #tpu.memory_space<vmem>>, vector<8x128xf32>,
    return
  }
  func.func @transform_0(%arg0: i32, %arg1: i32) -> (i32, i32, i32) {
    %c0_i32 = arith.constant 0 : i32
    %c0_i32_0 = arith.constant 0 : i32
    %c0_i32_1 = arith.constant 0 : i32
    return %arg0, %c0_i32, %c0_i32_0 : i32, i32, i32
  }
  func.func @transform_1(%arg0: i32, %arg1: i32) -> (i32, i32, i32) {
    %c0_i32 = arith.constant 0 : i32
    %c0_i32_0 = arith.constant 0 : i32
    %c0_i32_1 = arith.constant 0 : i32
    %c0_i32_2 = arith.constant 0 : i32
    return %c0_i32, %c0_i32_0, %c0_i32_1 : i32, i32, i32
  }
  func.func @transform_2(%arg0: i32, %arg1: i32) -> (i32, i32) {
    %c0_i32 = arith.constant 0 : i32
    %c0_i32_0 = arith.constant 0 : i32
    %c0_i32_1 = arith.constant 0 : i32
    return %c0_i32, %c0_i32_0 : i32, i32
  }
  func.func @transform_3(%arg0: i32, %arg1: i32) -> (i32, i32) {
    %c0_i32 = arith.constant 0 : i32
    %c0_i32_0 = arith.constant 0 : i32
    return %arg1, %c0_i32 : i32, i32
  }
  func.func @transform_4(%arg0: i32, %arg1: i32) -> (i32, i32, i32) {
    %c0_i32 = arith.constant 0 : i32
    %c0_i32_0 = arith.constant 0 : i32
    return %arg0, %arg1, %c0_i32 : i32, i32, i32
  }
  func.func @transform_5(%arg0: i32, %arg1: i32) -> (i32, i32) {
    %c2_i32 = arith.constant 2 : i32
    %0 = arith.muli %arg0, %c2_i32 : i32
    %1 = arith.addi %0, %arg1 : i32
    %c0_i32 = arith.constant 0 : i32
    %c0_i32_0 = arith.constant 0 : i32
    return %1, %c0_i32 : i32, i32
  }
  func.func @transform_6(%arg0: i32, %arg1: i32) -> (i32, i32) {
    %c2_i32 = arith.constant 2 : i32
    %0 = arith.muli %arg0, %c2_i32 : i32
    %1 = arith.addi %0, %arg1 : i32
    %c0_i32 = arith.constant 0 : i32
    %c0_i32_0 = arith.constant 0 : i32
    return %1, %c0_i32 : i32, i32
  }
}

</mosaic_0001>

<llo_original>
// kernel: conv_block_forward.3
$region0: #{conv_block_forward.3}
  #allocation0 [shape = 'u32[]', space=smem, size = 0x4, offset = 0x4, fixed_abs, tag = 'smem constant byte address 0x4 - core index']
  #allocation1 [shape = 'u32[144,128]{1,0:T(1,128)}', space=vmem, size = 0x12000, scoped, tag = 'internal scratch']
  %s0 = inlined_call_operand.vmem [shape: f32[2,256,128], index: 0, kind: input, shape index: {}, may-alias: {0,3}]
  %s1 = inlined_call_operand.vmem [shape: f32[1,128], index: 1, kind: input, shape index: {}]
  %s2 = inlined_call_operand.vmem [shape: f32[1,128], index: 2, kind: input, shape index: {}]
  %s3 = inlined_call_operand.vmem [shape: f32[2,256,128], index: 3, kind: output, shape index: {}, may-alias: {0,3}]
  %s4 = sld [smem:[#allocation0]]
  $region45: #{conv_block_forward.3} parent=0
    _
  %s6 = ssub.s32 1, %s4
  %s7 = scalar_select 0, %s6, %s4
  loop: start=0, step=1, limit=6
  $region2: #{conv_block_forward.3} parent=0 // loop_pre_header
    _
  $region3: #{conv_block_forward.3} parent=0 // loop_header
    %s9 = sphi 0, %s13
    %p10 = scmp.ge.s32.totalorder %s9, 6
    %s16 = sphi 0, %s28
    %s17 = sphi 0, %s24
    %s18 = sphi 0, %s16
    %s19 = sphi 0, %s17
    %s20 = sphi 0, %s18
    %s21 = sphi 0, %s19
    %s33 = sphi 0, %s35
    %s36 = sphi 0, %s33
    %s37 = sphi 0, %s36
    %s53 = sphi 0, %s37
    %s57 = sphi 0, %s57
    %s59 = sphi 0, %s57
    %s60 = sphi 0, %s59
    %s74 = sphi 0, %s60
    %s78 = sphi 0, %s78
    %s80 = sphi 0, %s78
    %s81 = sphi 0, %s80
    %s95 = sphi 0, %s81
    %s103 = sphi 0, %s105
    %s106 = sphi 0, %s103
    %s107 = sphi 0, %s106
    %s123 = sphi 0, %s107
  $region4: #{conv_block_forward.3} parent=0 // loop_header_branch
    %12 = sbr.rel (%p10) target = $region8
  $region5: #{conv_block_forward.3} parent=0 // loop_body
    %s14 = ssub.s32 %s9, 1
    %s15 = ssub.s32 %s9, 2
    %s22 = sadd.s32 1, %s17
    %p23 = scmp.ge.s32.totalorder %s22, 2
    %s24 = scalar_select %p23, 0, %s22
    %s25 = sadd.s32 1, %s16
    %s26 = scalar_select %p23, %s25, %s16
    %p27 = scmp.ge.s32.totalorder %s26, 2
    %s28 = scalar_select %p27, 0, %s26
    %s29 = ssub.s32 %s16, %s28
    %s30 = ssub.s32 %s17, %s24
    %s31 = sor.u32 %s29, %s30
    %p32 = scmp.eq.s32.totalorder %s31, 0
    %s34 = sadd.s32 %s33, 1
    %s35 = scalar_select %p32, %s33, %s34
    %p38 = pneg %p32
    %p39 = scmp.eq.s32.totalorder %s9, 3
    %p40 = por %p38, %p39
    %p41 = scmp.ne.s32.totalorder %s33, %s36
    %p42 = scmp.eq.s32.totalorder %s9, 0
    %p43 = por %p41, %p42
    %p44 = scmp.ne.s32.totalorder %s33, %s36
    %p45 = scmp.eq.s32.totalorder %s14, 3
    %p46 = por %p44, %p45
    %p47 = scmp.ne.s32.totalorder %s36, %s37
    %p48 = scmp.eq.s32.totalorder %s14, 0
    %p49 = por %p47, %p48
    %p50 = scmp.ne.s32.totalorder %s36, %s37
    %p51 = scmp.eq.s32.totalorder %s15, 3
    %p52 = por %p50, %p51
    %p54 = scmp.ne.s32.totalorder %s37, %s53
    %p55 = scmp.eq.s32.totalorder %s15, 0
    %p56 = por %p54, %p55
    %s58 = sadd.s32 %s57, 1
    %p61 = scmp.eq.s32.totalorder %s9, 3
    %p62 = scmp.ne.s32.totalorder %s57, %s59
    %p63 = scmp.eq.s32.totalorder %s9, 0
    %p64 = por %p62, %p63
    %p65 = scmp.ne.s32.totalorder %s57, %s59
    %p66 = scmp.eq.s32.totalorder %s14, 3
    %p67 = por %p65, %p66
    %p68 = scmp.ne.s32.totalorder %s59, %s60
    %p69 = scmp.eq.s32.totalorder %s14, 0
    %p70 = por %p68, %p69
    %p71 = scmp.ne.s32.totalorder %s59, %s60
    %p72 = scmp.eq.s32.totalorder %s15, 3
    %p73 = por %p71, %p72
    %p75 = scmp.ne.s32.totalorder %s60, %s74
    %p76 = scmp.eq.s32.totalorder %s15, 0
    %p77 = por %p75, %p76
    %s79 = sadd.s32 %s78, 1
    %p82 = scmp.eq.s32.totalorder %s9, 3
    %p83 = scmp.ne.s32.totalorder %s78, %s80
    %p84 = scmp.eq.s32.totalorder %s9, 0
    %p85 = por %p83, %p84
    %p86 = scmp.ne.s32.totalorder %s78, %s80
    %p87 = scmp.eq.s32.totalorder %s14, 3
    %p88 = por %p86, %p87
    %p89 = scmp.ne.s32.totalorder %s80, %s81
    %p90 = scmp.eq.s32.totalorder %s14, 0
    %p91 = por %p89, %p90
    %p92 = scmp.ne.s32.totalorder %s80, %s81
    %p93 = scmp.eq.s32.totalorder %s15, 3
    %p94 = por %p92, %p93
    %p96 = scmp.ne.s32.totalorder %s81, %s95
    %p97 = scmp.eq.s32.totalorder %s15, 0
    %p98 = por %p96, %p97
    %s99 = ssub.s32 %s16, %s28
    %s100 = ssub.s32 %s17, %s24
    %s101 = sor.u32 %s99, %s100
    %p102 = scmp.eq.s32.totalorder %s101, 0
    %s104 = sadd.s32 %s103, 1
    %s105 = scalar_select %p102, %s103, %s104
    %p108 = pneg %p102
    %p109 = scmp.eq.s32.totalorder %s9, 3
    %p110 = por %p108, %p109
    %p111 = scmp.ne.s32.totalorder %s103, %s106
    %p112 = scmp.eq.s32.totalorder %s9, 0
    %p113 = por %p111, %p112
    %p114 = scmp.ne.s32.totalorder %s103, %s106
    %p115 = scmp.eq.s32.totalorder %s14, 3
    %p116 = por %p114, %p115
    %p117 = scmp.ne.s32.totalorder %s106, %s107
    %p118 = scmp.eq.s32.totalorder %s14, 0
    %p119 = por %p117, %p118
    %p120 = scmp.ne.s32.totalorder %s106, %s107
    %p121 = scmp.eq.s32.totalorder %s15, 3
    %p122 = por %p120, %p121
    %p124 = scmp.ne.s32.totalorder %s107, %s123
    %p125 = scmp.eq.s32.totalorder %s15, 0
    %p126 = por %p124, %p125
    %p127 = scmp.le.s32.totalorder 1, %s9
    %p128 = scmp.lt.s32.totalorder %s9, 5
    %p129 = pnand %p127, %p128
    %p130 = pneg %p129
    // Predicated region
    $region9: #{conv_block_forward.3} parent=5 // pred_check
      _
    $region10: #{conv_block_forward.3} parent=5 // pred_check_branch
      %132 = sbr.rel (%p129) target = $region12
    $region11: #{conv_block_forward.3} parent=5 // pred_region
      %s133 = ssub.s32 %s9, 1
      // Predicated region
      $region13: #{conv_block_forward.3} parent=11 // pred_check
        %p134 = pneg %p70
      $region14: #{conv_block_forward.3} parent=11 // pred_check_branch
        %136 = sbr.rel (%p134) target = $region16
      $region15: #{conv_block_forward.3} parent=11 // pred_region
        _
      $region16: #{conv_block_forward.3} parent=11 // pred_fallthru
        _
      // Predicated region
      $region17: #{conv_block_forward.3} parent=11 // pred_check
        %p137 = pneg %p91
      $region18: #{conv_block_forward.3} parent=11 // pred_check_branch
        %139 = sbr.rel (%p137) target = $region20
      $region19: #{conv_block_forward.3} parent=11 // pred_region
        _
      $region20: #{conv_block_forward.3} parent=11 // pred_fallthru
        _
    $region12: #{conv_block_forward.3} parent=5 // pred_fallthru
      _
    %p140 = scmp.lt.s32.totalorder %s9, 4
    // Predicated region
    $region21: #{conv_block_forward.3} parent=5 // pred_check
      %p141 = pneg %p140
    $region22: #{conv_block_forward.3} parent=5 // pred_check_branch
      %143 = sbr.rel (%p141) target = $region24
    $region23: #{conv_block_forward.3} parent=5 // pred_region
      // Predicated region
      $region25: #{conv_block_forward.3} parent=23 // pred_check
        %p144 = pneg %p43
      $region26: #{conv_block_forward.3} parent=23 // pred_check_branch
        %146 = sbr.rel (%p144) target = $region28
      $region27: #{conv_block_forward.3} parent=23 // pred_region
        %s147 = smul.u32 16, %s17
        %p148 = scmp.lt.s32.totalorder %s16, 1
        %s149 = scalar_select %p148, %s16, 1
        %p150 = scmp.lt.s32.totalorder %s147, 31
        %s151 = scalar_select %p150, %s147, 31
        %s152 = smul.addr %s149, 32
        %s153 = sadd.s32 %s151, %s152
        %s154 = smul.addr %s153, 8
        %s155 = scalar_lea.vmem %s0, %s154
        %s156 = smul.u32 16, %s17
      $region28: #{conv_block_forward.3} parent=23 // pred_fallthru
        _
    $region24: #{conv_block_forward.3} parent=5 // pred_fallthru
      _
    %p157 = scmp.le.s32.totalorder 1, %s9
    %p158 = scmp.lt.s32.totalorder %s9, 5
    %p159 = pnand %p157, %p158
    %p160 = pneg %p159
    // Predicated region
    $region29: #{conv_block_forward.3} parent=5 // pred_check
      _
    $region30: #{conv_block_forward.3} parent=5 // pred_check_branch
      %162 = sbr.rel (%p159) target = $region32
    $region31: #{conv_block_forward.3} parent=5 // pred_region
      %s163 = ssub.s32 %s9, 1
      %s164 = smul.u32 16, %s19
      %p165 = scmp.lt.s32.totalorder %s18, 1
      %s166 = scalar_select %p165, %s18, 1
      %p167 = scmp.lt.s32.totalorder %s164, 31
      %s168 = scalar_select %p167, %s164, 31
      %s169 = smul.addr %s166, 32
      %s170 = sadd.s32 %s168, %s169
      %s171 = smul.addr %s170, 8
      %s172 = scalar_lea.vmem %s0, %s171
      %p173 = pneg %p49
      %p174 = pneg %p46
      %p175 = pneg %p70
      %p176 = pneg %p67
      %p177 = pneg %p91
      %p178 = pneg %p88
      %p179 = pneg %p119
      %p180 = pneg %p116
      %s181 = smul.u32 16, %s19
      %p182 = scmp.lt.s32.totalorder %s18, 1
      %s183 = scalar_select %p182, %s18, 1
      %p184 = scmp.lt.s32.totalorder %s181, 31
      %s185 = scalar_select %p184, %s181, 31
      %s186 = smul.addr %s183, 32
      %s187 = sadd.s32 %s185, %s186
      %s188 = smul.addr %s187, 8
      %s189 = scalar_lea.vmem %s3, %s188
      %s190 = smul.u32 16, %s19
      %p191 = scmp.lt.s32.totalorder %s18, 1
      %s192 = scalar_select %p191, %s18, 1
      %p193 = scmp.lt.s32.totalorder %s190, 31
      %s194 = scalar_select %p193, %s190, 31
      %s195 = smul.addr %s192, 32
      %s196 = sadd.s32 %s194, %s195
      %s197 = smul.addr %s196, 8
      %s198 = scalar_lea.vmem %s0, %s197
      %s199 = smul.u32 16, %s19
      %s200 = smul.u32 16, %s19
      %p201 = scmp.lt.s32.totalorder %s18, 1
      %s202 = scalar_select %p201, %s18, 1
      %p203 = scmp.lt.s32.totalorder %s200, 31
      %s204 = scalar_select %p203, %s200, 31
      %s205 = smul.addr %s202, 32
      %s206 = sadd.s32 %s204, %s205
      %s207 = smul.addr %s206, 8
      %s208 = scalar_lea.vmem %s3, %s207
      %s209 = smul.u32 16, %s19
      %v210 = vld [vmem:[%s198] sm:$0xff]
      %v211 = vld [vmem:[%s198 + $0x8] sm:$0xff]
      %v212 = vld [vmem:[%s198 + $0x10] sm:$0xff]
      %v213 = vld [vmem:[%s198 + $0x18] sm:$0xff]
      %v214 = vld [vmem:[%s198 + $0x20] sm:$0xff]
      %v215 = vld [vmem:[%s198 + $0x28] sm:$0xff]
      %v216 = vld [vmem:[%s198 + $0x30] sm:$0xff]
      %v217 = vld [vmem:[%s198 + $0x38] sm:$0xff]
      %v218 = vld [vmem:[%s198 + $0x40] sm:$0xff]
      %v219 = vld [vmem:[%s198 + $0x48] sm:$0xff]
      %v220 = vld [vmem:[%s198 + $0x50] sm:$0xff]
      %v221 = vld [vmem:[%s198 + $0x58] sm:$0xff]
      %v222 = vld [vmem:[%s198 + $0x60] sm:$0xff]
      %v223 = vld [vmem:[%s198 + $0x68] sm:$0xff]
      %v224 = vld [vmem:[%s198 + $0x70] sm:$0xff]
      %v225 = vld [vmem:[%s198 + $0x78] sm:$0xff]
      %v226 = vld [vmem:[%s1] sm:$0x1]
      %v228 = vlaneseq
      %v229 = vshrl.u32 %v228, 7
      %v230 = vsub.s32 0, %v229
      %v231 = vrot.slane %v226, %v230
      %v233 = vmul.f32 %v210, %v231
      %v234 = vmul.f32 %v211, %v231
      %v235 = vmul.f32 %v212, %v231
      %v236 = vmul.f32 %v213, %v231
      %v237 = vmul.f32 %v214, %v231
      %v238 = vmul.f32 %v215, %v231
      %v239 = vmul.f32 %v216, %v231
      %v240 = vmul.f32 %v217, %v231
      %v241 = vmul.f32 %v218, %v231
      %v242 = vmul.f32 %v219, %v231
      %v243 = vmul.f32 %v220, %v231
      %v244 = vmul.f32 %v221, %v231
      %v245 = vmul.f32 %v222, %v231
      %v246 = vmul.f32 %v223, %v231
      %v247 = vmul.f32 %v224, %v231
      %v248 = vmul.f32 %v225, %v231
      %v249 = vld [vmem:[%s2] sm:$0x1]
      %v251 = vlaneseq
      %v252 = vshrl.u32 %v251, 7
      %v253 = vsub.s32 0, %v252
      %v254 = vrot.slane %v249, %v253
      %v256 = vadd.f32 %v233, %v254
      %v257 = vadd.f32 %v234, %v254
      %v258 = vadd.f32 %v235, %v254
      %v259 = vadd.f32 %v236, %v254
      %v260 = vadd.f32 %v237, %v254
      %v261 = vadd.f32 %v238, %v254
      %v262 = vadd.f32 %v239, %v254
      %v263 = vadd.f32 %v240, %v254
      %v264 = vadd.f32 %v241, %v254
      %v265 = vadd.f32 %v242, %v254
      %v266 = vadd.f32 %v243, %v254
      %v267 = vadd.f32 %v244, %v254
      %v268 = vadd.f32 %v245, %v254
      %v269 = vadd.f32 %v246, %v254
      %v270 = vadd.f32 %v247, %v254
      %v271 = vadd.f32 %v248, %v254
      %272 = vst [vmem:[%s208] sm:$0xff] %v256
      %273 = vst [vmem:[%s208 + $0x8] sm:$0xff] %v257
      %274 = vst [vmem:[%s208 + $0x10] sm:$0xff] %v258
      %275 = vst [vmem:[%s208 + $0x18] sm:$0xff] %v259
      %276 = vst [vmem:[%s208 + $0x20] sm:$0xff] %v260
      %277 = vst [vmem:[%s208 + $0x28] sm:$0xff] %v261
      %278 = vst [vmem:[%s208 + $0x30] sm:$0xff] %v262
      %279 = vst [vmem:[%s208 + $0x38] sm:$0xff] %v263
      %280 = vst [vmem:[%s208 + $0x40] sm:$0xff] %v264
      %281 = vst [vmem:[%s208 + $0x48] sm:$0xff] %v265
      %282 = vst [vmem:[%s208 + $0x50] sm:$0xff] %v266
      %283 = vst [vmem:[%s208 + $0x58] sm:$0xff] %v267
      %284 = vst [vmem:[%s208 + $0x60] sm:$0xff] %v268
      %285 = vst [vmem:[%s208 + $0x68] sm:$0xff] %v269
      %286 = vst [vmem:[%s208 + $0x70] sm:$0xff] %v270
      %287 = vst [vmem:[%s208 + $0x78] sm:$0xff] %v271
      %s288 = smul.u32 16, %s19
      %p289 = scmp.lt.s32.totalorder %s18, 1
      %s290 = scalar_select %p289, %s18, 1
      %p291 = scmp.lt.s32.totalorder %s288, 31
      %s292 = scalar_select %p291, %s288, 31
      %s293 = smul.addr %s290, 32
      %s294 = sadd.s32 %s292, %s293
      %s295 = smul.addr %s294, 8
      %s296 = scalar_lea.vmem %s3, %s295
      // Predicated region
      $region33: #{conv_block_forward.3} parent=31 // pred_check
        %p297 = pneg %p116
      $region34: #{conv_block_forward.3} parent=31 // pred_check_branch
        %299 = sbr.rel (%p297) target = $region36
      $region35: #{conv_block_forward.3} parent=31 // pred_region
        %s300 = smul.u32 16, %s19
      $region36: #{conv_block_forward.3} parent=31 // pred_fallthru
        _
    $region32: #{conv_block_forward.3} parent=5 // pred_fallthru
      _
    %p301 = scmp.le.s32.totalorder 2, %s9
    // Predicated region
    $region37: #{conv_block_forward.3} parent=5 // pred_check
      %p302 = pneg %p301
    $region38: #{conv_block_forward.3} parent=5 // pred_check_branch
      %304 = sbr.rel (%p302) target = $region40
    $region39: #{conv_block_forward.3} parent=5 // pred_region
      %s305 = ssub.s32 %s9, 2
      // Predicated region
      $region41: #{conv_block_forward.3} parent=39 // pred_check
        %p306 = pneg %p122
      $region42: #{conv_block_forward.3} parent=39 // pred_check_branch
        %308 = sbr.rel (%p306) target = $region44
      $region43: #{conv_block_forward.3} parent=39 // pred_region
        %s309 = smul.u32 16, %s21
        %p310 = scmp.lt.s32.totalorder %s20, 1
        %s311 = scalar_select %p310, %s20, 1
        %p312 = scmp.lt.s32.totalorder %s309, 31
        %s313 = scalar_select %p312, %s309, 31
        %s314 = smul.addr %s311, 32
        %s315 = sadd.s32 %s313, %s314
        %s316 = smul.addr %s315, 8
        %s317 = scalar_lea.vmem %s3, %s316
      $region44: #{conv_block_forward.3} parent=39 // pred_fallthru
        _
    $region40: #{conv_block_forward.3} parent=5 // pred_fallthru
      _
  $region6: #{conv_block_forward.3} parent=0 // loop_footer
    %s13 = sadd.s32 1, %s9
  $region7: #{conv_block_forward.3} parent=0 // loop_footer_branch
    %8 = sbr.rel target = $region3
  $region8: #{conv_block_forward.3} parent=0 // loop_exit
    _

// kernel: conv_block_forward.2
$region0: #{conv_block_forward.2}
  #allocation0 [shape = 'u32[]', space=smem, size = 0x4, offset = 0x4, fixed_abs, tag = 'smem constant byte address 0x4 - core index']
  #allocation1 [shape = 'u32[144,128]{1,0:T(1,128)}', space=vmem, size = 0x12000, scoped, tag = 'internal scratch']
  %s0 = inlined_call_operand.vmem [shape: f32[2,296,4], index: 0, kind: input, shape index: {}]
  %s1 = inlined_call_operand.vmem [shape: f32[9,4,128], index: 1, kind: input, shape index: {}]
  %s2 = inlined_call_operand.vmem [shape: f32[1,128], index: 2, kind: input, shape index: {}]
  %s3 = inlined_call_operand.vmem [shape: f32[256,1], index: 3, kind: input, shape index: {}]
  %s4 = inlined_call_operand.vmem [shape: f32[2,256,128], index: 4, kind: output, shape index: {0}]
  %s5 = inlined_call_operand.vmem [shape: f32[32,128], index: 5, kind: output, shape index: {1}]
  %s6 = inlined_call_operand.vmem [shape: f32[32,128], index: 6, kind: output, shape index: {2}]
  %7 = xla_tuple %s4, %s5, %s6
  %s8 = sld [smem:[#allocation0]]
  $region65: #{conv_block_forward.2} parent=0
    _
  %s10 = ssub.s32 1, %s8
  %s11 = scalar_select 0, %s10, %s8
  loop: start=0, step=1, limit=6
  $region2: #{conv_block_forward.2} parent=0 // loop_pre_header
    _
  $region3: #{conv_block_forward.2} parent=0 // loop_header
    %s13 = sphi 0, %s17
    %p14 = scmp.ge.s32.totalorder %s13, 6
    %s20 = sphi 0, %s32
    %s21 = sphi 0, %s28
    %s22 = sphi 0, %s20
    %s23 = sphi 0, %s21
    %s24 = sphi 0, %s22
    %s25 = sphi 0, %s23
    %s35 = sphi 0, %s37
    %s38 = sphi 0, %s35
    %s39 = sphi 0, %s38
    %s55 = sphi 0, %s39
    %s59 = sphi 0, %s59
    %s61 = sphi 0, %s59
    %s62 = sphi 0, %s61
    %s76 = sphi 0, %s62
    %s80 = sphi 0, %s80
    %s82 = sphi 0, %s80
    %s83 = sphi 0, %s82
    %s97 = sphi 0, %s83
    %s103 = sphi 0, %s105
    %s106 = sphi 0, %s103
    %s107 = sphi 0, %s106
    %s123 = sphi 0, %s107
    %s131 = sphi 0, %s133
    %s134 = sphi 0, %s131
    %s135 = sphi 0, %s134
    %s151 = sphi 0, %s135
    %s161 = sphi 0, %s163
    %s164 = sphi 0, %s161
    %s165 = sphi 0, %s164
    %s181 = sphi 0, %s165
    %s191 = sphi 0, %s193
    %s194 = sphi 0, %s191
    %s195 = sphi 0, %s194
    %s211 = sphi 0, %s195
  $region4: #{conv_block_forward.2} parent=0 // loop_header_branch
    %16 = sbr.rel (%p14) target = $region8
  $region5: #{conv_block_forward.2} parent=0 // loop_body
    %s18 = ssub.s32 %s13, 1
    %s19 = ssub.s32 %s13, 2
    %s26 = sadd.s32 1, %s21
    %p27 = scmp.ge.s32.totalorder %s26, 2
    %s28 = scalar_select %p27, 0, %s26
    %s29 = sadd.s32 1, %s20
    %s30 = scalar_select %p27, %s29, %s20
    %p31 = scmp.ge.s32.totalorder %s30, 2
    %s32 = scalar_select %p31, 0, %s30
    %s33 = ssub.s32 %s20, %s32
    %p34 = scmp.eq.s32.totalorder %s33, 0
    %s36 = sadd.s32 %s35, 1
    %s37 = scalar_select %p34, %s35, %s36
    %p40 = pneg %p34
    %p41 = scmp.eq.s32.totalorder %s13, 3
    %p42 = por %p40, %p41
    %p43 = scmp.ne.s32.totalorder %s35, %s38
    %p44 = scmp.eq.s32.totalorder %s13, 0
    %p45 = por %p43, %p44
    %p46 = scmp.ne.s32.totalorder %s35, %s38
    %p47 = scmp.eq.s32.totalorder %s18, 3
    %p48 = por %p46, %p47
    %p49 = scmp.ne.s32.totalorder %s38, %s39
    %p50 = scmp.eq.s32.totalorder %s18, 0
    %p51 = por %p49, %p50
    %p52 = scmp.ne.s32.totalorder %s38, %s39
    %p53 = scmp.eq.s32.totalorder %s19, 3
    %p54 = por %p52, %p53
    %p56 = scmp.ne.s32.totalorder %s39, %s55
    %p57 = scmp.eq.s32.totalorder %s19, 0
    %p58 = por %p56, %p57
    %s60 = sadd.s32 %s59, 1
    %p63 = scmp.eq.s32.totalorder %s13, 3
    %p64 = scmp.ne.s32.totalorder %s59, %s61
    %p65 = scmp.eq.s32.totalorder %s13, 0
    %p66 = por %p64, %p65
    %p67 = scmp.ne.s32.totalorder %s59, %s61
    %p68 = scmp.eq.s32.totalorder %s18, 3
    %p69 = por %p67, %p68
    %p70 = scmp.ne.s32.totalorder %s61, %s62
    %p71 = scmp.eq.s32.totalorder %s18, 0
    %p72 = por %p70, %p71
    %p73 = scmp.ne.s32.totalorder %s61, %s62
    %p74 = scmp.eq.s32.totalorder %s19, 3
    %p75 = por %p73, %p74
    %p77 = scmp.ne.s32.totalorder %s62, %s76
    %p78 = scmp.eq.s32.totalorder %s19, 0
    %p79 = por %p77, %p78
    %s81 = sadd.s32 %s80, 1
    %p84 = scmp.eq.s32.totalorder %s13, 3
    %p85 = scmp.ne.s32.totalorder %s80, %s82
    %p86 = scmp.eq.s32.totalorder %s13, 0
    %p87 = por %p85, %p86
    %p88 = scmp.ne.s32.totalorder %s80, %s82
    %p89 = scmp.eq.s32.totalorder %s18, 3
    %p90 = por %p88, %p89
    %p91 = scmp.ne.s32.totalorder %s82, %s83
    %p92 = scmp.eq.s32.totalorder %s18, 0
    %p93 = por %p91, %p92
    %p94 = scmp.ne.s32.totalorder %s82, %s83
    %p95 = scmp.eq.s32.totalorder %s19, 3
    %p96 = por %p94, %p95
    %p98 = scmp.ne.s32.totalorder %s83, %s97
    %p99 = scmp.eq.s32.totalorder %s19, 0
    %p100 = por %p98, %p99
    %s101 = ssub.s32 %s21, %s28
    %p102 = scmp.eq.s32.totalorder %s101, 0
    %s104 = sadd.s32 %s103, 1
    %s105 = scalar_select %p102, %s103, %s104
    %p108 = pneg %p102
    %p109 = scmp.eq.s32.totalorder %s13, 3
    %p110 = por %p108, %p109
    %p111 = scmp.ne.s32.totalorder %s103, %s106
    %p112 = scmp.eq.s32.totalorder %s13, 0
    %p113 = por %p111, %p112
    %p114 = scmp.ne.s32.totalorder %s103, %s106
    %p115 = scmp.eq.s32.totalorder %s18, 3
    %p116 = por %p114, %p115
    %p117 = scmp.ne.s32.totalorder %s106, %s107
    %p118 = scmp.eq.s32.totalorder %s18, 0
    %p119 = por %p117, %p118
    %p120 = scmp.ne.s32.totalorder %s106, %s107
    %p121 = scmp.eq.s32.totalorder %s19, 3
    %p122 = por %p120, %p121
    %p124 = scmp.ne.s32.totalorder %s107, %s123
    %p125 = scmp.eq.s32.totalorder %s19, 0
    %p126 = por %p124, %p125
    %s127 = ssub.s32 %s20, %s32
    %s128 = ssub.s32 %s21, %s28
    %s129 = sor.u32 %s127, %s128
    %p130 = scmp.eq.s32.totalorder %s129, 0
    %s132 = sadd.s32 %s131, 1
    %s133 = scalar_select %p130, %s131, %s132
    %p136 = pneg %p130
    %p137 = scmp.eq.s32.totalorder %s13, 3
    %p138 = por %p136, %p137
    %p139 = scmp.ne.s32.totalorder %s131, %s134
    %p140 = scmp.eq.s32.totalorder %s13, 0
    %p141 = por %p139, %p140
    %p142 = scmp.ne.s32.totalorder %s131, %s134
    %p143 = scmp.eq.s32.totalorder %s18, 3
    %p144 = por %p142, %p143
    %p145 = scmp.ne.s32.totalorder %s134, %s135
    %p146 = scmp.eq.s32.totalorder %s18, 0
    %p147 = por %p145, %p146
    %p148 = scmp.ne.s32.totalorder %s134, %s135
    %p149 = scmp.eq.s32.totalorder %s19, 3
    %p150 = por %p148, %p149
    %p152 = scmp.ne.s32.totalorder %s135, %s151
    %p153 = scmp.eq.s32.totalorder %s19, 0
    %p154 = por %p152, %p153
    %s155 = smul.u32 %s20, 2
    %s156 = sadd.s32 %s155, %s21
    %s157 = smul.u32 %s32, 2
    %s158 = sadd.s32 %s157, %s28
    %s159 = ssub.s32 %s156, %s158
    %p160 = scmp.eq.s32.totalorder %s159, 0
    %s162 = sadd.s32 %s161, 1
    %s163 = scalar_select %p160, %s161, %s162
    %p166 = pneg %p160
    %p167 = scmp.eq.s32.totalorder %s13, 3
    %p168 = por %p166, %p167
    %p169 = scmp.ne.s32.totalorder %s161, %s164
    %p170 = scmp.eq.s32.totalorder %s13, 0
    %p171 = por %p169, %p170
    %p172 = scmp.ne.s32.totalorder %s161, %s164
    %p173 = scmp.eq.s32.totalorder %s18, 3
    %p174 = por %p172, %p173
    %p175 = scmp.ne.s32.totalorder %s164, %s165
    %p176 = scmp.eq.s32.totalorder %s18, 0
    %p177 = por %p175, %p176
    %p178 = scmp.ne.s32.totalorder %s164, %s165
    %p179 = scmp.eq.s32.totalorder %s19, 3
    %p180 = por %p178, %p179
    %p182 = scmp.ne.s32.totalorder %s165, %s181
    %p183 = scmp.eq.s32.totalorder %s19, 0
    %p184 = por %p182, %p183
    %s185 = smul.u32 %s20, 2
    %s186 = sadd.s32 %s185, %s21
    %s187 = smul.u32 %s32, 2
    %s188 = sadd.s32 %s187, %s28
    %s189 = ssub.s32 %s186, %s188
    %p190 = scmp.eq.s32.totalorder %s189, 0
    %s192 = sadd.s32 %s191, 1
    %s193 = scalar_select %p190, %s191, %s192
    %p196 = pneg %p190
    %p197 = scmp.eq.s32.totalorder %s13, 3
    %p198 = por %p196, %p197
    %p199 = scmp.ne.s32.totalorder %s191, %s194
    %p200 = scmp.eq.s32.totalorder %s13, 0
    %p201 = por %p199, %p200
    %p202 = scmp.ne.s32.totalorder %s191, %s194
    %p203 = scmp.eq.s32.totalorder %s18, 3
    %p204 = por %p202, %p203
    %p205 = scmp.ne.s32.totalorder %s194, %s195
    %p206 = scmp.eq.s32.totalorder %s18, 0
    %p207 = por %p205, %p206
    %p208 = scmp.ne.s32.totalorder %s194, %s195
    %p209 = scmp.eq.s32.totalorder %s19, 3
    %p210 = por %p208, %p209
    %p212 = scmp.ne.s32.totalorder %s195, %s211
    %p213 = scmp.eq.s32.totalorder %s19, 0
    %p214 = por %p212, %p213
    %p215 = scmp.le.s32.totalorder 1, %s13
    %p216 = scmp.lt.s32.totalorder %s13, 5
    %p217 = pnand %p215, %p216
    %p218 = pneg %p217
    // Predicated region
    $region9: #{conv_block_forward.2} parent=5 // pred_check
      _
    $region10: #{conv_block_forward.2} parent=5 // pred_check_branch
      %220 = sbr.rel (%p217) target = $region12
    $region11: #{conv_block_forward.2} parent=5 // pred_region
      %s221 = ssub.s32 %s13, 1
      // Predicated region
      $region13: #{conv_block_forward.2} parent=11 // pred_check
        %p222 = pneg %p72
      $region14: #{conv_block_forward.2} parent=11 // pred_check_branch
        %224 = sbr.rel (%p222) target = $region16
      $region15: #{conv_block_forward.2} parent=11 // pred_region
        _
      $region16: #{conv_block_forward.2} parent=11 // pred_fallthru
        _
      // Predicated region
      $region17: #{conv_block_forward.2} parent=11 // pred_check
        %p225 = pneg %p93
      $region18: #{conv_block_forward.2} parent=11 // pred_check_branch
        %227 = sbr.rel (%p225) target = $region20
      $region19: #{conv_block_forward.2} parent=11 // pred_region
        _
      $region20: #{conv_block_forward.2} parent=11 // pred_fallthru
        _
    $region12: #{conv_block_forward.2} parent=5 // pred_fallthru
      _
    %p228 = scmp.lt.s32.totalorder %s13, 4
    // Predicated region
    $region21: #{conv_block_forward.2} parent=5 // pred_check
      %p229 = pneg %p228
    $region22: #{conv_block_forward.2} parent=5 // pred_check_branch
      %231 = sbr.rel (%p229) target = $region24
    $region23: #{conv_block_forward.2} parent=5 // pred_region
      // Predicated region
      $region25: #{conv_block_forward.2} parent=23 // pred_check
        %p232 = pneg %p45
      $region26: #{conv_block_forward.2} parent=23 // pred_check_branch
        %234 = sbr.rel (%p232) target = $region28
      $region27: #{conv_block_forward.2} parent=23 // pred_region
        %p235 = scmp.lt.s32.totalorder %s20, 1
        %s236 = scalar_select %p235, %s20, 1
        %s237 = smul.addr %s236, 37
        %s238 = smul.addr %s237, 8
        %s239 = scalar_lea.vmem %s0, %s238
      $region28: #{conv_block_forward.2} parent=23 // pred_fallthru
        _
      // Predicated region
      $region29: #{conv_block_forward.2} parent=23 // pred_check
        %p240 = pneg %p113
      $region30: #{conv_block_forward.2} parent=23 // pred_check_branch
        %242 = sbr.rel (%p240) target = $region32
      $region31: #{conv_block_forward.2} parent=23 // pred_region
        %s243 = smul.u32 16, %s21
        %p244 = scmp.lt.s32.totalorder %s243, 31
        %s245 = scalar_select %p244, %s243, 31
        %s246 = smul.addr %s245, 8
        %s247 = scalar_lea.vmem %s3, %s246
        %s248 = smul.u32 16, %s21
      $region32: #{conv_block_forward.2} parent=23 // pred_fallthru
        _
    $region24: #{conv_block_forward.2} parent=5 // pred_fallthru
      _
    %p249 = scmp.le.s32.totalorder 1, %s13
    %p250 = scmp.lt.s32.totalorder %s13, 5
    %p251 = pnand %p249, %p250
    %p252 = pneg %p251
    // Predicated region
    $region33: #{conv_block_forward.2} parent=5 // pred_check
      _
    $region34: #{conv_block_forward.2} parent=5 // pred_check_branch
      %254 = sbr.rel (%p251) target = $region36
    $region35: #{conv_block_forward.2} parent=5 // pred_region
      %s255 = ssub.s32 %s13, 1
      %p256 = scmp.lt.s32.totalorder %s22, 1
      %s257 = scalar_select %p256, %s22, 1
      %s258 = smul.addr %s257, 37
      %s259 = smul.addr %s258, 8
      %s260 = scalar_lea.vmem %s0, %s259
      %p261 = pneg %p51
      %p262 = pneg %p48
      %p263 = pneg %p72
      %p264 = pneg %p69
      %p265 = pneg %p93
      %p266 = pneg %p90
      %s267 = smul.u32 16, %s23
      %p268 = scmp.lt.s32.totalorder %s267, 31
      %s269 = scalar_select %p268, %s267, 31
      %s270 = smul.addr %s269, 8
      %s271 = scalar_lea.vmem %s3, %s270
      %p272 = pneg %p119
      %p273 = pneg %p116
      %p274 = pneg %p147
      %p275 = pneg %p144
      %s276 = smul.u32 16, %s23
      %p277 = scmp.lt.s32.totalorder %s22, 1
      %s278 = scalar_select %p277, %s22, 1
      %p279 = scmp.lt.s32.totalorder %s276, 31
      %s280 = scalar_select %p279, %s276, 31
      %s281 = smul.addr %s278, 32
      %s282 = sadd.s32 %s280, %s281
      %s283 = smul.addr %s282, 8
      %s284 = scalar_lea.vmem %s4, %s283
      %p285 = pneg %p177
      %p286 = pneg %p174
      %s287 = smul.u32 %s22, 2
      %s288 = sadd.s32 %s287, %s23
      %p289 = scmp.lt.s32.totalorder %s288, 3
      %s290 = scalar_select %p289, %s288, 3
      %s291 = smul.addr %s290, 8
      %s292 = scalar_lea.vmem %s5, %s291
      %p293 = pneg %p207
      %p294 = pneg %p204
      %s295 = smul.u32 %s22, 2
      %s296 = sadd.s32 %s295, %s23
      %p297 = scmp.lt.s32.totalorder %s296, 3
      %s298 = scalar_select %p297, %s296, 3
      %s299 = smul.addr %s298, 8
      %s300 = scalar_lea.vmem %s6, %s299
      %p301 = scmp.lt.s32.totalorder %s22, 1
      %s302 = scalar_select %p301, %s22, 1
      %s303 = smul.addr %s302, 37
      %s304 = smul.addr %s303, 8
      %s305 = scalar_lea.vmem %s0, %s304
      %s306 = smul.u32 16, %s23
      %p307 = scmp.lt.s32.totalorder %s306, 31
      %s308 = scalar_select %p307, %s306, 31
      %s309 = smul.addr %s308, 8
      %s310 = scalar_lea.vmem %s3, %s309
      %s311 = smul.u32 16, %s23
      %s312 = smul.u32 16, %s23
      %p313 = scmp.lt.s32.totalorder %s22, 1
      %s314 = scalar_select %p313, %s22, 1
      %p315 = scmp.lt.s32.totalorder %s312, 31
      %s316 = scalar_select %p315, %s312, 31
      %s317 = smul.addr %s314, 32
      %s318 = sadd.s32 %s316, %s317
      %s319 = smul.addr %s318, 8
      %s320 = scalar_lea.vmem %s4, %s319
      %s321 = smul.u32 16, %s23
      %s322 = smul.u32 %s22, 2
      %s323 = sadd.s32 %s322, %s23
      %p324 = scmp.lt.s32.totalorder %s323, 3
      %s325 = scalar_select %p324, %s323, 3
      %s326 = smul.addr %s325, 8
      %s327 = scalar_lea.vmem %s5, %s326
      %s328 = smul.u32 %s22, 2
      %s329 = sadd.s32 %s328, %s23
      %s330 = smul.u32 %s22, 2
      %s331 = sadd.s32 %s330, %s23
      %p332 = scmp.lt.s32.totalorder %s331, 3
      %s333 = scalar_select %p332, %s331, 3
      %s334 = smul.addr %s333, 8
      %s335 = scalar_lea.vmem %s6, %s334
      %s336 = smul.u32 %s22, 2
      %s337 = sadd.s32 %s336, %s23
      %s338 = smul.u32 %s23, 128
      %s339 = scalar_lea.vmem %s305, %s338
      %v340 = vld [vmem:[%s339] sm:$0xff]
      %v341 = vld [vmem:[%s339 + $0x8] sm:$0xff]
      %v342 = vld [vmem:[%s339 + $0x10] sm:$0xff]
      %v343 = vld [vmem:[%s339 + $0x18] sm:$0xff]
      %v344 = vld [vmem:[%s339 + $0x20] sm:$0xff]
      %v345 = vld [vmem:[%s339 + $0x28] sm:$0xff]
      %v346 = vld [vmem:[%s339 + $0x30] sm:$0xff]
      %v347 = vld [vmem:[%s339 + $0x38] sm:$0xff]
      %v348 = vld [vmem:[%s339 + $0x40] sm:$0xff]
      %v349 = vld [vmem:[%s339 + $0x48] sm:$0xff]
      %v350 = vld [vmem:[%s339 + $0x50] sm:$0xff]
      %v351 = vld [vmem:[%s339 + $0x58] sm:$0xff]
      %v352 = vld [vmem:[%s339 + $0x60] sm:$0xff]
      %v353 = vld [vmem:[%s339 + $0x68] sm:$0xff]
      %v354 = vld [vmem:[%s339 + $0x70] sm:$0xff]
      %v355 = vld [vmem:[%s339 + $0x78] sm:$0xff]
      %v356 = vld [vmem:[%s1] sm:$0xf]
      %s357 = sadd.s32 %s338, 1
      %s358 = scalar_lea.vmem %s305, %s357
      %v359 = vld [vmem:[%s358] sm:$0xff]
      %v360 = vld [vmem:[%s358 + $0x8] sm:$0xff]
      %v361 = vld [vmem:[%s358 + $0x10] sm:$0xff]
      %v362 = vld [vmem:[%s358 + $0x18] sm:$0xff]
      %v363 = vld [vmem:[%s358 + $0x20] sm:$0xff]
      %v364 = vld [vmem:[%s358 + $0x28] sm:$0xff]
      %v365 = vld [vmem:[%s358 + $0x30] sm:$0xff]
      %v366 = vld [vmem:[%s358 + $0x38] sm:$0xff]
      %v367 = vld [vmem:[%s358 + $0x40] sm:$0xff]
      %v368 = vld [vmem:[%s358 + $0x48] sm:$0xff]
      %v369 = vld [vmem:[%s358 + $0x50] sm:$0xff]
      %v370 = vld [vmem:[%s358 + $0x58] sm:$0xff]
      %v371 = vld [vmem:[%s358 + $0x60] sm:$0xff]
      %v372 = vld [vmem:[%s358 + $0x68] sm:$0xff]
      %v373 = vld [vmem:[%s358 + $0x70] sm:$0xff]
      %v374 = vld [vmem:[%s358 + $0x78] sm:$0xff]
      %s375 = scalar_lea.vmem %s1, 4
      %v376 = vld [vmem:[%s375] sm:$0xf]
      %vm377 = vcmask 31744
      %v379 = vsel %vm377, %v359, 0
      %v382 = vsel %vm377, %v360, 0
      %v385 = vsel %vm377, %v361, 0
      %v388 = vsel %vm377, %v362, 0
      %v391 = vsel %vm377, %v363, 0
      %v394 = vsel %vm377, %v364, 0
      %v397 = vsel %vm377, %v365, 0
      %v400 = vsel %vm377, %v366, 0
      %v403 = vsel %vm377, %v367, 0
      %v406 = vsel %vm377, %v368, 0
      %v409 = vsel %vm377, %v369, 0
      %v412 = vsel %vm377, %v370, 0
      %v415 = vsel %vm377, %v371, 0
      %v418 = vsel %vm377, %v372, 0
      %v421 = vsel %vm377, %v373, 0
      %v424 = vsel %vm377, %v374, 0
      %vm426 = vcmask 1043456
      %v428 = vsel %vm426, %v376, 0
      %430 = vmatprep.subr.mxu0 0.0
      %431 = vmatpush1.msra.mxu0 %v428
      %432 = vmatprep.subr.mxu0 0.0
      %433 = vmatpush1.msra.mxu0 0.0
      %434 = vmatprep.subr.mxu0 0.0
      %435 = vmatpush1.msra.mxu0 0.0
      %436 = vmatprep.subr.mxu0 0.0
      %437 = vmatpush1.msra.mxu0 0.0
      %438 = vmatprep.subr.mxu0 0.0
      %439 = vmatpush1.msra.mxu0 0.0
      %440 = vmatprep.subr.mxu0 0.0
      %441 = vmatpush1.msra.mxu0 0.0
      %442 = vmatprep.subr.mxu0 0.0
      %443 = vmatpush1.msra.mxu0 0.0
      %444 = vmatprep.subr.mxu0 0.0
      %445 = vmatpush1.msra.mxu0 0.0
      %446 = vmatprep.subr.mxu0 0.0
      %447 = vmatpush1.msra.mxu0 0.0
      %448 = vmatprep.subr.mxu0 0.0
      %449 = vmatpush1.msra.mxu0 0.0
      %450 = vmatprep.subr.mxu0 0.0
      %451 = vmatpush1.msra.mxu0 0.0
      %452 = vmatprep.subr.mxu0 0.0
      %453 = vmatpush1.msra.mxu0 0.0
      %454 = vmatprep.subr.mxu0 0.0
      %455 = vmatpush1.msra.mxu0 0.0
      %456 = vmatprep.subr.mxu0 0.0
      %457 = vmatpush1.msra.mxu0 0.0
      %458 = vmatprep.subr.mxu0 0.0
      %459 = vmatpush1.msra.mxu0 0.0
      %460 = vmatprep.subr.mxu0 0.0
      %461 = vmatpush1.msra.mxu0 0.0
      %462 = vmatprep.subr.mxu0 0.0
      %463 = vmatpush1.msra.mxu0 0.0
      %464 = vmatprep.subr.mxu0 0.0
      %465 = vmatpush1.msra.mxu0 0.0
      %466 = vmatprep.subr.mxu0 0.0
      %467 = vmatpush1.msra.mxu0 0.0
      %468 = vmatprep.subr.mxu0 0.0
      %469 = vmatpush1.msra.mxu0 0.0
      %470 = vmatprep.subr.mxu0 0.0
      %471 = vmatpush1.msra.mxu0 0.0
      %472 = vmatprep.subr.mxu0 0.0
      %473 = vmatpush1.msra.mxu0 0.0
      %474 = vmatprep.subr.mxu0 0.0
      %475 = vmatpush1.msra.mxu0 0.0
      %476 = vmatprep.subr.mxu0 0.0
      %477 = vmatpush1.msra.mxu0 0.0
      %478 = vmatprep.subr.mxu0 0.0
      %479 = vmatpush1.msra.mxu0 0.0
      %480 = vmatprep.subr.mxu0 0.0
      %481 = vmatpush1.msra.mxu0 0.0
      %482 = vmatprep.subr.mxu0 0.0
      %483 = vmatpush1.msra.mxu0 0.0
      %484 = vmatprep.subr.mxu0 0.0
      %485 = vmatpush1.msra.mxu0 0.0
      %486 = vmatprep.subr.mxu0 0.0
      %487 = vmatpush1.msra.mxu0 0.0
      %488 = vmatprep.subr.mxu0 0.0
      %489 = vmatpush1.msra.mxu0 0.0
      %490 = vmatprep.subr.mxu0 0.0
      %491 = vmatpush1.msra.mxu0 0.0
      %492 = vmatprep.subr.mxu0 0.0
      %493 = vmatpush1.msra.mxu0 0.0
      %494 = vmatprep.mubr.f32.mxu0 0.0
      %495 = vmatmul.mubr.f32.gmra.mrb[0].mxu0 %v379
      %v496 = vpop.f32.mrb[0].mxu0
      %v497 = vadd.f32 0.0, %v496
      %v498 = vpop.f32.mrb[0].mxu0
      %499 = vmatprep.mubr.f32.mxu0 0.0
      %500 = vmatmul.mubr.f32.gmra.mrb[0].mxu0 %v382
      %v501 = vpop.f32.mrb[0].mxu0
      %v502 = vadd.f32 0.0, %v501
      %v503 = vpop.f32.mrb[0].mxu0
      %504 = vmatprep.mubr.f32.mxu0 0.0
      %505 = vmatmul.mubr.f32.gmra.mrb[0].mxu0 %v385
      %v506 = vpop.f32.mrb[0].mxu0
      %v507 = vadd.f32 0.0, %v506
      %v508 = vpop.f32.mrb[0].mxu0
      %509 = vmatprep.mubr.f32.mxu0 0.0
      %510 = vmatmul.mubr.f32.gmra.mrb[0].mxu0 %v388
      %v511 = vpop.f32.mrb[0].mxu0
      %v512 = vadd.f32 0.0, %v511
      %v513 = vpop.f32.mrb[0].mxu0
      %514 = vmatprep.mubr.f32.mxu0 0.0
      %515 = vmatmul.mubr.f32.gmra.mrb[0].mxu0 %v391
      %v516 = vpop.f32.mrb[0].mxu0
      %v517 = vadd.f32 0.0, %v516
      %v518 = vpop.f32.mrb[0].mxu0
      %519 = vmatprep.mubr.f32.mxu0 0.0
      %520 = vmatmul.mubr.f32.gmra.mrb[0].mxu0 %v394
      %v521 = vpop.f32.mrb[0].mxu0
      %v522 = vadd.f32 0.0, %v521
      %v523 = vpop.f32.mrb[0].mxu0
      %524 = vmatprep.mubr.f32.mxu0 0.0
      %525 = vmatmul.mubr.f32.gmra.mrb[0].mxu0 %v397
      %v526 = vpop.f32.mrb[0].mxu0
      %v527 = vadd.f32 0.0, %v526
      %v528 = vpop.f32.mrb[0].mxu0
      %529 = vmatprep.mubr.f32.mxu0 0.0
      %530 = vmatmul.mubr.f32.gmra.mrb[0].mxu0 %v400
      %v531 = vpop.f32.mrb[0].mxu0
      %v532 = vadd.f32 0.0, %v531
      %v533 = vpop.f32.mrb[0].mxu0
      %534 = vmatprep.mubr.f32.mxu0 0.0
      %535 = vmatmul.mubr.f32.gmra.mrb[0].mxu0 %v403
      %v536 = vpop.f32.mrb[0].mxu0
      %v537 = vadd.f32 0.0, %v536
      %v538 = vpop.f32.mrb[0].mxu0
      %539 = vmatprep.mubr.f32.mxu0 0.0
      %540 = vmatmul.mubr.f32.gmra.mrb[0].mxu0 %v406
      %v541 = vpop.f32.mrb[0].mxu0
      %v542 = vadd.f32 0.0, %v541
      %v543 = vpop.f32.mrb[0].mxu0
      %544 = vmatprep.mubr.f32.mxu0 0.0
      %545 = vmatmul.mubr.f32.gmra.mrb[0].mxu0 %v409
      %v546 = vpop.f32.mrb[0].mxu0
      %v547 = vadd.f32 0.0, %v546
      %v548 = vpop.f32.mrb[0].mxu0
      %549 = vmatprep.mubr.f32.mxu0 0.0
      %550 = vmatmul.mubr.f32.gmra.mrb[0].mxu0 %v412
      %v551 = vpop.f32.mrb[0].mxu0
      %v552 = vadd.f32 0.0, %v551
      %v553 = vpop.f32.mrb[0].mxu0
      %554 = vmatprep.mubr.f32.mxu0 0.0
      %555 = vmatmul.mubr.f32.gmra.mrb[0].mxu0 %v415
      %v556 = vpop.f32.mrb[0].mxu0
      %v557 = vadd.f32 0.0, %v556
      %v558 = vpop.f32.mrb[0].mxu0
      %559 = vmatprep.mubr.f32.mxu0 0.0
      %560 = vmatmul.mubr.f32.gmra.mrb[0].mxu0 %v418
      %v561 = vpop.f32.mrb[0].mxu0
      %v562 = vadd.f32 0.0, %v561
      %v563 = vpop.f32.mrb[0].mxu0
      %564 = vmatprep.mubr.f32.mxu0 0.0
      %565 = vmatmul.mubr.f32.gmra.mrb[0].mxu0 %v421
      %v566 = vpop.f32.mrb[0].mxu0
      %v567 = vadd.f32 0.0, %v566
      %v568 = vpop.f32.mrb[0].mxu0
      %569 = vmatprep.mubr.f32.mxu0 0.0
      %570 = vmatmul.mubr.f32.gmra.mrb[0].mxu0 %v424
      %v571 = vpop.f32.mrb[0].mxu0
      %v572 = vadd.f32 0.0, %v571
      %v573 = vpop.f32.mrb[0].mxu0
      %574 = vdwg.mxu0
      %v576 = vsel %vm377, %v340, 0
      %v579 = vsel %vm377, %v341, 0
      %v582 = vsel %vm377, %v342, 0
      %v585 = vsel %vm377, %v343, 0
      %v588 = vsel %vm377, %v344, 0
      %v591 = vsel %vm377, %v345, 0
      %v594 = vsel %vm377, %v346, 0
      %v597 = vsel %vm377, %v347, 0
      %v600 = vsel %vm377, %v348, 0
      %v603 = vsel %vm377, %v349, 0
      %v606 = vsel %vm377, %v350, 0
      %v609 = vsel %vm377, %v351, 0
      %v612 = vsel %vm377, %v352, 0
      %v615 = vsel %vm377, %v353, 0
      %v618 = vsel %vm377, %v354, 0
      %v621 = vsel %vm377, %v355, 0
      %v624 = vsel %vm426, %v356, 0
      %626 = vmatprep.subr.mxu0 0.0
      %627 = vmatpush1.msra.mxu0 %v624
      %628 = vmatprep.subr.mxu0 0.0
      %629 = vmatpush1.msra.mxu0 0.0
      %630 = vmatprep.subr.mxu0 0.0
      %631 = vmatpush1.msra.mxu0 0.0
      %632 = vmatprep.subr.mxu0 0.0
      %633 = vmatpush1.msra.mxu0 0.0
      %634 = vmatprep.subr.mxu0 0.0
      %635 = vmatpush1.msra.mxu0 0.0
      %636 = vmatprep.subr.mxu0 0.0
      %637 = vmatpush1.msra.mxu0 0.0
      %638 = vmatprep.subr.mxu0 0.0
      %639 = vmatpush1.msra.mxu0 0.0
      %640 = vmatprep.subr.mxu0 0.0
      %641 = vmatpush1.msra.mxu0 0.0
      %642 = vmatprep.subr.mxu0 0.0
      %643 = vmatpush1.msra.mxu0 0.0
      %644 = vmatprep.subr.mxu0 0.0
      %645 = vmatpush1.msra.mxu0 0.0
      %646 = vmatprep.subr.mxu0 0.0
      %647 = vmatpush1.msra.mxu0 0.0
      %648 = vmatprep.subr.mxu0 0.0
      %649 = vmatpush1.msra.mxu0 0.0
      %650 = vmatprep.subr.mxu0 0.0
      %651 = vmatpush1.msra.mxu0 0.0
      %652 = vmatprep.subr.mxu0 0.0
      %653 = vmatpush1.msra.mxu0 0.0
      %654 = vmatprep.subr.mxu0 0.0
      %655 = vmatpush1.msra.mxu0 0.0
      %656 = vmatprep.subr.mxu0 0.0
      %657 = vmatpush1.msra.mxu0 0.0
      %658 = vmatprep.subr.mxu0 0.0
      %659 = vmatpush1.msra.mxu0 0.0
      %660 = vmatprep.subr.mxu0 0.0
      %661 = vmatpush1.msra.mxu0 0.0
      %662 = vmatprep.subr.mxu0 0.0
      %663 = vmatpush1.msra.mxu0 0.0
      %664 = vmatprep.subr.mxu0 0.0
      %665 = vmatpush1.msra.mxu0 0.0
      %666 = vmatprep.subr.mxu0 0.0
      %667 = vmatpush1.msra.mxu0 0.0
      %668 = vmatprep.subr.mxu0 0.0
      %669 = vmatpush1.msra.mxu0 0.0
      %670 = vmatprep.subr.mxu0 0.0
      %671 = vmatpush1.msra.mxu0 0.0
      %672 = vmatprep.subr.mxu0 0.0
      %673 = vmatpush1.msra.mxu0 0.0
      %674 = vmatprep.subr.mxu0 0.0
      %675 = vmatpush1.msra.mxu0 0.0
      %676 = vmatprep.subr.mxu0 0.0
      %677 = vmatpush1.msra.mxu0 0.0
      %678 = vmatprep.subr.mxu0 0.0
      %679 = vmatpush1.msra.mxu0 0.0
      %680 = vmatprep.subr.mxu0 0.0
      %681 = vmatpush1.msra.mxu0 0.0
      %682 = vmatprep.subr.mxu0 0.0
      %683 = vmatpush1.msra.mxu0 0.0
      %684 = vmatprep.subr.mxu0 0.0
      %685 = vmatpush1.msra.mxu0 0.0
      %686 = vmatprep.subr.mxu0 0.0
      %687 = vmatpush1.msra.mxu0 0.0
      %688 = vmatprep.subr.mxu0 0.0
      %689 = vmatpush1.msra.mxu0 0.0
      %690 = vmatprep.mubr.f32.mxu0 0.0
      %691 = vmatmul.mubr.f32.gmra.mrb[0].mxu0 %v576
      %v692 = vpop.f32.mrb[0].mxu0
      %v693 = vadd.f32 %v497, %v692
      %v694 = vpop.f32.mrb[0].mxu0
      %695 = vmatprep.mubr.f32.mxu0 0.0
      %696 = vmatmul.mubr.f32.gmra.mrb[0].mxu0 %v579
      %v697 = vpop.f32.mrb[0].mxu0
      %v698 = vadd.f32 %v502, %v697
      %v699 = vpop.f32.mrb[0].mxu0
      %700 = vmatprep.mubr.f32.mxu0 0.0
      %701 = vmatmul.mubr.f32.gmra.mrb[0].mxu0 %v582
      %v702 = vpop.f32.mrb[0].mxu0
      %v703 = vadd.f32 %v507, %v702
      %v704 = vpop.f32.mrb[0].mxu0
      %705 = vmatprep.mubr.f32.mxu0 0.0
      %706 = vmatmul.mubr.f32.gmra.mrb[0].mxu0 %v585
      %v707 = vpop.f32.mrb[0].mxu0
      %v708 = vadd.f32 %v512, %v707
      %v709 = vpop.f32.mrb[0].mxu0
      %710 = vmatprep.mubr.f32.mxu0 0.0
      %711 = vmatmul.mubr.f32.gmra.mrb[0].mxu0 %v588
      %v712 = vpop.f32.mrb[0].mxu0
      %v713 = vadd.f32 %v517, %v712
      %v714 = vpop.f32.mrb[0].mxu0
      %715 = vmatprep.mubr.f32.mxu0 0.0
      %716 = vmatmul.mubr.f32.gmra.mrb[0].mxu0 %v591
      %v717 = vpop.f32.mrb[0].mxu0
      %v718 = vadd.f32 %v522, %v717
      %v719 = vpop.f32.mrb[0].mxu0
      %720 = vmatprep.mubr.f32.mxu0 0.0
      %721 = vmatmul.mubr.f32.gmra.mrb[0].mxu0 %v594
      %v722 = vpop.f32.mrb[0].mxu0
      %v723 = vadd.f32 %v527, %v722
      %v724 = vpop.f32.mrb[0].mxu0
      %725 = vmatprep.mubr.f32.mxu0 0.0
      %726 = vmatmul.mubr.f32.gmra.mrb[0].mxu0 %v597
      %v727 = vpop.f32.mrb[0].mxu0
      %v728 = vadd.f32 %v532, %v727
      %v729 = vpop.f32.mrb[0].mxu0
      %730 = vmatprep.mubr.f32.mxu0 0.0
      %731 = vmatmul.mubr.f32.gmra.mrb[0].mxu0 %v600
      %v732 = vpop.f32.mrb[0].mxu0
      %v733 = vadd.f32 %v537, %v732
      %v734 = vpop.f32.mrb[0].mxu0
      %735 = vmatprep.mubr.f32.mxu0 0.0
      %736 = vmatmul.mubr.f32.gmra.mrb[0].mxu0 %v603
      %v737 = vpop.f32.mrb[0].mxu0
      %v738 = vadd.f32 %v542, %v737
      %v739 = vpop.f32.mrb[0].mxu0
      %740 = vmatprep.mubr.f32.mxu0 0.0
      %741 = vmatmul.mubr.f32.gmra.mrb[0].mxu0 %v606
      %v742 = vpop.f32.mrb[0].mxu0
      %v743 = vadd.f32 %v547, %v742
      %v744 = vpop.f32.mrb[0].mxu0
      %745 = vmatprep.mubr.f32.mxu0 0.0
      %746 = vmatmul.mubr.f32.gmra.mrb[0].mxu0 %v609
      %v747 = vpop.f32.mrb[0].mxu0
      %v748 = vadd.f32 %v552, %v747
      %v749 = vpop.f32.mrb[0].mxu0
      %750 = vmatprep.mubr.f32.mxu0 0.0
      %751 = vmatmul.mubr.f32.gmra.mrb[0].mxu0 %v612
      %v752 = vpop.f32.mrb[0].mxu0
      %v753 = vadd.f32 %v557, %v752
      %v754 = vpop.f32.mrb[0].mxu0
      %755 = vmatprep.mubr.f32.mxu0 0.0
      %756 = vmatmul.mubr.f32.gmra.mrb[0].mxu0 %v615
      %v757 = vpop.f32.mrb[0].mxu0
      %v758 = vadd.f32 %v562, %v757
      %v759 = vpop.f32.mrb[0].mxu0
      %760 = vmatprep.mubr.f32.mxu0 0.0
      %761 = vmatmul.mubr.f32.gmra.mrb[0].mxu0 %v618
      %v762 = vpop.f32.mrb[0].mxu0
      %v763 = vadd.f32 %v567, %v762
      %v764 = vpop.f32.mrb[0].mxu0
      %765 = vmatprep.mubr.f32.mxu0 0.0
      %766 = vmatmul.mubr.f32.gmra.mrb[0].mxu0 %v621
      %v767 = vpop.f32.mrb[0].mxu0
      %v768 = vadd.f32 %v572, %v767
      %v769 = vpop.f32.mrb[0].mxu0
      %770 = vdwg.mxu0
      %s771 = sadd.s32 %s338, 2
      %s772 = scalar_lea.vmem %s305, %s771
      %v773 = vld [vmem:[%s772] sm:$0xff]
      %v774 = vld [vmem:[%s772 + $0x8] sm:$0xff]
      %v775 = vld [vmem:[%s772 + $0x10] sm:$0xff]
      %v776 = vld [vmem:[%s772 + $0x18] sm:$0xff]
      %v777 = vld [vmem:[%s772 + $0x20] sm:$0xff]
      %v778 = vld [vmem:[%s772 + $0x28] sm:$0xff]
      %v779 = vld [vmem:[%s772 + $0x30] sm:$0xff]
      %v780 = vld [vmem:[%s772 + $0x38] sm:$0xff]
      %v781 = vld [vmem:[%s772 + $0x40] sm:$0xff]
      %v782 = vld [vmem:[%s772 + $0x48] sm:$0xff]
      %v783 = vld [vmem:[%s772 + $0x50] sm:$0xff]
      %v784 = vld [vmem:[%s772 + $0x58] sm:$0xff]
      %v785 = vld [vmem:[%s772 + $0x60] sm:$0xff]
      %v786 = vld [vmem:[%s772 + $0x68] sm:$0xff]
      %v787 = vld [vmem:[%s772 + $0x70] sm:$0xff]
      %v788 = vld [vmem:[%s772 + $0x78] sm:$0xff]
      %s789 = scalar_lea.vmem %s1, 8
      %v790 = vld [vmem:[%s789] sm:$0xf]
      %v792 = vsel %vm377, %v773, 0
      %v795 = vsel %vm377, %v774, 0
      %v798 = vsel %vm377, %v775, 0
      %v801 = vsel %vm377, %v776, 0
      %v804 = vsel %vm377, %v777, 0
      %v807 = vsel %vm377, %v778, 0
      %v810 = vsel %vm377, %v779, 0
      %v813 = vsel %vm377, %v780, 0
      %v816 = vsel %vm377, %v781, 0
      %v819 = vsel %vm377, %v782, 0
      %v822 = vsel %vm377, %v783, 0
      %v825 = vsel %vm377, %v784, 0
      %v828 = vsel %vm377, %v785, 0
      %v831 = vsel %vm377, %v786, 0
      %v834 = vsel %vm377, %v787, 0
      %v837 = vsel %vm377, %v788, 0
      %v840 = vsel %vm426, %v790, 0
      %842 = vmatprep.subr.mxu0 0.0
      %843 = vmatpush1.msra.mxu0 %v840
      %844 = vmatprep.subr.mxu0 0.0
      %845 = vmatpush1.msra.mxu0 0.0
      %846 = vmatprep.subr.mxu0 0.0
      %847 = vmatpush1.msra.mxu0 0.0
      %848 = vmatprep.subr.mxu0 0.0
      %849 = vmatpush1.msra.mxu0 0.0
      %850 = vmatprep.subr.mxu0 0.0
      %851 = vmatpush1.msra.mxu0 0.0
      %852 = vmatprep.subr.mxu0 0.0
      %853 = vmatpush1.msra.mxu0 0.0
      %854 = vmatprep.subr.mxu0 0.0
      %855 = vmatpush1.msra.mxu0 0.0
      %856 = vmatprep.subr.mxu0 0.0
      %857 = vmatpush1.msra.mxu0 0.0
      %858 = vmatprep.subr.mxu0 0.0
      %859 = vmatpush1.msra.mxu0 0.0
      %860 = vmatprep.subr.mxu0 0.0
      %861 = vmatpush1.msra.mxu0 0.0
      %862 = vmatprep.subr.mxu0 0.0
      %863 = vmatpush1.msra.mxu0 0.0
      %864 = vmatprep.subr.mxu0 0.0
      %865 = vmatpush1.msra.mxu0 0.0
      %866 = vmatprep.subr.mxu0 0.0
      %867 = vmatpush1.msra.mxu0 0.0
      %868 = vmatprep.subr.mxu0 0.0
      %869 = vmatpush1.msra.mxu0 0.0
      %870 = vmatprep.subr.mxu0 0.0
      %871 = vmatpush1.msra.mxu0 0.0
      %872 = vmatprep.subr.mxu0 0.0
      %873 = vmatpush1.msra.mxu0 0.0
      %874 = vmatprep.subr.mxu0 0.0
      %875 = vmatpush1.msra.mxu0 0.0
      %876 = vmatprep.subr.mxu0 0.0
      %877 = vmatpush1.msra.mxu0 0.0
      %878 = vmatprep.subr.mxu0 0.0
      %879 = vmatpush1.msra.mxu0 0.0
      %880 = vmatprep.subr.mxu0 0.0
      %881 = vmatpush1.msra.mxu0 0.0
      %882 = vmatprep.subr.mxu0 0.0
      %883 = vmatpush1.msra.mxu0 0.0
      %884 = vmatprep.subr.mxu0 0.0
      %885 = vmatpush1.msra.mxu0 0.0
      %886 = vmatprep.subr.mxu0 0.0
      %887 = vmatpush1.msra.mxu0 0.0
      %888 = vmatprep.subr.mxu0 0.0
      %889 = vmatpush1.msra.mxu0 0.0
      %890 = vmatprep.subr.mxu0 0.0
      %891 = vmatpush1.msra.mxu0 0.0
      %892 = vmatprep.subr.mxu0 0.0
      %893 = vmatpush1.msra.mxu0 0.0
      %894 = vmatprep.subr.mxu0 0.0
      %895 = vmatpush1.msra.mxu0 0.0
      %896 = vmatprep.subr.mxu0 0.0
      %897 = vmatpush1.msra.mxu0 0.0
      %898 = vmatprep.subr.mxu0 0.0
      %899 = vmatpush1.msra.mxu0 0.0
      %900 = vmatprep.subr.mxu0 0.0
      %901 = vmatpush1.msra.mxu0 0.0
      %902 = vmatprep.subr.mxu0 0.0
      %903 = vmatpush1.msra.mxu0 0.0
      %904 = vmatprep.subr.mxu0 0.0
      %905 = vmatpush1.msra.mxu0 0.0
      %906 = vmatprep.mubr.f32.mxu0 0.0
      %907 = vmatmul.mubr.f32.gmra.mrb[0].mxu0 %v792
      %v908 = vpop.f32.mrb[0].mxu0
      %v909 = vadd.f32 0.0, %v908
      %v910 = vpop.f32.mrb[0].mxu0
      %911 = vmatprep.mubr.f32.mxu0 0.0
      %912 = vmatmul.mubr.f32.gmra.mrb[0].mxu0 %v795
      %v913 = vpop.f32.mrb[0].mxu0
      %v914 = vadd.f32 0.0, %v913
      %v915 = vpop.f32.mrb[0].mxu0
      %916 = vmatprep.mubr.f32.mxu0 0.0
      %917 = vmatmul.mubr.f32.gmra.mrb[0].mxu0 %v798
      %v918 = vpop.f32.mrb[0].mxu0
      %v919 = vadd.f32 0.0, %v918
      %v920 = vpop.f32.mrb[0].mxu0
      %921 = vmatprep.mubr.f32.mxu0 0.0
      %922 = vmatmul.mubr.f32.gmra.mrb[0].mxu0 %v801
      %v923 = vpop.f32.mrb[0].mxu0
      %v924 = vadd.f32 0.0, %v923
      %v925 = vpop.f32.mrb[0].mxu0
      %926 = vmatprep.mubr.f32.mxu0 0.0
      %927 = vmatmul.mubr.f32.gmra.mrb[0].mxu0 %v804
      %v928 = vpop.f32.mrb[0].mxu0
      %v929 = vadd.f32 0.0, %v928
      %v930 = vpop.f32.mrb[0].mxu0
      %931 = vmatprep.mubr.f32.mxu0 0.0
      %932 = vmatmul.mubr.f32.gmra.mrb[0].mxu0 %v807
      %v933 = vpop.f32.mrb[0].mxu0
      %v934 = vadd.f32 0.0, %v933
      %v935 = vpop.f32.mrb[0].mxu0
      %936 = vmatprep.mubr.f32.mxu0 0.0
      %937 = vmatmul.mubr.f32.gmra.mrb[0].mxu0 %v810
      %v938 = vpop.f32.mrb[0].mxu0
      %v939 = vadd.f32 0.0, %v938
      %v940 = vpop.f32.mrb[0].mxu0
      %941 = vmatprep.mubr.f32.mxu0 0.0
      %942 = vmatmul.mubr.f32.gmra.mrb[0].mxu0 %v813
      %v943 = vpop.f32.mrb[0].mxu0
      %v944 = vadd.f32 0.0, %v943
      %v945 = vpop.f32.mrb[0].mxu0
      %946 = vmatprep.mubr.f32.mxu0 0.0
      %947 = vmatmul.mubr.f32.gmra.mrb[0].mxu0 %v816
      %v948 = vpop.f32.mrb[0].mxu0
      %v949 = vadd.f32 0.0, %v948
      %v950 = vpop.f32.mrb[0].mxu0
      %951 = vmatprep.mubr.f32.mxu0 0.0
      %952 = vmatmul.mubr.f32.gmra.mrb[0].mxu0 %v819
      %v953 = vpop.f32.mrb[0].mxu0
      %v954 = vadd.f32 0.0, %v953
      %v955 = vpop.f32.mrb[0].mxu0
      %956 = vmatprep.mubr.f32.mxu0 0.0
      %957 = vmatmul.mubr.f32.gmra.mrb[0].mxu0 %v822
      %v958 = vpop.f32.mrb[0].mxu0
      %v959 = vadd.f32 0.0, %v958
      %v960 = vpop.f32.mrb[0].mxu0
      %961 = vmatprep.mubr.f32.mxu0 0.0
      %962 = vmatmul.mubr.f32.gmra.mrb[0].mxu0 %v825
      %v963 = vpop.f32.mrb[0].mxu0
      %v964 = vadd.f32 0.0, %v963
      %v965 = vpop.f32.mrb[0].mxu0
      %966 = vmatprep.mubr.f32.mxu0 0.0
      %967 = vmatmul.mubr.f32.gmra.mrb[0].mxu0 %v828
      %v968 = vpop.f32.mrb[0].mxu0
      %v969 = vadd.f32 0.0, %v968
      %v970 = vpop.f32.mrb[0].mxu0
      %971 = vmatprep.mubr.f32.mxu0 0.0
      %972 = vmatmul.mubr.f32.gmra.mrb[0].mxu0 %v831
      %v973 = vpop.f32.mrb[0].mxu0
      %v974 = vadd.f32 0.0, %v973
      %v975 = vpop.f32.mrb[0].mxu0
      %976 = vmatprep.mubr.f32.mxu0 0.0
      %977 = vmatmul.mubr.f32.gmra.mrb[0].mxu0 %v834
      %v978 = vpop.f32.mrb[0].mxu0
      %v979 = vadd.f32 0.0, %v978
      %v980 = vpop.f32.mrb[0].mxu0
      %981 = vmatprep.mubr.f32.mxu0 0.0
      %982 = vmatmul.mubr.f32.gmra.mrb[0].mxu0 %v837
      %v983 = vpop.f32.mrb[0].mxu0
      %v984 = vadd.f32 0.0, %v983
      %v985 = vpop.f32.mrb[0].mxu0
      %986 = vdwg.mxu0
      %v987 = vadd.f32 %v693, %v909
      %v988 = vadd.f32 %v698, %v914
      %v989 = vadd.f32 %v703, %v919
      %v990 = vadd.f32 %v708, %v924
      %v991 = vadd.f32 %v713, %v929
      %v992 = vadd.f32 %v718, %v934
      %v993 = vadd.f32 %v723, %v939
      %v994 = vadd.f32 %v728, %v944
      %v995 = vadd.f32 %v733, %v949
      %v996 = vadd.f32 %v738, %v954
      %v997 = vadd.f32 %v743, %v959
      %v998 = vadd.f32 %v748, %v964
      %v999 = vadd.f32 %v753, %v969
      %v1000 = vadd.f32 %v758, %v974
      %v1001 = vadd.f32 %v763, %v979
      %v1002 = vadd.f32 %v768, %v984
      %s1003 = sadd.s32 %s338, 16
      %s1004 = scalar_lea.vmem %s305, %s1003
      %v1005 = vld [vmem:[%s1004] sm:$0xff]
      %v1006 = vld [vmem:[%s1004 + $0x8] sm:$0xff]
      %v1007 = vld [vmem:[%s1004 + $0x10] sm:$0xff]
      %v1008 = vld [vmem:[%s1004 + $0x18] sm:$0xff]
      %v1009 = vld [vmem:[%s1004 + $0x20] sm:$0xff]
      %v1010 = vld [vmem:[%s1004 + $0x28] sm:$0xff]
      %v1011 = vld [vmem:[%s1004 + $0x30] sm:$0xff]
      %v1012 = vld [vmem:[%s1004 + $0x38] sm:$0xff]
      %v1013 = vld [vmem:[%s1004 + $0x40] sm:$0xff]
      %v1014 = vld [vmem:[%s1004 + $0x48] sm:$0xff]
      %v1015 = vld [vmem:[%s1004 + $0x50] sm:$0xff]
      %v1016 = vld [vmem:[%s1004 + $0x58] sm:$0xff]
      %v1017 = vld [vmem:[%s1004 + $0x60] sm:$0xff]
      %v1018 = vld [vmem:[%s1004 + $0x68] sm:$0xff]
      %v1019 = vld [vmem:[%s1004 + $0x70] sm:$0xff]
      %v1020 = vld [vmem:[%s1004 + $0x78] sm:$0xff]
      %s1021 = scalar_lea.vmem %s1, 12
      %v1022 = vld [vmem:[%s1021] sm:$0xf]
      %v1024 = vsel %vm377, %v1005, 0
      %v1027 = vsel %vm377, %v1006, 0
      %v1030 = vsel %vm377, %v1007, 0
      %v1033 = vsel %vm377, %v1008, 0
      %v1036 = vsel %vm377, %v1009, 0
      %v1039 = vsel %vm377, %v1010, 0
      %v1042 = vsel %vm377, %v1011, 0
      %v1045 = vsel %vm377, %v1012, 0
      %v1048 = vsel %vm377, %v1013, 0
      %v1051 = vsel %vm377, %v1014, 0
      %v1054 = vsel %vm377, %v1015, 0
      %v1057 = vsel %vm377, %v1016, 0
      %v1060 = vsel %vm377, %v1017, 0
      %v1063 = vsel %vm377, %v1018, 0
      %v1066 = vsel %vm377, %v1019, 0
      %v1069 = vsel %vm377, %v1020, 0
      %v1072 = vsel %vm426, %v1022, 0
      %1074 = vmatprep.subr.mxu0 0.0
      %1075 = vmatpush1.msra.mxu0 %v1072
      %1076 = vmatprep.subr.mxu0 0.0
      %1077 = vmatpush1.msra.mxu0 0.0
      %1078 = vmatprep.subr.mxu0 0.0
      %1079 = vmatpush1.msra.mxu0 0.0
      %1080 = vmatprep.subr.mxu0 0.0
      %1081 = vmatpush1.msra.mxu0 0.0
      %1082 = vmatprep.subr.mxu0 0.0
      %1083 = vmatpush1.msra.mxu0 0.0
      %1084 = vmatprep.subr.mxu0 0.0
      %1085 = vmatpush1.msra.mxu0 0.0
      %1086 = vmatprep.subr.mxu0 0.0
      %1087 = vmatpush1.msra.mxu0 0.0
      %1088 = vmatprep.subr.mxu0 0.0
      %1089 = vmatpush1.msra.mxu0 0.0
      %1090 = vmatprep.subr.mxu0 0.0
      %1091 = vmatpush1.msra.mxu0 0.0
      %1092 = vmatprep.subr.mxu0 0.0
      %1093 = vmatpush1.msra.mxu0 0.0
      %1094 = vmatprep.subr.mxu0 0.0
      %1095 = vmatpush1.msra.mxu0 0.0
      %1096 = vmatprep.subr.mxu0 0.0
      %1097 = vmatpush1.msra.mxu0 0.0
      %1098 = vmatprep.subr.mxu0 0.0
      %1099 = vmatpush1.msra.mxu0 0.0
      %1100 = vmatprep.subr.mxu0 0.0
      %1101 = vmatpush1.msra.mxu0 0.0
      %1102 = vmatprep.subr.mxu0 0.0
      %1103 = vmatpush1.msra.mxu0 0.0
      %1104 = vmatprep.subr.mxu0 0.0
      %1105 = vmatpush1.msra.mxu0 0.0
      %1106 = vmatprep.subr.mxu0 0.0
      %1107 = vmatpush1.msra.mxu0 0.0
      %1108 = vmatprep.subr.mxu0 0.0
      %1109 = vmatpush1.msra.mxu0 0.0
      %1110 = vmatprep.subr.mxu0 0.0
      %1111 = vmatpush1.msra.mxu0 0.0
      %1112 = vmatprep.subr.mxu0 0.0
      %1113 = vmatpush1.msra.mxu0 0.0
      %1114 = vmatprep.subr.mxu0 0.0
      %1115 = vmatpush1.msra.mxu0 0.0
      %1116 = vmatprep.subr.mxu0 0.0
      %1117 = vmatpush1.msra.mxu0 0.0
      %1118 = vmatprep.subr.mxu0 0.0
      %1119 = vmatpush1.msra.mxu0 0.0
      %1120 = vmatprep.subr.mxu0 0.0
      %1121 = vmatpush1.msra.mxu0 0.0
      %1122 = vmatprep.subr.mxu0 0.0
      %1123 = vmatpush1.msra.mxu0 0.0
      %1124 = vmatprep.subr.mxu0 0.0
      %1125 = vmatpush1.msra.mxu0 0.0
      %1126 = vmatprep.subr.mxu0 0.0
      %1127 = vmatpush1.msra.mxu0 0.0
      %1128 = vmatprep.subr.mxu0 0.0
      %1129 = vmatpush1.msra.mxu0 0.0
      %1130 = vmatprep.subr.mxu0 0.0
      %1131 = vmatpush1.msra.mxu0 0.0
      %1132 = vmatprep.subr.mxu0 0.0
      %1133 = vmatpush1.msra.mxu0 0.0
      %1134 = vmatprep.subr.mxu0 0.0
      %1135 = vmatpush1.msra.mxu0 0.0
      %1136 = vmatprep.subr.mxu0 0.0
      %1137 = vmatpush1.msra.mxu0 0.0
      %1138 = vmatprep.mubr.f32.mxu0 0.0
      %1139 = vmatmul.mubr.f32.gmra.mrb[0].mxu0 %v1024
      %v1140 = vpop.f32.mrb[0].mxu0
      %v1141 = vadd.f32 0.0, %v1140
      %v1142 = vpop.f32.mrb[0].mxu0
      %1143 = vmatprep.mubr.f32.mxu0 0.0
      %1144 = vmatmul.mubr.f32.gmra.mrb[0].mxu0 %v1027
      %v1145 = vpop.f32.mrb[0].mxu0
      %v1146 = vadd.f32 0.0, %v1145
      %v1147 = vpop.f32.mrb[0].mxu0
      %1148 = vmatprep.mubr.f32.mxu0 0.0
      %1149 = vmatmul.mubr.f32.gmra.mrb[0].mxu0 %v1030
      %v1150 = vpop.f32.mrb[0].mxu0
      %v1151 = vadd.f32 0.0, %v1150
      %v1152 = vpop.f32.mrb[0].mxu0
      %1153 = vmatprep.mubr.f32.mxu0 0.0
      %1154 = vmatmul.mubr.f32.gmra.mrb[0].mxu0 %v1033
      %v1155 = vpop.f32.mrb[0].mxu0
      %v1156 = vadd.f32 0.0, %v1155
      %v1157 = vpop.f32.mrb[0].mxu0
      %1158 = vmatprep.mubr.f32.mxu0 0.0
      %1159 = vmatmul.mubr.f32.gmra.mrb[0].mxu0 %v1036
      %v1160 = vpop.f32.mrb[0].mxu0
      %v1161 = vadd.f32 0.0, %v1160
      %v1162 = vpop.f32.mrb[0].mxu0
      %1163 = vmatprep.mubr.f32.mxu0 0.0
      %1164 = vmatmul.mubr.f32.gmra.mrb[0].mxu0 %v1039
      %v1165 = vpop.f32.mrb[0].mxu0
      %v1166 = vadd.f32 0.0, %v1165
      %v1167 = vpop.f32.mrb[0].mxu0
      %1168 = vmatprep.mubr.f32.mxu0 0.0
      %1169 = vmatmul.mubr.f32.gmra.mrb[0].mxu0 %v1042
      %v1170 = vpop.f32.mrb[0].mxu0
      %v1171 = vadd.f32 0.0, %v1170
      %v1172 = vpop.f32.mrb[0].mxu0
      %1173 = vmatprep.mubr.f32.mxu0 0.0
      %1174 = vmatmul.mubr.f32.gmra.mrb[0].mxu0 %v1045
      %v1175 = vpop.f32.mrb[0].mxu0
      %v1176 = vadd.f32 0.0, %v1175
      %v1177 = vpop.f32.mrb[0].mxu0
      %1178 = vmatprep.mubr.f32.mxu0 0.0
      %1179 = vmatmul.mubr.f32.gmra.mrb[0].mxu0 %v1048
      %v1180 = vpop.f32.mrb[0].mxu0
      %v1181 = vadd.f32 0.0, %v1180
      %v1182 = vpop.f32.mrb[0].mxu0
      %1183 = vmatprep.mubr.f32.mxu0 0.0
      %1184 = vmatmul.mubr.f32.gmra.mrb[0].mxu0 %v1051
      %v1185 = vpop.f32.mrb[0].mxu0
      %v1186 = vadd.f32 0.0, %v1185
      %v1187 = vpop.f32.mrb[0].mxu0
      %1188 = vmatprep.mubr.f32.mxu0 0.0
      %1189 = vmatmul.mubr.f32.gmra.mrb[0].mxu0 %v1054
      %v1190 = vpop.f32.mrb[0].mxu0
      %v1191 = vadd.f32 0.0, %v1190
      %v1192 = vpop.f32.mrb[0].mxu0
      %1193 = vmatprep.mubr.f32.mxu0 0.0
      %1194 = vmatmul.mubr.f32.gmra.mrb[0].mxu0 %v1057
      %v1195 = vpop.f32.mrb[0].mxu0
      %v1196 = vadd.f32 0.0, %v1195
      %v1197 = vpop.f32.mrb[0].mxu0
      %1198 = vmatprep.mubr.f32.mxu0 0.0
      %1199 = vmatmul.mubr.f32.gmra.mrb[0].mxu0 %v1060
      %v1200 = vpop.f32.mrb[0].mxu0
      %v1201 = vadd.f32 0.0, %v1200
      %v1202 = vpop.f32.mrb[0].mxu0
      %1203 = vmatprep.mubr.f32.mxu0 0.0
      %1204 = vmatmul.mubr.f32.gmra.mrb[0].mxu0 %v1063
      %v1205 = vpop.f32.mrb[0].mxu0
      %v1206 = vadd.f32 0.0, %v1205
      %v1207 = vpop.f32.mrb[0].mxu0
      %1208 = vmatprep.mubr.f32.mxu0 0.0
      %1209 = vmatmul.mubr.f32.gmra.mrb[0].mxu0 %v1066
      %v1210 = vpop.f32.mrb[0].mxu0
      %v1211 = vadd.f32 0.0, %v1210
      %v1212 = vpop.f32.mrb[0].mxu0
      %1213 = vmatprep.mubr.f32.mxu0 0.0
      %1214 = vmatmul.mubr.f32.gmra.mrb[0].mxu0 %v1069
      %v1215 = vpop.f32.mrb[0].mxu0
      %v1216 = vadd.f32 0.0, %v1215
      %v1217 = vpop.f32.mrb[0].mxu0
      %1218 = vdwg.mxu0
      %v1219 = vadd.f32 %v987, %v1141
      %v1220 = vadd.f32 %v988, %v1146
      %v1221 = vadd.f32 %v989, %v1151
      %v1222 = vadd.f32 %v990, %v1156
      %v1223 = vadd.f32 %v991, %v1161
      %v1224 = vadd.f32 %v992, %v1166
      %v1225 = vadd.f32 %v993, %v1171
      %v1226 = vadd.f32 %v994, %v1176
      %v1227 = vadd.f32 %v995, %v1181
      %v1228 = vadd.f32 %v996, %v1186
      %v1229 = vadd.f32 %v997, %v1191
      %v1230 = vadd.f32 %v998, %v1196
      %v1231 = vadd.f32 %v999, %v1201
      %v1232 = vadd.f32 %v1000, %v1206
      %v1233 = vadd.f32 %v1001, %v1211
      %v1234 = vadd.f32 %v1002, %v1216
      %s1235 = sadd.s32 %s338, 17
      %s1236 = scalar_lea.vmem %s305, %s1235
      %v1237 = vld [vmem:[%s1236] sm:$0xff]
      %v1238 = vld [vmem:[%s1236 + $0x8] sm:$0xff]
      %v1239 = vld [vmem:[%s1236 + $0x10] sm:$0xff]
      %v1240 = vld [vmem:[%s1236 + $0x18] sm:$0xff]
      %v1241 = vld [vmem:[%s1236 + $0x20] sm:$0xff]
      %v1242 = vld [vmem:[%s1236 + $0x28] sm:$0xff]
      %v1243 = vld [vmem:[%s1236 + $0x30] sm:$0xff]
      %v1244 = vld [vmem:[%s1236 + $0x38] sm:$0xff]
      %v1245 = vld [vmem:[%s1236 + $0x40] sm:$0xff]
      %v1246 = vld [vmem:[%s1236 + $0x48] sm:$0xff]
      %v1247 = vld [vmem:[%s1236 + $0x50] sm:$0xff]
      %v1248 = vld [vmem:[%s1236 + $0x58] sm:$0xff]
      %v1249 = vld [vmem:[%s1236 + $0x60] sm:$0xff]
      %v1250 = vld [vmem:[%s1236 + $0x68] sm:$0xff]
      %v1251 = vld [vmem:[%s1236 + $0x70] sm:$0xff]
      %v1252 = vld [vmem:[%s1236 + $0x78] sm:$0xff]
      %s1253 = scalar_lea.vmem %s1, 16
      %v1254 = vld [vmem:[%s1253] sm:$0xf]
      %v1256 = vsel %vm377, %v1237, 0
      %v1259 = vsel %vm377, %v1238, 0
      %v1262 = vsel %vm377, %v1239, 0
      %v1265 = vsel %vm377, %v1240, 0
      %v1268 = vsel %vm377, %v1241, 0
      %v1271 = vsel %vm377, %v1242, 0
      %v1274 = vsel %vm377, %v1243, 0
      %v1277 = vsel %vm377, %v1244, 0
      %v1280 = vsel %vm377, %v1245, 0
      %v1283 = vsel %vm377, %v1246, 0
      %v1286 = vsel %vm377, %v1247, 0
      %v1289 = vsel %vm377, %v1248, 0
      %v1292 = vsel %vm377, %v1249, 0
      %v1295 = vsel %vm377, %v1250, 0
      %v1298 = vsel %vm377, %v1251, 0
      %v1301 = vsel %vm377, %v1252, 0
      %v1304 = vsel %vm426, %v1254, 0
      %1306 = vmatprep.subr.mxu0 0.0
      %1307 = vmatpush1.msra.mxu0 %v1304
      %1308 = vmatprep.subr.mxu0 0.0
      %1309 = vmatpush1.msra.mxu0 0.0
      %1310 = vmatprep.subr.mxu0 0.0
      %1311 = vmatpush1.msra.mxu0 0.0
      %1312 = vmatprep.subr.mxu0 0.0
      %1313 = vmatpush1.msra.mxu0 0.0
      %1314 = vmatprep.subr.mxu0 0.0
      %1315 = vmatpush1.msra.mxu0 0.0
      %1316 = vmatprep.subr.mxu0 0.0
      %1317 = vmatpush1.msra.mxu0 0.0
      %1318 = vmatprep.subr.mxu0 0.0
      %1319 = vmatpush1.msra.mxu0 0.0
      %1320 = vmatprep.subr.mxu0 0.0
      %1321 = vmatpush1.msra.mxu0 0.0
      %1322 = vmatprep.subr.mxu0 0.0
      %1323 = vmatpush1.msra.mxu0 0.0
      %1324 = vmatprep.subr.mxu0 0.0
      %1325 = vmatpush1.msra.mxu0 0.0
      %1326 = vmatprep.subr.mxu0 0.0
      %1327 = vmatpush1.msra.mxu0 0.0
      %1328 = vmatprep.subr.mxu0 0.0
      %1329 = vmatpush1.msra.mxu0 0.0
      %1330 = vmatprep.subr.mxu0 0.0
      %1331 = vmatpush1.msra.mxu0 0.0
      %1332 = vmatprep.subr.mxu0 0.0
      %1333 = vmatpush1.msra.mxu0 0.0
      %1334 = vmatprep.subr.mxu0 0.0
      %1335 = vmatpush1.msra.mxu0 0.0
      %1336 = vmatprep.subr.mxu0 0.0
      %1337 = vmatpush1.msra.mxu0 0.0
      %1338 = vmatprep.subr.mxu0 0.0
      %1339 = vmatpush1.msra.mxu0 0.0
      %1340 = vmatprep.subr.mxu0 0.0
      %1341 = vmatpush1.msra.mxu0 0.0
      %1342 = vmatprep.subr.mxu0 0.0
      %1343 = vmatpush1.msra.mxu0 0.0
      %1344 = vmatprep.subr.mxu0 0.0
      %1345 = vmatpush1.msra.mxu0 0.0
      %1346 = vmatprep.subr.mxu0 0.0
      %1347 = vmatpush1.msra.mxu0 0.0
      %1348 = vmatprep.subr.mxu0 0.0
      %1349 = vmatpush1.msra.mxu0 0.0
      %1350 = vmatprep.subr.mxu0 0.0
      %1351 = vmatpush1.msra.mxu0 0.0
      %1352 = vmatprep.subr.mxu0 0.0
      %1353 = vmatpush1.msra.mxu0 0.0
      %1354 = vmatprep.subr.mxu0 0.0
      %1355 = vmatpush1.msra.mxu0 0.0
      %1356 = vmatprep.subr.mxu0 0.0
      %1357 = vmatpush1.msra.mxu0 0.0
      %1358 = vmatprep.subr.mxu0 0.0
      %1359 = vmatpush1.msra.mxu0 0.0
      %1360 = vmatprep.subr.mxu0 0.0
      %1361 = vmatpush1.msra.mxu0 0.0
      %1362 = vmatprep.subr.mxu0 0.0
      %1363 = vmatpush1.msra.mxu0 0.0
      %1364 = vmatprep.subr.mxu0 0.0
      %1365 = vmatpush1.msra.mxu0 0.0
      %1366 = vmatprep.subr.mxu0 0.0
      %1367 = vmatpush1.msra.mxu0 0.0
      %1368 = vmatprep.subr.mxu0 0.0
      %1369 = vmatpush1.msra.mxu0 0.0
      %1370 = vmatprep.mubr.f32.mxu0 0.0
      %1371 = vmatmul.mubr.f32.gmra.mrb[0].mxu0 %v1256
      %v1372 = vpop.f32.mrb[0].mxu0
      %v1373 = vadd.f32 0.0, %v1372
      %v1374 = vpop.f32.mrb[0].mxu0
      %1375 = vmatprep.mubr.f32.mxu0 0.0
      %1376 = vmatmul.mubr.f32.gmra.mrb[0].mxu0 %v1259
      %v1377 = vpop.f32.mrb[0].mxu0
      %v1378 = vadd.f32 0.0, %v1377
      %v1379 = vpop.f32.mrb[0].mxu0
      %1380 = vmatprep.mubr.f32.mxu0 0.0
      %1381 = vmatmul.mubr.f32.gmra.mrb[0].mxu0 %v1262
      %v1382 = vpop.f32.mrb[0].mxu0
      %v1383 = vadd.f32 0.0, %v1382
      %v1384 = vpop.f32.mrb[0].mxu0
      %1385 = vmatprep.mubr.f32.mxu0 0.0
      %1386 = vmatmul.mubr.f32.gmra.mrb[0].mxu0 %v1265
      %v1387 = vpop.f32.mrb[0].mxu0
      %v1388 = vadd.f32 0.0, %v1387
      %v1389 = vpop.f32.mrb[0].mxu0
      %1390 = vmatprep.mubr.f32.mxu0 0.0
      %1391 = vmatmul.mubr.f32.gmra.mrb[0].mxu0 %v1268
      %v1392 = vpop.f32.mrb[0].mxu0
      %v1393 = vadd.f32 0.0, %v1392
      %v1394 = vpop.f32.mrb[0].mxu0
      %1395 = vmatprep.mubr.f32.mxu0 0.0
      %1396 = vmatmul.mubr.f32.gmra.mrb[0].mxu0 %v1271
      %v1397 = vpop.f32.mrb[0].mxu0
      %v1398 = vadd.f32 0.0, %v1397
      %v1399 = vpop.f32.mrb[0].mxu0
      %1400 = vmatprep.mubr.f32.mxu0 0.0
      %1401 = vmatmul.mubr.f32.gmra.mrb[0].mxu0 %v1274
      %v1402 = vpop.f32.mrb[0].mxu0
      %v1403 = vadd.f32 0.0, %v1402
      %v1404 = vpop.f32.mrb[0].mxu0
      %1405 = vmatprep.mubr.f32.mxu0 0.0
      %1406 = vmatmul.mubr.f32.gmra.mrb[0].mxu0 %v1277
      %v1407 = vpop.f32.mrb[0].mxu0
      %v1408 = vadd.f32 0.0, %v1407
      %v1409 = vpop.f32.mrb[0].mxu0
      %1410 = vmatprep.mubr.f32.mxu0 0.0
      %1411 = vmatmul.mubr.f32.gmra.mrb[0].mxu0 %v1280
      %v1412 = vpop.f32.mrb[0].mxu0
      %v1413 = vadd.f32 0.0, %v1412
      %v1414 = vpop.f32.mrb[0].mxu0
      %1415 = vmatprep.mubr.f32.mxu0 0.0
      %1416 = vmatmul.mubr.f32.gmra.mrb[0].mxu0 %v1283
      %v1417 = vpop.f32.mrb[0].mxu0
      %v1418 = vadd.f32 0.0, %v1417
      %v1419 = vpop.f32.mrb[0].mxu0
      %1420 = vmatprep.mubr.f32.mxu0 0.0
      %1421 = vmatmul.mubr.f32.gmra.mrb[0].mxu0 %v1286
      %v1422 = vpop.f32.mrb[0].mxu0
      %v1423 = vadd.f32 0.0, %v1422
      %v1424 = vpop.f32.mrb[0].mxu0
      %1425 = vmatprep.mubr.f32.mxu0 0.0
      %1426 = vmatmul.mubr.f32.gmra.mrb[0].mxu0 %v1289
      %v1427 = vpop.f32.mrb[0].mxu0
      %v1428 = vadd.f32 0.0, %v1427
      %v1429 = vpop.f32.mrb[0].mxu0
      %1430 = vmatprep.mubr.f32.mxu0 0.0
      %1431 = vmatmul.mubr.f32.gmra.mrb[0].mxu0 %v1292
      %v1432 = vpop.f32.mrb[0].mxu0
      %v1433 = vadd.f32 0.0, %v1432
      %v1434 = vpop.f32.mrb[0].mxu0
      %1435 = vmatprep.mubr.f32.mxu0 0.0
      %1436 = vmatmul.mubr.f32.gmra.mrb[0].mxu0 %v1295
      %v1437 = vpop.f32.mrb[0].mxu0
      %v1438 = vadd.f32 0.0, %v1437
      %v1439 = vpop.f32.mrb[0].mxu0
      %1440 = vmatprep.mubr.f32.mxu0 0.0
      %1441 = vmatmul.mubr.f32.gmra.mrb[0].mxu0 %v1298
      %v1442 = vpop.f32.mrb[0].mxu0
      %v1443 = vadd.f32 0.0, %v1442
      %v1444 = vpop.f32.mrb[0].mxu0
      %1445 = vmatprep.mubr.f32.mxu0 0.0
      %1446 = vmatmul.mubr.f32.gmra.mrb[0].mxu0 %v1301
      %v1447 = vpop.f32.mrb[0].mxu0
      %v1448 = vadd.f32 0.0, %v1447
      %v1449 = vpop.f32.mrb[0].mxu0
      %1450 = vdwg.mxu0
      %v1451 = vadd.f32 %v1219, %v1373
      %v1452 = vadd.f32 %v1220, %v1378
      %v1453 = vadd.f32 %v1221, %v1383
      %v1454 = vadd.f32 %v1222, %v1388
      %v1455 = vadd.f32 %v1223, %v1393
      %v1456 = vadd.f32 %v1224, %v1398
      %v1457 = vadd.f32 %v1225, %v1403
      %v1458 = vadd.f32 %v1226, %v1408
      %v1459 = vadd.f32 %v1227, %v1413
      %v1460 = vadd.f32 %v1228, %v1418
      %v1461 = vadd.f32 %v1229, %v1423
      %v1462 = vadd.f32 %v1230, %v1428
      %v1463 = vadd.f32 %v1231, %v1433
      %v1464 = vadd.f32 %v1232, %v1438
      %v1465 = vadd.f32 %v1233, %v1443
      %v1466 = vadd.f32 %v1234, %v1448
      %s1467 = sadd.s32 %s338, 18
      %s1468 = scalar_lea.vmem %s305, %s1467
      %v1469 = vld [vmem:[%s1468] sm:$0xff]
      %v1470 = vld [vmem:[%s1468 + $0x8] sm:$0xff]
      %v1471 = vld [vmem:[%s1468 + $0x10] sm:$0xff]
      %v1472 = vld [vmem:[%s1468 + $0x18] sm:$0xff]
      %v1473 = vld [vmem:[%s1468 + $0x20] sm:$0xff]
      %v1474 = vld [vmem:[%s1468 + $0x28] sm:$0xff]
      %v1475 = vld [vmem:[%s1468 + $0x30] sm:$0xff]
      %v1476 = vld [vmem:[%s1468 + $0x38] sm:$0xff]
      %v1477 = vld [vmem:[%s1468 + $0x40] sm:$0xff]
      %v1478 = vld [vmem:[%s1468 + $0x48] sm:$0xff]
      %v1479 = vld [vmem:[%s1468 + $0x50] sm:$0xff]
      %v1480 = vld [vmem:[%s1468 + $0x58] sm:$0xff]
      %v1481 = vld [vmem:[%s1468 + $0x60] sm:$0xff]
      %v1482 = vld [vmem:[%s1468 + $0x68] sm:$0xff]
      %v1483 = vld [vmem:[%s1468 + $0x70] sm:$0xff]
      %v1484 = vld [vmem:[%s1468 + $0x78] sm:$0xff]
      %s1485 = scalar_lea.vmem %s1, 20
      %v1486 = vld [vmem:[%s1485] sm:$0xf]
      %v1488 = vsel %vm377, %v1469, 0
      %v1491 = vsel %vm377, %v1470, 0
      %v1494 = vsel %vm377, %v1471, 0
      %v1497 = vsel %vm377, %v1472, 0
      %v1500 = vsel %vm377, %v1473, 0
      %v1503 = vsel %vm377, %v1474, 0
      %v1506 = vsel %vm377, %v1475, 0
      %v1509 = vsel %vm377, %v1476, 0
      %v1512 = vsel %vm377, %v1477, 0
      %v1515 = vsel %vm377, %v1478, 0
      %v1518 = vsel %vm377, %v1479, 0
      %v1521 = vsel %vm377, %v1480, 0
      %v1524 = vsel %vm377, %v1481, 0
      %v1527 = vsel %vm377, %v1482, 0
      %v1530 = vsel %vm377, %v1483, 0
      %v1533 = vsel %vm377, %v1484, 0
      %v1536 = vsel %vm426, %v1486, 0
      %1538 = vmatprep.subr.mxu0 0.0
      %1539 = vmatpush1.msra.mxu0 %v1536
      %1540 = vmatprep.subr.mxu0 0.0
      %1541 = vmatpush1.msra.mxu0 0.0
      %1542 = vmatprep.subr.mxu0 0.0
      %1543 = vmatpush1.msra.mxu0 0.0
      %1544 = vmatprep.subr.mxu0 0.0
      %1545 = vmatpush1.msra.mxu0 0.0
      %1546 = vmatprep.subr.mxu0 0.0
      %1547 = vmatpush1.msra.mxu0 0.0
      %1548 = vmatprep.subr.mxu0 0.0
      %1549 = vmatpush1.msra.mxu0 0.0
      %1550 = vmatprep.subr.mxu0 0.0
      %1551 = vmatpush1.msra.mxu0 0.0
      %1552 = vmatprep.subr.mxu0 0.0
      %1553 = vmatpush1.msra.mxu0 0.0
      %1554 = vmatprep.subr.mxu0 0.0
      %1555 = vmatpush1.msra.mxu0 0.0
      %1556 = vmatprep.subr.mxu0 0.0
      %1557 = vmatpush1.msra.mxu0 0.0
      %1558 = vmatprep.subr.mxu0 0.0
      %1559 = vmatpush1.msra.mxu0 0.0
      %1560 = vmatprep.subr.mxu0 0.0
      %1561 = vmatpush1.msra.mxu0 0.0
      %1562 = vmatprep.subr.mxu0 0.0
      %1563 = vmatpush1.msra.mxu0 0.0
      %1564 = vmatprep.subr.mxu0 0.0
      %1565 = vmatpush1.msra.mxu0 0.0
      %1566 = vmatprep.subr.mxu0 0.0
      %1567 = vmatpush1.msra.mxu0 0.0
      %1568 = vmatprep.subr.mxu0 0.0
      %1569 = vmatpush1.msra.mxu0 0.0
      %1570 = vmatprep.subr.mxu0 0.0
      %1571 = vmatpush1.msra.mxu0 0.0
      %1572 = vmatprep.subr.mxu0 0.0
      %1573 = vmatpush1.msra.mxu0 0.0
      %1574 = vmatprep.subr.mxu0 0.0
      %1575 = vmatpush1.msra.mxu0 0.0
      %1576 = vmatprep.subr.mxu0 0.0
      %1577 = vmatpush1.msra.mxu0 0.0
      %1578 = vmatprep.subr.mxu0 0.0
      %1579 = vmatpush1.msra.mxu0 0.0
      %1580 = vmatprep.subr.mxu0 0.0
      %1581 = vmatpush1.msra.mxu0 0.0
      %1582 = vmatprep.subr.mxu0 0.0
      %1583 = vmatpush1.msra.mxu0 0.0
      %1584 = vmatprep.subr.mxu0 0.0
      %1585 = vmatpush1.msra.mxu0 0.0
      %1586 = vmatprep.subr.mxu0 0.0
      %1587 = vmatpush1.msra.mxu0 0.0
      %1588 = vmatprep.subr.mxu0 0.0
      %1589 = vmatpush1.msra.mxu0 0.0
      %1590 = vmatprep.subr.mxu0 0.0
      %1591 = vmatpush1.msra.mxu0 0.0
      %1592 = vmatprep.subr.mxu0 0.0
      %1593 = vmatpush1.msra.mxu0 0.0
      %1594 = vmatprep.subr.mxu0 0.0
      %1595 = vmatpush1.msra.mxu0 0.0
      %1596 = vmatprep.subr.mxu0 0.0
      %1597 = vmatpush1.msra.mxu0 0.0
      %1598 = vmatprep.subr.mxu0 0.0
      %1599 = vmatpush1.msra.mxu0 0.0
      %1600 = vmatprep.subr.mxu0 0.0
      %1601 = vmatpush1.msra.mxu0 0.0
      %1602 = vmatprep.mubr.f32.mxu0 0.0
      %1603 = vmatmul.mubr.f32.gmra.mrb[0].mxu0 %v1488
      %v1604 = vpop.f32.mrb[0].mxu0
      %v1605 = vadd.f32 0.0, %v1604
      %v1606 = vpop.f32.mrb[0].mxu0
      %1607 = vmatprep.mubr.f32.mxu0 0.0
      %1608 = vmatmul.mubr.f32.gmra.mrb[0].mxu0 %v1491
      %v1609 = vpop.f32.mrb[0].mxu0
      %v1610 = vadd.f32 0.0, %v1609
      %v1611 = vpop.f32.mrb[0].mxu0
      %1612 = vmatprep.mubr.f32.mxu0 0.0
      %1613 = vmatmul.mubr.f32.gmra.mrb[0].mxu0 %v1494
      %v1614 = vpop.f32.mrb[0].mxu0
      %v1615 = vadd.f32 0.0, %v1614
      %v1616 = vpop.f32.mrb[0].mxu0
      %1617 = vmatprep.mubr.f32.mxu0 0.0
      %1618 = vmatmul.mubr.f32.gmra.mrb[0].mxu0 %v1497
      %v1619 = vpop.f32.mrb[0].mxu0
      %v1620 = vadd.f32 0.0, %v1619
      %v1621 = vpop.f32.mrb[0].mxu0
      %1622 = vmatprep.mubr.f32.mxu0 0.0
      %1623 = vmatmul.mubr.f32.gmra.mrb[0].mxu0 %v1500
      %v1624 = vpop.f32.mrb[0].mxu0
      %v1625 = vadd.f32 0.0, %v1624
      %v1626 = vpop.f32.mrb[0].mxu0
      %1627 = vmatprep.mubr.f32.mxu0 0.0
      %1628 = vmatmul.mubr.f32.gmra.mrb[0].mxu0 %v1503
      %v1629 = vpop.f32.mrb[0].mxu0
      %v1630 = vadd.f32 0.0, %v1629
      %v1631 = vpop.f32.mrb[0].mxu0
      %1632 = vmatprep.mubr.f32.mxu0 0.0
      %1633 = vmatmul.mubr.f32.gmra.mrb[0].mxu0 %v1506
      %v1634 = vpop.f32.mrb[0].mxu0
      %v1635 = vadd.f32 0.0, %v1634
      %v1636 = vpop.f32.mrb[0].mxu0
      %1637 = vmatprep.mubr.f32.mxu0 0.0
      %1638 = vmatmul.mubr.f32.gmra.mrb[0].mxu0 %v1509
      %v1639 = vpop.f32.mrb[0].mxu0
      %v1640 = vadd.f32 0.0, %v1639
      %v1641 = vpop.f32.mrb[0].mxu0
      %1642 = vmatprep.mubr.f32.mxu0 0.0
      %1643 = vmatmul.mubr.f32.gmra.mrb[0].mxu0 %v1512
      %v1644 = vpop.f32.mrb[0].mxu0
      %v1645 = vadd.f32 0.0, %v1644
      %v1646 = vpop.f32.mrb[0].mxu0
      %1647 = vmatprep.mubr.f32.mxu0 0.0
      %1648 = vmatmul.mubr.f32.gmra.mrb[0].mxu0 %v1515
      %v1649 = vpop.f32.mrb[0].mxu0
      %v1650 = vadd.f32 0.0, %v1649
      %v1651 = vpop.f32.mrb[0].mxu0
      %1652 = vmatprep.mubr.f32.mxu0 0.0
      %1653 = vmatmul.mubr.f32.gmra.mrb[0].mxu0 %v1518
      %v1654 = vpop.f32.mrb[0].mxu0
      %v1655 = vadd.f32 0.0, %v1654
      %v1656 = vpop.f32.mrb[0].mxu0
      %1657 = vmatprep.mubr.f32.mxu0 0.0
      %1658 = vmatmul.mubr.f32.gmra.mrb[0].mxu0 %v1521
      %v1659 = vpop.f32.mrb[0].mxu0
      %v1660 = vadd.f32 0.0, %v1659
      %v1661 = vpop.f32.mrb[0].mxu0
      %1662 = vmatprep.mubr.f32.mxu0 0.0
      %1663 = vmatmul.mubr.f32.gmra.mrb[0].mxu0 %v1524
      %v1664 = vpop.f32.mrb[0].mxu0
      %v1665 = vadd.f32 0.0, %v1664
      %v1666 = vpop.f32.mrb[0].mxu0
      %1667 = vmatprep.mubr.f32.mxu0 0.0
      %1668 = vmatmul.mubr.f32.gmra.mrb[0].mxu0 %v1527
      %v1669 = vpop.f32.mrb[0].mxu0
      %v1670 = vadd.f32 0.0, %v1669
      %v1671 = vpop.f32.mrb[0].mxu0
      %1672 = vmatprep.mubr.f32.mxu0 0.0
      %1673 = vmatmul.mubr.f32.gmra.mrb[0].mxu0 %v1530
      %v1674 = vpop.f32.mrb[0].mxu0
      %v1675 = vadd.f32 0.0, %v1674
      %v1676 = vpop.f32.mrb[0].mxu0
      %1677 = vmatprep.mubr.f32.mxu0 0.0
      %1678 = vmatmul.mubr.f32.gmra.mrb[0].mxu0 %v1533
      %v1679 = vpop.f32.mrb[0].mxu0
      %v1680 = vadd.f32 0.0, %v1679
      %v1681 = vpop.f32.mrb[0].mxu0
      %1682 = vdwg.mxu0
      %v1683 = vadd.f32 %v1451, %v1605
      %v1684 = vadd.f32 %v1452, %v1610
      %v1685 = vadd.f32 %v1453, %v1615
      %v1686 = vadd.f32 %v1454, %v1620
      %v1687 = vadd.f32 %v1455, %v1625
      %v1688 = vadd.f32 %v1456, %v1630
      %v1689 = vadd.f32 %v1457, %v1635
      %v1690 = vadd.f32 %v1458, %v1640
      %v1691 = vadd.f32 %v1459, %v1645
      %v1692 = vadd.f32 %v1460, %v1650
      %v1693 = vadd.f32 %v1461, %v1655
      %v1694 = vadd.f32 %v1462, %v1660
      %v1695 = vadd.f32 %v1463, %v1665
      %v1696 = vadd.f32 %v1464, %v1670
      %v1697 = vadd.f32 %v1465, %v1675
      %v1698 = vadd.f32 %v1466, %v1680
      %s1699 = sadd.s32 %s338, 32
      %s1700 = scalar_lea.vmem %s305, %s1699
      %v1701 = vld [vmem:[%s1700] sm:$0xff]
      %v1702 = vld [vmem:[%s1700 + $0x8] sm:$0xff]
      %v1703 = vld [vmem:[%s1700 + $0x10] sm:$0xff]
      %v1704 = vld [vmem:[%s1700 + $0x18] sm:$0xff]
      %v1705 = vld [vmem:[%s1700 + $0x20] sm:$0xff]
      %v1706 = vld [vmem:[%s1700 + $0x28] sm:$0xff]
      %v1707 = vld [vmem:[%s1700 + $0x30] sm:$0xff]
      %v1708 = vld [vmem:[%s1700 + $0x38] sm:$0xff]
      %v1709 = vld [vmem:[%s1700 + $0x40] sm:$0xff]
      %v1710 = vld [vmem:[%s1700 + $0x48] sm:$0xff]
      %v1711 = vld [vmem:[%s1700 + $0x50] sm:$0xff]
      %v1712 = vld [vmem:[%s1700 + $0x58] sm:$0xff]
      %v1713 = vld [vmem:[%s1700 + $0x60] sm:$0xff]
      %v1714 = vld [vmem:[%s1700 + $0x68] sm:$0xff]
      %v1715 = vld [vmem:[%s1700 + $0x70] sm:$0xff]
      %v1716 = vld [vmem:[%s1700 + $0x78] sm:$0xff]
      %s1717 = scalar_lea.vmem %s1, 24
      %v1718 = vld [vmem:[%s1717] sm:$0xf]
      %v1720 = vsel %vm377, %v1701, 0
      %v1723 = vsel %vm377, %v1702, 0
      %v1726 = vsel %vm377, %v1703, 0
      %v1729 = vsel %vm377, %v1704, 0
      %v1732 = vsel %vm377, %v1705, 0
      %v1735 = vsel %vm377, %v1706, 0
      %v1738 = vsel %vm377, %v1707, 0
      %v1741 = vsel %vm377, %v1708, 0
      %v1744 = vsel %vm377, %v1709, 0
      %v1747 = vsel %vm377, %v1710, 0
      %v1750 = vsel %vm377, %v1711, 0
      %v1753 = vsel %vm377, %v1712, 0
      %v1756 = vsel %vm377, %v1713, 0
      %v1759 = vsel %vm377, %v1714, 0
      %v1762 = vsel %vm377, %v1715, 0
      %v1765 = vsel %vm377, %v1716, 0
      %v1768 = vsel %vm426, %v1718, 0
      %1770 = vmatprep.subr.mxu0 0.0
      %1771 = vmatpush1.msra.mxu0 %v1768
      %1772 = vmatprep.subr.mxu0 0.0
      %1773 = vmatpush1.msra.mxu0 0.0
      %1774 = vmatprep.subr.mxu0 0.0
      %1775 = vmatpush1.msra.mxu0 0.0
      %1776 = vmatprep.subr.mxu0 0.0
      %1777 = vmatpush1.msra.mxu0 0.0
      %1778 = vmatprep.subr.mxu0 0.0
      %1779 = vmatpush1.msra.mxu0 0.0
      %1780 = vmatprep.subr.mxu0 0.0
      %1781 = vmatpush1.msra.mxu0 0.0
      %1782 = vmatprep.subr.mxu0 0.0
      %1783 = vmatpush1.msra.mxu0 0.0
      %1784 = vmatprep.subr.mxu0 0.0
      %1785 = vmatpush1.msra.mxu0 0.0
      %1786 = vmatprep.subr.mxu0 0.0
      %1787 = vmatpush1.msra.mxu0 0.0
      %1788 = vmatprep.subr.mxu0 0.0
      %1789 = vmatpush1.msra.mxu0 0.0
      %1790 = vmatprep.subr.mxu0 0.0
      %1791 = vmatpush1.msra.mxu0 0.0
      %1792 = vmatprep.subr.mxu0 0.0
      %1793 = vmatpush1.msra.mxu0 0.0
      %1794 = vmatprep.subr.mxu0 0.0
      %1795 = vmatpush1.msra.mxu0 0.0
      %1796 = vmatprep.subr.mxu0 0.0
      %1797 = vmatpush1.msra.mxu0 0.0
      %1798 = vmatprep.subr.mxu0 0.0
      %1799 = vmatpush1.msra.mxu0 0.0
      %1800 = vmatprep.subr.mxu0 0.0
      %1801 = vmatpush1.msra.mxu0 0.0
      %1802 = vmatprep.subr.mxu0 0.0
      %1803 = vmatpush1.msra.mxu0 0.0
      %1804 = vmatprep.subr.mxu0 0.0
      %1805 = vmatpush1.msra.mxu0 0.0
      %1806 = vmatprep.subr.mxu0 0.0
      %1807 = vmatpush1.msra.mxu0 0.0
      %1808 = vmatprep.subr.mxu0 0.0
      %1809 = vmatpush1.msra.mxu0 0.0
      %1810 = vmatprep.subr.mxu0 0.0
      %1811 = vmatpush1.msra.mxu0 0.0
      %1812 = vmatprep.subr.mxu0 0.0
      %1813 = vmatpush1.msra.mxu0 0.0
      %1814 = vmatprep.subr.mxu0 0.0
      %1815 = vmatpush1.msra.mxu0 0.0
      %1816 = vmatprep.subr.mxu0 0.0
      %1817 = vmatpush1.msra.mxu0 0.0
      %1818 = vmatprep.subr.mxu0 0.0
      %1819 = vmatpush1.msra.mxu0 0.0
      %1820 = vmatprep.subr.mxu0 0.0
      %1821 = vmatpush1.msra.mxu0 0.0
      %1822 = vmatprep.subr.mxu0 0.0
      %1823 = vmatpush1.msra.mxu0 0.0
      %1824 = vmatprep.subr.mxu0 0.0
      %1825 = vmatpush1.msra.mxu0 0.0
      %1826 = vmatprep.subr.mxu0 0.0
      %1827 = vmatpush1.msra.mxu0 0.0
      %1828 = vmatprep.subr.mxu0 0.0
      %1829 = vmatpush1.msra.mxu0 0.0
      %1830 = vmatprep.subr.mxu0 0.0
      %1831 = vmatpush1.msra.mxu0 0.0
      %1832 = vmatprep.subr.mxu0 0.0
      %1833 = vmatpush1.msra.mxu0 0.0
      %1834 = vmatprep.mubr.f32.mxu0 0.0
      %1835 = vmatmul.mubr.f32.gmra.mrb[0].mxu0 %v1720
      %v1836 = vpop.f32.mrb[0].mxu0
      %v1837 = vadd.f32 0.0, %v1836
      %v1838 = vpop.f32.mrb[0].mxu0
      %1839 = vmatprep.mubr.f32.mxu0 0.0
      %1840 = vmatmul.mubr.f32.gmra.mrb[0].mxu0 %v1723
      %v1841 = vpop.f32.mrb[0].mxu0
      %v1842 = vadd.f32 0.0, %v1841
      %v1843 = vpop.f32.mrb[0].mxu0
      %1844 = vmatprep.mubr.f32.mxu0 0.0
      %1845 = vmatmul.mubr.f32.gmra.mrb[0].mxu0 %v1726
      %v1846 = vpop.f32.mrb[0].mxu0
      %v1847 = vadd.f32 0.0, %v1846
      %v1848 = vpop.f32.mrb[0].mxu0
      %1849 = vmatprep.mubr.f32.mxu0 0.0
      %1850 = vmatmul.mubr.f32.gmra.mrb[0].mxu0 %v1729
      %v1851 = vpop.f32.mrb[0].mxu0
      %v1852 = vadd.f32 0.0, %v1851
      %v1853 = vpop.f32.mrb[0].mxu0
      %1854 = vmatprep.mubr.f32.mxu0 0.0
      %1855 = vmatmul.mubr.f32.gmra.mrb[0].mxu0 %v1732
      %v1856 = vpop.f32.mrb[0].mxu0
      %v1857 = vadd.f32 0.0, %v1856
      %v1858 = vpop.f32.mrb[0].mxu0
      %1859 = vmatprep.mubr.f32.mxu0 0.0
      %1860 = vmatmul.mubr.f32.gmra.mrb[0].mxu0 %v1735
      %v1861 = vpop.f32.mrb[0].mxu0
      %v1862 = vadd.f32 0.0, %v1861
      %v1863 = vpop.f32.mrb[0].mxu0
      %1864 = vmatprep.mubr.f32.mxu0 0.0
      %1865 = vmatmul.mubr.f32.gmra.mrb[0].mxu0 %v1738
      %v1866 = vpop.f32.mrb[0].mxu0
      %v1867 = vadd.f32 0.0, %v1866
      %v1868 = vpop.f32.mrb[0].mxu0
      %1869 = vmatprep.mubr.f32.mxu0 0.0
      %1870 = vmatmul.mubr.f32.gmra.mrb[0].mxu0 %v1741
      %v1871 = vpop.f32.mrb[0].mxu0
      %v1872 = vadd.f32 0.0, %v1871
      %v1873 = vpop.f32.mrb[0].mxu0
      %1874 = vmatprep.mubr.f32.mxu0 0.0
      %1875 = vmatmul.mubr.f32.gmra.mrb[0].mxu0 %v1744
      %v1876 = vpop.f32.mrb[0].mxu0
      %v1877 = vadd.f32 0.0, %v1876
      %v1878 = vpop.f32.mrb[0].mxu0
      %1879 = vmatprep.mubr.f32.mxu0 0.0
      %1880 = vmatmul.mubr.f32.gmra.mrb[0].mxu0 %v1747
      %v1881 = vpop.f32.mrb[0].mxu0
      %v1882 = vadd.f32 0.0, %v1881
      %v1883 = vpop.f32.mrb[0].mxu0
      %1884 = vmatprep.mubr.f32.mxu0 0.0
      %1885 = vmatmul.mubr.f32.gmra.mrb[0].mxu0 %v1750
      %v1886 = vpop.f32.mrb[0].mxu0
      %v1887 = vadd.f32 0.0, %v1886
      %v1888 = vpop.f32.mrb[0].mxu0
      %1889 = vmatprep.mubr.f32.mxu0 0.0
      %1890 = vmatmul.mubr.f32.gmra.mrb[0].mxu0 %v1753
      %v1891 = vpop.f32.mrb[0].mxu0
      %v1892 = vadd.f32 0.0, %v1891
      %v1893 = vpop.f32.mrb[0].mxu0
      %1894 = vmatprep.mubr.f32.mxu0 0.0
      %1895 = vmatmul.mubr.f32.gmra.mrb[0].mxu0 %v1756
      %v1896 = vpop.f32.mrb[0].mxu0
      %v1897 = vadd.f32 0.0, %v1896
      %v1898 = vpop.f32.mrb[0].mxu0
      %1899 = vmatprep.mubr.f32.mxu0 0.0
      %1900 = vmatmul.mubr.f32.gmra.mrb[0].mxu0 %v1759
      %v1901 = vpop.f32.mrb[0].mxu0
      %v1902 = vadd.f32 0.0, %v1901
      %v1903 = vpop.f32.mrb[0].mxu0
      %1904 = vmatprep.mubr.f32.mxu0 0.0
      %1905 = vmatmul.mubr.f32.gmra.mrb[0].mxu0 %v1762
      %v1906 = vpop.f32.mrb[0].mxu0
      %v1907 = vadd.f32 0.0, %v1906
      %v1908 = vpop.f32.mrb[0].mxu0
      %1909 = vmatprep.mubr.f32.mxu0 0.0
      %1910 = vmatmul.mubr.f32.gmra.mrb[0].mxu0 %v1765
      %v1911 = vpop.f32.mrb[0].mxu0
      %v1912 = vadd.f32 0.0, %v1911
      %v1913 = vpop.f32.mrb[0].mxu0
      %1914 = vdwg.mxu0
      %v1915 = vadd.f32 %v1683, %v1837
      %v1916 = vadd.f32 %v1684, %v1842
      %v1917 = vadd.f32 %v1685, %v1847
      %v1918 = vadd.f32 %v1686, %v1852
      %v1919 = vadd.f32 %v1687, %v1857
      %v1920 = vadd.f32 %v1688, %v1862
      %v1921 = vadd.f32 %v1689, %v1867
      %v1922 = vadd.f32 %v1690, %v1872
      %v1923 = vadd.f32 %v1691, %v1877
      %v1924 = vadd.f32 %v1692, %v1882
      %v1925 = vadd.f32 %v1693, %v1887
      %v1926 = vadd.f32 %v1694, %v1892
      %v1927 = vadd.f32 %v1695, %v1897
      %v1928 = vadd.f32 %v1696, %v1902
      %v1929 = vadd.f32 %v1697, %v1907
      %v1930 = vadd.f32 %v1698, %v1912
      %s1931 = sadd.s32 %s338, 33
      %s1932 = scalar_lea.vmem %s305, %s1931
      %v1933 = vld [vmem:[%s1932] sm:$0xff]
      %v1934 = vld [vmem:[%s1932 + $0x8] sm:$0xff]
      %v1935 = vld [vmem:[%s1932 + $0x10] sm:$0xff]
      %v1936 = vld [vmem:[%s1932 + $0x18] sm:$0xff]
      %v1937 = vld [vmem:[%s1932 + $0x20] sm:$0xff]
      %v1938 = vld [vmem:[%s1932 + $0x28] sm:$0xff]
      %v1939 = vld [vmem:[%s1932 + $0x30] sm:$0xff]
      %v1940 = vld [vmem:[%s1932 + $0x38] sm:$0xff]
      %v1941 = vld [vmem:[%s1932 + $0x40] sm:$0xff]
      %v1942 = vld [vmem:[%s1932 + $0x48] sm:$0xff]
      %v1943 = vld [vmem:[%s1932 + $0x50] sm:$0xff]
      %v1944 = vld [vmem:[%s1932 + $0x58] sm:$0xff]
      %v1945 = vld [vmem:[%s1932 + $0x60] sm:$0xff]
      %v1946 = vld [vmem:[%s1932 + $0x68] sm:$0xff]
      %v1947 = vld [vmem:[%s1932 + $0x70] sm:$0xff]
      %v1948 = vld [vmem:[%s1932 + $0x78] sm:$0xff]
      %s1949 = scalar_lea.vmem %s1, 28
      %v1950 = vld [vmem:[%s1949] sm:$0xf]
      %v1952 = vsel %vm377, %v1933, 0
      %v1955 = vsel %vm377, %v1934, 0
      %v1958 = vsel %vm377, %v1935, 0
      %v1961 = vsel %vm377, %v1936, 0
      %v1964 = vsel %vm377, %v1937, 0
      %v1967 = vsel %vm377, %v1938, 0
      %v1970 = vsel %vm377, %v1939, 0
      %v1973 = vsel %vm377, %v1940, 0
      %v1976 = vsel %vm377, %v1941, 0
      %v1979 = vsel %vm377, %v1942, 0
      %v1982 = vsel %vm377, %v1943, 0
      %v1985 = vsel %vm377, %v1944, 0
      %v1988 = vsel %vm377, %v1945, 0
      %v1991 = vsel %vm377, %v1946, 0
      %v1994 = vsel %vm377, %v1947, 0
      %v1997 = vsel %vm377, %v1948, 0
      %v2000 = vsel %vm426, %v1950, 0
      %2002 = vmatprep.subr.mxu0 0.0
      %2003 = vmatpush1.msra.mxu0 %v2000
      %2004 = vmatprep.subr.mxu0 0.0
      %2005 = vmatpush1.msra.mxu0 0.0
      %2006 = vmatprep.subr.mxu0 0.0
      %2007 = vmatpush1.msra.mxu0 0.0
      %2008 = vmatprep.subr.mxu0 0.0
      %2009 = vmatpush1.msra.mxu0 0.0
      %2010 = vmatprep.subr.mxu0 0.0
      %2011 = vmatpush1.msra.mxu0 0.0
      %2012 = vmatprep.subr.mxu0 0.0
      %2013 = vmatpush1.msra.mxu0 0.0
      %2014 = vmatprep.subr.mxu0 0.0
      %2015 = vmatpush1.msra.mxu0 0.0
      %2016 = vmatprep.subr.mxu0 0.0
      %2017 = vmatpush1.msra.mxu0 0.0
      %2018 = vmatprep.subr.mxu0 0.0
      %2019 = vmatpush1.msra.mxu0 0.0
      %2020 = vmatprep.subr.mxu0 0.0
      %2021 = vmatpush1.msra.mxu0 0.0
      %2022 = vmatprep.subr.mxu0 0.0
      %2023 = vmatpush1.msra.mxu0 0.0
      %2024 = vmatprep.subr.mxu0 0.0
      %2025 = vmatpush1.msra.mxu0 0.0
      %2026 = vmatprep.subr.mxu0 0.0
      %2027 = vmatpush1.msra.mxu0 0.0
      %2028 = vmatprep.subr.mxu0 0.0
      %2029 = vmatpush1.msra.mxu0 0.0
      %2030 = vmatprep.subr.mxu0 0.0
      %2031 = vmatpush1.msra.mxu0 0.0
      %2032 = vmatprep.subr.mxu0 0.0
      %2033 = vmatpush1.msra.mxu0 0.0
      %2034 = vmatprep.subr.mxu0 0.0
      %2035 = vmatpush1.msra.mxu0 0.0
      %2036 = vmatprep.subr.mxu0 0.0
      %2037 = vmatpush1.msra.mxu0 0.0
      %2038 = vmatprep.subr.mxu0 0.0
      %2039 = vmatpush1.msra.mxu0 0.0
      %2040 = vmatprep.subr.mxu0 0.0
      %2041 = vmatpush1.msra.mxu0 0.0
      %2042 = vmatprep.subr.mxu0 0.0
      %2043 = vmatpush1.msra.mxu0 0.0
      %2044 = vmatprep.subr.mxu0 0.0
      %2045 = vmatpush1.msra.mxu0 0.0
      %2046 = vmatprep.subr.mxu0 0.0
      %2047 = vmatpush1.msra.mxu0 0.0
      %2048 = vmatprep.subr.mxu0 0.0
      %2049 = vmatpush1.msra.mxu0 0.0
      %2050 = vmatprep.subr.mxu0 0.0
      %2051 = vmatpush1.msra.mxu0 0.0
      %2052 = vmatprep.subr.mxu0 0.0
      %2053 = vmatpush1.msra.mxu0 0.0
      %2054 = vmatprep.subr.mxu0 0.0
      %2055 = vmatpush1.msra.mxu0 0.0
      %2056 = vmatprep.subr.mxu0 0.0
      %2057 = vmatpush1.msra.mxu0 0.0
      %2058 = vmatprep.subr.mxu0 0.0
      %2059 = vmatpush1.msra.mxu0 0.0
      %2060 = vmatprep.subr.mxu0 0.0
      %2061 = vmatpush1.msra.mxu0 0.0
      %2062 = vmatprep.subr.mxu0 0.0
      %2063 = vmatpush1.msra.mxu0 0.0
      %2064 = vmatprep.subr.mxu0 0.0
      %2065 = vmatpush1.msra.mxu0 0.0
      %2066 = vmatprep.mubr.f32.mxu0 0.0
      %2067 = vmatmul.mubr.f32.gmra.mrb[0].mxu0 %v1952
      %v2068 = vpop.f32.mrb[0].mxu0
      %v2069 = vadd.f32 0.0, %v2068
      %v2070 = vpop.f32.mrb[0].mxu0
      %2071 = vmatprep.mubr.f32.mxu0 0.0
      %2072 = vmatmul.mubr.f32.gmra.mrb[0].mxu0 %v1955
      %v2073 = vpop.f32.mrb[0].mxu0
      %v2074 = vadd.f32 0.0, %v2073
      %v2075 = vpop.f32.mrb[0].mxu0
      %2076 = vmatprep.mubr.f32.mxu0 0.0
      %2077 = vmatmul.mubr.f32.gmra.mrb[0].mxu0 %v1958
      %v2078 = vpop.f32.mrb[0].mxu0
      %v2079 = vadd.f32 0.0, %v2078
      %v2080 = vpop.f32.mrb[0].mxu0
      %2081 = vmatprep.mubr.f32.mxu0 0.0
      %2082 = vmatmul.mubr.f32.gmra.mrb[0].mxu0 %v1961
      %v2083 = vpop.f32.mrb[0].mxu0
      %v2084 = vadd.f32 0.0, %v2083
      %v2085 = vpop.f32.mrb[0].mxu0
      %2086 = vmatprep.mubr.f32.mxu0 0.0
      %2087 = vmatmul.mubr.f32.gmra.mrb[0].mxu0 %v1964
      %v2088 = vpop.f32.mrb[0].mxu0
      %v2089 = vadd.f32 0.0, %v2088
      %v2090 = vpop.f32.mrb[0].mxu0
      %2091 = vmatprep.mubr.f32.mxu0 0.0
      %2092 = vmatmul.mubr.f32.gmra.mrb[0].mxu0 %v1967
      %v2093 = vpop.f32.mrb[0].mxu0
      %v2094 = vadd.f32 0.0, %v2093
      %v2095 = vpop.f32.mrb[0].mxu0
      %2096 = vmatprep.mubr.f32.mxu0 0.0
      %2097 = vmatmul.mubr.f32.gmra.mrb[0].mxu0 %v1970
      %v2098 = vpop.f32.mrb[0].mxu0
      %v2099 = vadd.f32 0.0, %v2098
      %v2100 = vpop.f32.mrb[0].mxu0
      %2101 = vmatprep.mubr.f32.mxu0 0.0
      %2102 = vmatmul.mubr.f32.gmra.mrb[0].mxu0 %v1973
      %v2103 = vpop.f32.mrb[0].mxu0
      %v2104 = vadd.f32 0.0, %v2103
      %v2105 = vpop.f32.mrb[0].mxu0
      %2106 = vmatprep.mubr.f32.mxu0 0.0
      %2107 = vmatmul.mubr.f32.gmra.mrb[0].mxu0 %v1976
      %v2108 = vpop.f32.mrb[0].mxu0
      %v2109 = vadd.f32 0.0, %v2108
      %v2110 = vpop.f32.mrb[0].mxu0
      %2111 = vmatprep.mubr.f32.mxu0 0.0
      %2112 = vmatmul.mubr.f32.gmra.mrb[0].mxu0 %v1979
      %v2113 = vpop.f32.mrb[0].mxu0
      %v2114 = vadd.f32 0.0, %v2113
      %v2115 = vpop.f32.mrb[0].mxu0
      %2116 = vmatprep.mubr.f32.mxu0 0.0
      %2117 = vmatmul.mubr.f32.gmra.mrb[0].mxu0 %v1982
      %v2118 = vpop.f32.mrb[0].mxu0
      %v2119 = vadd.f32 0.0, %v2118
      %v2120 = vpop.f32.mrb[0].mxu0
      %2121 = vmatprep.mubr.f32.mxu0 0.0
      %2122 = vmatmul.mubr.f32.gmra.mrb[0].mxu0 %v1985
      %v2123 = vpop.f32.mrb[0].mxu0
      %v2124 = vadd.f32 0.0, %v2123
      %v2125 = vpop.f32.mrb[0].mxu0
      %2126 = vmatprep.mubr.f32.mxu0 0.0
      %2127 = vmatmul.mubr.f32.gmra.mrb[0].mxu0 %v1988
      %v2128 = vpop.f32.mrb[0].mxu0
      %v2129 = vadd.f32 0.0, %v2128
      %v2130 = vpop.f32.mrb[0].mxu0
      %2131 = vmatprep.mubr.f32.mxu0 0.0
      %2132 = vmatmul.mubr.f32.gmra.mrb[0].mxu0 %v1991
      %v2133 = vpop.f32.mrb[0].mxu0
      %v2134 = vadd.f32 0.0, %v2133
      %v2135 = vpop.f32.mrb[0].mxu0
      %2136 = vmatprep.mubr.f32.mxu0 0.0
      %2137 = vmatmul.mubr.f32.gmra.mrb[0].mxu0 %v1994
      %v2138 = vpop.f32.mrb[0].mxu0
      %v2139 = vadd.f32 0.0, %v2138
      %v2140 = vpop.f32.mrb[0].mxu0
      %2141 = vmatprep.mubr.f32.mxu0 0.0
      %2142 = vmatmul.mubr.f32.gmra.mrb[0].mxu0 %v1997
      %v2143 = vpop.f32.mrb[0].mxu0
      %v2144 = vadd.f32 0.0, %v2143
      %v2145 = vpop.f32.mrb[0].mxu0
      %2146 = vdwg.mxu0
      %v2147 = vadd.f32 %v1915, %v2069
      %v2148 = vadd.f32 %v1916, %v2074
      %v2149 = vadd.f32 %v1917, %v2079
      %v2150 = vadd.f32 %v1918, %v2084
      %v2151 = vadd.f32 %v1919, %v2089
      %v2152 = vadd.f32 %v1920, %v2094
      %v2153 = vadd.f32 %v1921, %v2099
      %v2154 = vadd.f32 %v1922, %v2104
      %v2155 = vadd.f32 %v1923, %v2109
      %v2156 = vadd.f32 %v1924, %v2114
      %v2157 = vadd.f32 %v1925, %v2119
      %v2158 = vadd.f32 %v1926, %v2124
      %v2159 = vadd.f32 %v1927, %v2129
      %v2160 = vadd.f32 %v1928, %v2134
      %v2161 = vadd.f32 %v1929, %v2139
      %v2162 = vadd.f32 %v1930, %v2144
      %s2163 = sadd.s32 %s338, 34
      %s2164 = scalar_lea.vmem %s305, %s2163
      %v2165 = vld [vmem:[%s2164] sm:$0xff]
      %v2166 = vld [vmem:[%s2164 + $0x8] sm:$0xff]
      %v2167 = vld [vmem:[%s2164 + $0x10] sm:$0xff]
      %v2168 = vld [vmem:[%s2164 + $0x18] sm:$0xff]
      %v2169 = vld [vmem:[%s2164 + $0x20] sm:$0xff]
      %v2170 = vld [vmem:[%s2164 + $0x28] sm:$0xff]
      %v2171 = vld [vmem:[%s2164 + $0x30] sm:$0xff]
      %v2172 = vld [vmem:[%s2164 + $0x38] sm:$0xff]
      %v2173 = vld [vmem:[%s2164 + $0x40] sm:$0xff]
      %v2174 = vld [vmem:[%s2164 + $0x48] sm:$0xff]
      %v2175 = vld [vmem:[%s2164 + $0x50] sm:$0xff]
      %v2176 = vld [vmem:[%s2164 + $0x58] sm:$0xff]
      %v2177 = vld [vmem:[%s2164 + $0x60] sm:$0xff]
      %v2178 = vld [vmem:[%s2164 + $0x68] sm:$0xff]
      %v2179 = vld [vmem:[%s2164 + $0x70] sm:$0xff]
      %v2180 = vld [vmem:[%s2164 + $0x78] sm:$0xff]
      %s2181 = scalar_lea.vmem %s1, 32
      %v2182 = vld [vmem:[%s2181] sm:$0xf]
      %v2184 = vsel %vm377, %v2165, 0
      %v2187 = vsel %vm377, %v2166, 0
      %v2190 = vsel %vm377, %v2167, 0
      %v2193 = vsel %vm377, %v2168, 0
      %v2196 = vsel %vm377, %v2169, 0
      %v2199 = vsel %vm377, %v2170, 0
      %v2202 = vsel %vm377, %v2171, 0
      %v2205 = vsel %vm377, %v2172, 0
      %v2208 = vsel %vm377, %v2173, 0
      %v2211 = vsel %vm377, %v2174, 0
      %v2214 = vsel %vm377, %v2175, 0
      %v2217 = vsel %vm377, %v2176, 0
      %v2220 = vsel %vm377, %v2177, 0
      %v2223 = vsel %vm377, %v2178, 0
      %v2226 = vsel %vm377, %v2179, 0
      %v2229 = vsel %vm377, %v2180, 0
      %v2232 = vsel %vm426, %v2182, 0
      %2234 = vmatprep.subr.mxu0 0.0
      %2235 = vmatpush1.msra.mxu0 %v2232
      %2236 = vmatprep.subr.mxu0 0.0
      %2237 = vmatpush1.msra.mxu0 0.0
      %2238 = vmatprep.subr.mxu0 0.0
      %2239 = vmatpush1.msra.mxu0 0.0
      %2240 = vmatprep.subr.mxu0 0.0
      %2241 = vmatpush1.msra.mxu0 0.0
      %2242 = vmatprep.subr.mxu0 0.0
      %2243 = vmatpush1.msra.mxu0 0.0
      %2244 = vmatprep.subr.mxu0 0.0
      %2245 = vmatpush1.msra.mxu0 0.0
      %2246 = vmatprep.subr.mxu0 0.0
      %2247 = vmatpush1.msra.mxu0 0.0
      %2248 = vmatprep.subr.mxu0 0.0
      %2249 = vmatpush1.msra.mxu0 0.0
      %2250 = vmatprep.subr.mxu0 0.0
      %2251 = vmatpush1.msra.mxu0 0.0
      %2252 = vmatprep.subr.mxu0 0.0
      %2253 = vmatpush1.msra.mxu0 0.0
      %2254 = vmatprep.subr.mxu0 0.0
      %2255 = vmatpush1.msra.mxu0 0.0
      %2256 = vmatprep.subr.mxu0 0.0
      %2257 = vmatpush1.msra.mxu0 0.0
      %2258 = vmatprep.subr.mxu0 0.0
      %2259 = vmatpush1.msra.mxu0 0.0
      %2260 = vmatprep.subr.mxu0 0.0
      %2261 = vmatpush1.msra.mxu0 0.0
      %2262 = vmatprep.subr.mxu0 0.0
      %2263 = vmatpush1.msra.mxu0 0.0
      %2264 = vmatprep.subr.mxu0 0.0
      %2265 = vmatpush1.msra.mxu0 0.0
      %2266 = vmatprep.subr.mxu0 0.0
      %2267 = vmatpush1.msra.mxu0 0.0
      %2268 = vmatprep.subr.mxu0 0.0
      %2269 = vmatpush1.msra.mxu0 0.0
      %2270 = vmatprep.subr.mxu0 0.0
      %2271 = vmatpush1.msra.mxu0 0.0
      %2272 = vmatprep.subr.mxu0 0.0
      %2273 = vmatpush1.msra.mxu0 0.0
      %2274 = vmatprep.subr.mxu0 0.0
      %2275 = vmatpush1.msra.mxu0 0.0
      %2276 = vmatprep.subr.mxu0 0.0
      %2277 = vmatpush1.msra.mxu0 0.0
      %2278 = vmatprep.subr.mxu0 0.0
      %2279 = vmatpush1.msra.mxu0 0.0
      %2280 = vmatprep.subr.mxu0 0.0
      %2281 = vmatpush1.msra.mxu0 0.0
      %2282 = vmatprep.subr.mxu0 0.0
      %2283 = vmatpush1.msra.mxu0 0.0
      %2284 = vmatprep.subr.mxu0 0.0
      %2285 = vmatpush1.msra.mxu0 0.0
      %2286 = vmatprep.subr.mxu0 0.0
      %2287 = vmatpush1.msra.mxu0 0.0
      %2288 = vmatprep.subr.mxu0 0.0
      %2289 = vmatpush1.msra.mxu0 0.0
      %2290 = vmatprep.subr.mxu0 0.0
      %2291 = vmatpush1.msra.mxu0 0.0
      %2292 = vmatprep.subr.mxu0 0.0
      %2293 = vmatpush1.msra.mxu0 0.0
      %2294 = vmatprep.subr.mxu0 0.0
      %2295 = vmatpush1.msra.mxu0 0.0
      %2296 = vmatprep.subr.mxu0 0.0
      %2297 = vmatpush1.msra.mxu0 0.0
      %2298 = vmatprep.mubr.f32.mxu0 0.0
      %2299 = vmatmul.mubr.f32.gmra.mrb[0].mxu0 %v2184
      %v2300 = vpop.f32.mrb[0].mxu0
      %v2301 = vadd.f32 0.0, %v2300
      %v2302 = vpop.f32.mrb[0].mxu0
      %2303 = vmatprep.mubr.f32.mxu0 0.0
      %2304 = vmatmul.mubr.f32.gmra.mrb[0].mxu0 %v2187
      %v2305 = vpop.f32.mrb[0].mxu0
      %v2306 = vadd.f32 0.0, %v2305
      %v2307 = vpop.f32.mrb[0].mxu0
      %2308 = vmatprep.mubr.f32.mxu0 0.0
      %2309 = vmatmul.mubr.f32.gmra.mrb[0].mxu0 %v2190
      %v2310 = vpop.f32.mrb[0].mxu0
      %v2311 = vadd.f32 0.0, %v2310
      %v2312 = vpop.f32.mrb[0].mxu0
      %2313 = vmatprep.mubr.f32.mxu0 0.0
      %2314 = vmatmul.mubr.f32.gmra.mrb[0].mxu0 %v2193
      %v2315 = vpop.f32.mrb[0].mxu0
      %v2316 = vadd.f32 0.0, %v2315
      %v2317 = vpop.f32.mrb[0].mxu0
      %2318 = vmatprep.mubr.f32.mxu0 0.0
      %2319 = vmatmul.mubr.f32.gmra.mrb[0].mxu0 %v2196
      %v2320 = vpop.f32.mrb[0].mxu0
      %v2321 = vadd.f32 0.0, %v2320
      %v2322 = vpop.f32.mrb[0].mxu0
      %2323 = vmatprep.mubr.f32.mxu0 0.0
      %2324 = vmatmul.mubr.f32.gmra.mrb[0].mxu0 %v2199
      %v2325 = vpop.f32.mrb[0].mxu0
      %v2326 = vadd.f32 0.0, %v2325
      %v2327 = vpop.f32.mrb[0].mxu0
      %2328 = vmatprep.mubr.f32.mxu0 0.0
      %2329 = vmatmul.mubr.f32.gmra.mrb[0].mxu0 %v2202
      %v2330 = vpop.f32.mrb[0].mxu0
      %v2331 = vadd.f32 0.0, %v2330
      %v2332 = vpop.f32.mrb[0].mxu0
      %2333 = vmatprep.mubr.f32.mxu0 0.0
      %2334 = vmatmul.mubr.f32.gmra.mrb[0].mxu0 %v2205
      %v2335 = vpop.f32.mrb[0].mxu0
      %v2336 = vadd.f32 0.0, %v2335
      %v2337 = vpop.f32.mrb[0].mxu0
      %2338 = vmatprep.mubr.f32.mxu0 0.0
      %2339 = vmatmul.mubr.f32.gmra.mrb[0].mxu0 %v2208
      %v2340 = vpop.f32.mrb[0].mxu0
      %v2341 = vadd.f32 0.0, %v2340
      %v2342 = vpop.f32.mrb[0].mxu0
      %2343 = vmatprep.mubr.f32.mxu0 0.0
      %2344 = vmatmul.mubr.f32.gmra.mrb[0].mxu0 %v2211
      %v2345 = vpop.f32.mrb[0].mxu0
      %v2346 = vadd.f32 0.0, %v2345
      %v2347 = vpop.f32.mrb[0].mxu0
      %2348 = vmatprep.mubr.f32.mxu0 0.0
      %2349 = vmatmul.mubr.f32.gmra.mrb[0].mxu0 %v2214
      %v2350 = vpop.f32.mrb[0].mxu0
      %v2351 = vadd.f32 0.0, %v2350
      %v2352 = vpop.f32.mrb[0].mxu0
      %2353 = vmatprep.mubr.f32.mxu0 0.0
      %2354 = vmatmul.mubr.f32.gmra.mrb[0].mxu0 %v2217
      %v2355 = vpop.f32.mrb[0].mxu0
      %v2356 = vadd.f32 0.0, %v2355
      %v2357 = vpop.f32.mrb[0].mxu0
      %2358 = vmatprep.mubr.f32.mxu0 0.0
      %2359 = vmatmul.mubr.f32.gmra.mrb[0].mxu0 %v2220
      %v2360 = vpop.f32.mrb[0].mxu0
      %v2361 = vadd.f32 0.0, %v2360
      %v2362 = vpop.f32.mrb[0].mxu0
      %2363 = vmatprep.mubr.f32.mxu0 0.0
      %2364 = vmatmul.mubr.f32.gmra.mrb[0].mxu0 %v2223
      %v2365 = vpop.f32.mrb[0].mxu0
      %v2366 = vadd.f32 0.0, %v2365
      %v2367 = vpop.f32.mrb[0].mxu0
      %2368 = vmatprep.mubr.f32.mxu0 0.0
      %2369 = vmatmul.mubr.f32.gmra.mrb[0].mxu0 %v2226
      %v2370 = vpop.f32.mrb[0].mxu0
      %v2371 = vadd.f32 0.0, %v2370
      %v2372 = vpop.f32.mrb[0].mxu0
      %2373 = vmatprep.mubr.f32.mxu0 0.0
      %2374 = vmatmul.mubr.f32.gmra.mrb[0].mxu0 %v2229
      %v2375 = vpop.f32.mrb[0].mxu0
      %v2376 = vadd.f32 0.0, %v2375
      %v2377 = vpop.f32.mrb[0].mxu0
      %2378 = vdwg.mxu0
      %v2379 = vadd.f32 %v2147, %v2301
      %v2380 = vadd.f32 %v2148, %v2306
      %v2381 = vadd.f32 %v2149, %v2311
      %v2382 = vadd.f32 %v2150, %v2316
      %v2383 = vadd.f32 %v2151, %v2321
      %v2384 = vadd.f32 %v2152, %v2326
      %v2385 = vadd.f32 %v2153, %v2331
      %v2386 = vadd.f32 %v2154, %v2336
      %v2387 = vadd.f32 %v2155, %v2341
      %v2388 = vadd.f32 %v2156, %v2346
      %v2389 = vadd.f32 %v2157, %v2351
      %v2390 = vadd.f32 %v2158, %v2356
      %v2391 = vadd.f32 %v2159, %v2361
      %v2392 = vadd.f32 %v2160, %v2366
      %v2393 = vadd.f32 %v2161, %v2371
      %v2394 = vadd.f32 %v2162, %v2376
      %v2395 = vld [vmem:[%s2] sm:$0x1]
      %v2397 = vlaneseq
      %v2398 = vshrl.u32 %v2397, 7
      %v2399 = vsub.s32 0, %v2398
      %v2400 = vrot.slane %v2395, %v2399
      %v2402 = vadd.f32 %v2379, %v2400
      %v2403 = vadd.f32 %v2380, %v2400
      %v2404 = vadd.f32 %v2381, %v2400
      %v2405 = vadd.f32 %v2382, %v2400
      %v2406 = vadd.f32 %v2383, %v2400
      %v2407 = vadd.f32 %v2384, %v2400
      %v2408 = vadd.f32 %v2385, %v2400
      %v2409 = vadd.f32 %v2386, %v2400
      %v2410 = vadd.f32 %v2387, %v2400
      %v2411 = vadd.f32 %v2388, %v2400
      %v2412 = vadd.f32 %v2389, %v2400
      %v2413 = vadd.f32 %v2390, %v2400
      %v2414 = vadd.f32 %v2391, %v2400
      %v2415 = vadd.f32 %v2392, %v2400
      %v2416 = vadd.f32 %v2393, %v2400
      %v2417 = vadd.f32 %v2394, %v2400
      %v2418 = vmax.f32 %v2402, 0.0
      %v2419 = vmax.f32 %v2403, 0.0
      %v2420 = vmax.f32 %v2404, 0.0
      %v2421 = vmax.f32 %v2405, 0.0
      %v2422 = vmax.f32 %v2406, 0.0
      %v2423 = vmax.f32 %v2407, 0.0
      %v2424 = vmax.f32 %v2408, 0.0
      %v2425 = vmax.f32 %v2409, 0.0
      %v2426 = vmax.f32 %v2410, 0.0
      %v2427 = vmax.f32 %v2411, 0.0
      %v2428 = vmax.f32 %v2412, 0.0
      %v2429 = vmax.f32 %v2413, 0.0
      %v2430 = vmax.f32 %v2414, 0.0
      %v2431 = vmax.f32 %v2415, 0.0
      %v2432 = vmax.f32 %v2416, 0.0
      %v2433 = vmax.f32 %v2417, 0.0
      %2434 = vst [vmem:[%s320] sm:$0xff] %v2418
      %2435 = vst [vmem:[%s320 + $0x8] sm:$0xff] %v2419
      %2436 = vst [vmem:[%s320 + $0x10] sm:$0xff] %v2420
      %2437 = vst [vmem:[%s320 + $0x18] sm:$0xff] %v2421
      %2438 = vst [vmem:[%s320 + $0x20] sm:$0xff] %v2422
      %2439 = vst [vmem:[%s320 + $0x28] sm:$0xff] %v2423
      %2440 = vst [vmem:[%s320 + $0x30] sm:$0xff] %v2424
      %2441 = vst [vmem:[%s320 + $0x38] sm:$0xff] %v2425
      %2442 = vst [vmem:[%s320 + $0x40] sm:$0xff] %v2426
      %2443 = vst [vmem:[%s320 + $0x48] sm:$0xff] %v2427
      %2444 = vst [vmem:[%s320 + $0x50] sm:$0xff] %v2428
      %2445 = vst [vmem:[%s320 + $0x58] sm:$0xff] %v2429
      %2446 = vst [vmem:[%s320 + $0x60] sm:$0xff] %v2430
      %2447 = vst [vmem:[%s320 + $0x68] sm:$0xff] %v2431
      %2448 = vst [vmem:[%s320 + $0x70] sm:$0xff] %v2432
      %2449 = vst [vmem:[%s320 + $0x78] sm:$0xff] %v2433
      %v2450 = vld [vmem:[%s310] sm:$0xff]
      %v2451 = vld [vmem:[%s310 + $0x8] sm:$0xff]
      %v2452 = vld [vmem:[%s310 + $0x10] sm:$0xff]
      %v2453 = vld [vmem:[%s310 + $0x18] sm:$0xff]
      %v2454 = vld [vmem:[%s310 + $0x20] sm:$0xff]
      %v2455 = vld [vmem:[%s310 + $0x28] sm:$0xff]
      %v2456 = vld [vmem:[%s310 + $0x30] sm:$0xff]
      %v2457 = vld [vmem:[%s310 + $0x38] sm:$0xff]
      %v2458 = vld [vmem:[%s310 + $0x40] sm:$0xff]
      %v2459 = vld [vmem:[%s310 + $0x48] sm:$0xff]
      %v2460 = vld [vmem:[%s310 + $0x50] sm:$0xff]
      %v2461 = vld [vmem:[%s310 + $0x58] sm:$0xff]
      %v2462 = vld [vmem:[%s310 + $0x60] sm:$0xff]
      %v2463 = vld [vmem:[%s310 + $0x68] sm:$0xff]
      %v2464 = vld [vmem:[%s310 + $0x70] sm:$0xff]
      %v2465 = vld [vmem:[%s310 + $0x78] sm:$0xff]
      %2467 = vset.pattern.permute.xlu0 0
      %2468 = vperm.xlu0 %2467, %v2450
      %v2469 = vpop.permute.xlu0 %2468
      %2472 = vset.pattern.permute.xlu0 0
      %2473 = vperm.xlu0 %2472, %v2451
      %v2474 = vpop.permute.xlu0 %2473
      %2477 = vset.pattern.permute.xlu0 0
      %2478 = vperm.xlu0 %2477, %v2452
      %v2479 = vpop.permute.xlu0 %2478
      %2482 = vset.pattern.permute.xlu0 0
      %2483 = vperm.xlu0 %2482, %v2453
      %v2484 = vpop.permute.xlu0 %2483
      %2487 = vset.pattern.permute.xlu0 0
      %2488 = vperm.xlu0 %2487, %v2454
      %v2489 = vpop.permute.xlu0 %2488
      %2492 = vset.pattern.permute.xlu0 0
      %2493 = vperm.xlu0 %2492, %v2455
      %v2494 = vpop.permute.xlu0 %2493
      %2497 = vset.pattern.permute.xlu0 0
      %2498 = vperm.xlu0 %2497, %v2456
      %v2499 = vpop.permute.xlu0 %2498
      %2502 = vset.pattern.permute.xlu0 0
      %2503 = vperm.xlu0 %2502, %v2457
      %v2504 = vpop.permute.xlu0 %2503
      %2507 = vset.pattern.permute.xlu0 0
      %2508 = vperm.xlu0 %2507, %v2458
      %v2509 = vpop.permute.xlu0 %2508
      %2512 = vset.pattern.permute.xlu0 0
      %2513 = vperm.xlu0 %2512, %v2459
      %v2514 = vpop.permute.xlu0 %2513
      %2517 = vset.pattern.permute.xlu0 0
      %2518 = vperm.xlu0 %2517, %v2460
      %v2519 = vpop.permute.xlu0 %2518
      %2522 = vset.pattern.permute.xlu0 0
      %2523 = vperm.xlu0 %2522, %v2461
      %v2524 = vpop.permute.xlu0 %2523
      %2527 = vset.pattern.permute.xlu0 0
      %2528 = vperm.xlu0 %2527, %v2462
      %v2529 = vpop.permute.xlu0 %2528
      %2532 = vset.pattern.permute.xlu0 0
      %2533 = vperm.xlu0 %2532, %v2463
      %v2534 = vpop.permute.xlu0 %2533
      %2537 = vset.pattern.permute.xlu0 0
      %2538 = vperm.xlu0 %2537, %v2464
      %v2539 = vpop.permute.xlu0 %2538
      %2542 = vset.pattern.permute.xlu0 0
      %2543 = vperm.xlu0 %2542, %v2465
      %v2544 = vpop.permute.xlu0 %2543
      %v2546 = vmul.f32 %v2418, %v2469
      %v2547 = vmul.f32 %v2419, %v2474
      %v2548 = vmul.f32 %v2420, %v2479
      %v2549 = vmul.f32 %v2421, %v2484
      %v2550 = vmul.f32 %v2422, %v2489
      %v2551 = vmul.f32 %v2423, %v2494
      %v2552 = vmul.f32 %v2424, %v2499
      %v2553 = vmul.f32 %v2425, %v2504
      %v2554 = vmul.f32 %v2426, %v2509
      %v2555 = vmul.f32 %v2427, %v2514
      %v2556 = vmul.f32 %v2428, %v2519
      %v2557 = vmul.f32 %v2429, %v2524
      %v2558 = vmul.f32 %v2430, %v2529
      %v2559 = vmul.f32 %v2431, %v2534
      %v2560 = vmul.f32 %v2432, %v2539
      %v2561 = vmul.f32 %v2433, %v2544
      %v2562 = vadd.f32 %v2546, %v2547
      %v2563 = vadd.f32 %v2562, %v2548
      %v2564 = vadd.f32 %v2563, %v2549
      %v2565 = vadd.f32 %v2564, %v2550
      %v2566 = vadd.f32 %v2565, %v2551
      %v2567 = vadd.f32 %v2566, %v2552
      %v2568 = vadd.f32 %v2567, %v2553
      %v2569 = vadd.f32 %v2568, %v2554
      %v2570 = vadd.f32 %v2569, %v2555
      %v2571 = vadd.f32 %v2570, %v2556
      %v2572 = vadd.f32 %v2571, %v2557
      %v2573 = vadd.f32 %v2572, %v2558
      %v2574 = vadd.f32 %v2573, %v2559
      %v2575 = vadd.f32 %v2574, %v2560
      %v2576 = vadd.f32 %v2575, %v2561
      %v2577 = vrot.slane %v2576, 4
      %v2578 = vadd.f32 %v2576, %v2577
      %v2579 = vrot.slane %v2578, 2
      %v2580 = vadd.f32 %v2578, %v2579
      %v2581 = vrot.slane %v2580, 1
      %v2582 = vadd.f32 %v2580, %v2581
      %v2583 = vmul.f32 %v2546, %v2418
      %v2584 = vmul.f32 %v2547, %v2419
      %v2585 = vmul.f32 %v2548, %v2420
      %v2586 = vmul.f32 %v2549, %v2421
      %v2587 = vmul.f32 %v2550, %v2422
      %v2588 = vmul.f32 %v2551, %v2423
      %v2589 = vmul.f32 %v2552, %v2424
      %v2590 = vmul.f32 %v2553, %v2425
      %v2591 = vmul.f32 %v2554, %v2426
      %v2592 = vmul.f32 %v2555, %v2427
      %v2593 = vmul.f32 %v2556, %v2428
      %v2594 = vmul.f32 %v2557, %v2429
      %v2595 = vmul.f32 %v2558, %v2430
      %v2596 = vmul.f32 %v2559, %v2431
      %v2597 = vmul.f32 %v2560, %v2432
      %v2598 = vmul.f32 %v2561, %v2433
      %v2599 = vadd.f32 %v2583, %v2584
      %v2600 = vadd.f32 %v2599, %v2585
      %v2601 = vadd.f32 %v2600, %v2586
      %v2602 = vadd.f32 %v2601, %v2587
      %v2603 = vadd.f32 %v2602, %v2588
      %v2604 = vadd.f32 %v2603, %v2589
      %v2605 = vadd.f32 %v2604, %v2590
      %v2606 = vadd.f32 %v2605, %v2591
      %v2607 = vadd.f32 %v2606, %v2592
      %v2608 = vadd.f32 %v2607, %v2593
      %v2609 = vadd.f32 %v2608, %v2594
      %v2610 = vadd.f32 %v2609, %v2595
      %v2611 = vadd.f32 %v2610, %v2596
      %v2612 = vadd.f32 %v2611, %v2597
      %v2613 = vadd.f32 %v2612, %v2598
      %v2614 = vrot.slane %v2613, 4
      %v2615 = vadd.f32 %v2613, %v2614
      %v2616 = vrot.slane %v2615, 2
      %v2617 = vadd.f32 %v2615, %v2616
      %v2618 = vrot.slane %v2617, 1
      %v2619 = vadd.f32 %v2617, %v2618
      %2620 = vst [vmem:[%s327] sm:$0xff] %v2582
      %2621 = vst [vmem:[%s335] sm:$0xff] %v2619
      %s2622 = smul.u32 16, %s23
      %p2623 = scmp.lt.s32.totalorder %s22, 1
      %s2624 = scalar_select %p2623, %s22, 1
      %p2625 = scmp.lt.s32.totalorder %s2622, 31
      %s2626 = scalar_select %p2625, %s2622, 31
      %s2627 = smul.addr %s2624, 32
      %s2628 = sadd.s32 %s2626, %s2627
      %s2629 = smul.addr %s2628, 8
      %s2630 = scalar_lea.vmem %s4, %s2629
      %s2631 = smul.u32 %s22, 2
      %s2632 = sadd.s32 %s2631, %s23
      %p2633 = scmp.lt.s32.totalorder %s2632, 3
      %s2634 = scalar_select %p2633, %s2632, 3
      %s2635 = smul.addr %s2634, 8
      %s2636 = scalar_lea.vmem %s5, %s2635
      %s2637 = smul.u32 %s22, 2
      %s2638 = sadd.s32 %s2637, %s23
      %p2639 = scmp.lt.s32.totalorder %s2638, 3
      %s2640 = scalar_select %p2639, %s2638, 3
      %s2641 = smul.addr %s2640, 8
      %s2642 = scalar_lea.vmem %s6, %s2641
      // Predicated region
      $region37: #{conv_block_forward.2} parent=35 // pred_check
        %p2643 = pneg %p144
      $region38: #{conv_block_forward.2} parent=35 // pred_check_branch
        %2645 = sbr.rel (%p2643) target = $region40
      $region39: #{conv_block_forward.2} parent=35 // pred_region
        %s2646 = smul.u32 16, %s23
      $region40: #{conv_block_forward.2} parent=35 // pred_fallthru
        _
      // Predicated region
      $region41: #{conv_block_forward.2} parent=35 // pred_check
        %p2647 = pneg %p174
      $region42: #{conv_block_forward.2} parent=35 // pred_check_branch
        %2649 = sbr.rel (%p2647) target = $region44
      $region43: #{conv_block_forward.2} parent=35 // pred_region
        %s2650 = smul.u32 %s22, 2
        %s2651 = sadd.s32 %s2650, %s23
      $region44: #{conv_block_forward.2} parent=35 // pred_fallthru
        _
      // Predicated region
      $region45: #{conv_block_forward.2} parent=35 // pred_check
        %p2652 = pneg %p204
      $region46: #{conv_block_forward.2} parent=35 // pred_check_branch
        %2654 = sbr.rel (%p2652) target = $region48
      $region47: #{conv_block_forward.2} parent=35 // pred_region
        %s2655 = smul.u32 %s22, 2
        %s2656 = sadd.s32 %s2655, %s23
      $region48: #{conv_block_forward.2} parent=35 // pred_fallthru
        _
    $region36: #{conv_block_forward.2} parent=5 // pred_fallthru
      _
    %p2657 = scmp.le.s32.totalorder 2, %s13
    // Predicated region
    $region49: #{conv_block_forward.2} parent=5 // pred_check
      %p2658 = pneg %p2657
    $region50: #{conv_block_forward.2} parent=5 // pred_check_branch
      %2660 = sbr.rel (%p2658) target = $region52
    $region51: #{conv_block_forward.2} parent=5 // pred_region
      %s2661 = ssub.s32 %s13, 2
      // Predicated region
      $region53: #{conv_block_forward.2} parent=51 // pred_check
        %p2662 = pneg %p150
      $region54: #{conv_block_forward.2} parent=51 // pred_check_branch
        %2664 = sbr.rel (%p2662) target = $region56
      $region55: #{conv_block_forward.2} parent=51 // pred_region
        %s2665 = smul.u32 16, %s25
        %p2666 = scmp.lt.s32.totalorder %s24, 1
        %s2667 = scalar_select %p2666, %s24, 1
        %p2668 = scmp.lt.s32.totalorder %s2665, 31
        %s2669 = scalar_select %p2668, %s2665, 31
        %s2670 = smul.addr %s2667, 32
        %s2671 = sadd.s32 %s2669, %s2670
        %s2672 = smul.addr %s2671, 8
        %s2673 = scalar_lea.vmem %s4, %s2672
      $region56: #{conv_block_forward.2} parent=51 // pred_fallthru
        _
      // Predicated region
      $region57: #{conv_block_forward.2} parent=51 // pred_check
        %p2674 = pneg %p180
      $region58: #{conv_block_forward.2} parent=51 // pred_check_branch
        %2676 = sbr.rel (%p2674) target = $region60
      $region59: #{conv_block_forward.2} parent=51 // pred_region
        %s2677 = smul.u32 %s24, 2
        %s2678 = sadd.s32 %s2677, %s25
        %p2679 = scmp.lt.s32.totalorder %s2678, 3
        %s2680 = scalar_select %p2679, %s2678, 3
        %s2681 = smul.addr %s2680, 8
        %s2682 = scalar_lea.vmem %s5, %s2681
      $region60: #{conv_block_forward.2} parent=51 // pred_fallthru
        _
      // Predicated region
      $region61: #{conv_block_forward.2} parent=51 // pred_check
        %p2683 = pneg %p210
      $region62: #{conv_block_forward.2} parent=51 // pred_check_branch
        %2685 = sbr.rel (%p2683) target = $region64
      $region63: #{conv_block_forward.2} parent=51 // pred_region
        %s2686 = smul.u32 %s24, 2
        %s2687 = sadd.s32 %s2686, %s25
        %p2688 = scmp.lt.s32.totalorder %s2687, 3
        %s2689 = scalar_select %p2688, %s2687, 3
        %s2690 = smul.addr %s2689, 8
        %s2691 = scalar_lea.vmem %s6, %s2690
      $region64: #{conv_block_forward.2} parent=51 // pred_fallthru
        _
    $region52: #{conv_block_forward.2} parent=5 // pred_fallthru
      _
  $region6: #{conv_block_forward.2} parent=0 // loop_footer
    %s17 = sadd.s32 1, %s13
  $region7: #{conv_block_forward.2} parent=0 // loop_footer_branch
    %12 = sbr.rel target = $region3
  $region8: #{conv_block_forward.2} parent=0 // loop_exit
    _

</llo_original>
